<compile_context>
chip_gen: v6e
topology: v6e:2x2x1
jax: 0.10.0
libtpu: 0.0.40
codegen_flags: <defaults>
</compile_context>

<pallas_src>
import functools
import math

import jax
import jax.numpy as jnp
from jax import lax
from jax.experimental import pallas as pl
from jax.experimental.pallas import tpu as pltpu


def _gat_kernel(adj_ref, hq_ref, hk_ref, w_ref, wl_ref, wrt_ref, b_ref,
                out_ref, el_ref, num_ref, den_ref,
                *, n_heads, f_out, use_activation):
    k = pl.program_id(1)
    nk = pl.num_programs(1)

    @pl.when(k == 0)
    def _init():
        # Query-side transform + left attention logits, once per row tile.
        x_row = jnp.dot(hq_ref[...], w_ref[...],
                        preferred_element_type=jnp.float32)           # [TM, F_out]
        el_ref[...] = jnp.dot(x_row, wl_ref[...],
                              preferred_element_type=jnp.float32)     # [TM, H]
        num_ref[...] = jnp.zeros_like(num_ref)
        den_ref[...] = jnp.zeros_like(den_ref)

    # Key/value-side transform for this column tile.  (Recomputed per row tile;
    # cost ~TK*F_in*F_out flops, negligible next to the O(TM*TK*H*F_out)
    # aggregation matmuls.)
    x_col = jnp.dot(hk_ref[...], w_ref[...],
                    preferred_element_type=jnp.float32)               # [TK, F_out]
    # er_t[h, j] = sum_f Wr[f, h] * x_col[j, f] — contract on last dims so the
    # result lands heads-on-sublanes / neighbors-on-lanes (no transpose needed).
    er_t = lax.dot_general(wrt_ref[...], x_col,
                           dimension_numbers=(((1,), (1,)), ((), ())),
                           preferred_element_type=jnp.float32)        # [H, TK]

    mask = adj_ref[...] != 0.0                                        # [TM, TK]
    el = el_ref[...]                                                  # [TM, H]

    num_parts = []
    den_parts = []
    for hh in range(n_heads):
        logits = el[:, hh:hh + 1] + er_t[hh:hh + 1, :]                # [TM, TK]
        logits = jnp.where(logits > 0.0, logits, 0.2 * logits)        # LeakyReLU(0.2)
        e = jnp.where(mask, jnp.exp(logits), 0.0)                     # masked exp
        num_parts.append(jnp.dot(e, x_col,
                                 preferred_element_type=jnp.float32))  # [TM, F_out]
        den_parts.append(jnp.sum(e, axis=-1, keepdims=True))           # [TM, 1]
    num_ref[...] += jnp.concatenate(num_parts, axis=-1)               # [TM, H*F_out]
    den_ref[...] += jnp.concatenate(den_parts, axis=-1)               # [TM, H]

    @pl.when(k == nk - 1)
    def _finalize():
        num = num_ref[...]
        den = jnp.maximum(den_ref[...], 1e-12)      # F.normalize(p=1) eps
        pieces = []
        for hh in range(n_heads):
            pieces.append(num[:, hh * f_out:(hh + 1) * f_out] /
                          den[:, hh:hh + 1])
        v = jnp.concatenate(pieces, axis=-1) + b_ref[...]
        if use_activation:
            v = jnp.where(v > 0.0, v, jnp.exp(v) - 1.0)   # ELU
        out_ref[...] = v.astype(out_ref.dtype)            # one lane-dense store


def gat_layer(adj, h, w, wl, wr, b, *, use_activation=True, block=128):
    """GATLayer.forward (inference).

    adj: [N, N] dense (only the nonzero pattern is used), h: [N, F_in],
    w: [F_in, F_out], wl/wr: [F_out, H], b: [F_out].
    Returns [N, H*F_out] (heads concatenated, torch flatten(start_dim=1) order).
    """
    n, f_in = h.shape
    f_out = w.shape[1]
    n_heads = wl.shape[1]

    # Pad the node axis to a tile multiple.  Padded nodes are isolated (zero
    # adj rows/cols, zero features) so they cannot affect real rows; padded
    # output rows are sliced off at the end.
    n_pad = pl.cdiv(n, block) * block
    if n_pad != n:
        adj = jnp.pad(adj, ((0, n_pad - n), (0, n_pad - n)))
        h = jnp.pad(h, ((0, n_pad - n), (0, 0)))

    # Bias tiled into the concatenated-head layout -> single (1, H*F_out) ref.
    b_tiled = jnp.tile(b.reshape(1, f_out), (1, n_heads))
    wr_t = wr.T  # [H, F_out] so the kernel contracts on last dims

    gm = n_pad // block
    gk = n_pad // block
    kernel = functools.partial(_gat_kernel, n_heads=n_heads, f_out=f_out,
                               use_activation=use_activation)

    cost = pl.CostEstimate(
        flops=int(2 * n_pad * n_pad * n_heads * (f_out + 2)
                  + 2 * n_pad * f_in * f_out * (gm + 1)
                  + 4 * n_pad * f_out * n_heads * gm),
        transcendentals=int(n_pad * n_pad * n_heads + n_pad * n_heads * f_out),
        bytes_accessed=int(4 * (n_pad * n_pad + 2 * n_pad * f_in * gm
                                + n_pad * n_heads * f_out
                                + f_in * f_out + 2 * f_out * n_heads)),
    )

    out = pl.pallas_call(
        kernel,
        out_shape=jax.ShapeDtypeStruct((n_pad, n_heads * f_out), jnp.float32),
        grid_spec=pltpu.PrefetchScalarGridSpec(
            num_scalar_prefetch=0,
            grid=(gm, gk),
            in_specs=[
                pl.BlockSpec((block, block), lambda i, k: (i, k)),        # adj tile
                pl.BlockSpec((block, f_in), lambda i, k: (i, 0)),         # h (query rows)
                pl.BlockSpec((block, f_in), lambda i, k: (k, 0)),         # h (key/value rows)
                pl.BlockSpec((f_in, f_out), lambda i, k: (0, 0)),         # W
                pl.BlockSpec((f_out, n_heads), lambda i, k: (0, 0)),      # attn_l weight
                pl.BlockSpec((n_heads, f_out), lambda i, k: (0, 0)),      # attn_r weight (T)
                pl.BlockSpec((1, n_heads * f_out), lambda i, k: (0, 0)),  # bias (head-tiled)
            ],
            out_specs=pl.BlockSpec((block, n_heads * f_out),
                                   lambda i, k: (i, 0)),
            scratch_shapes=[
                pltpu.VMEM((block, n_heads), jnp.float32),                # el cache
                pltpu.VMEM((block, n_heads * f_out), jnp.float32),        # numerator acc
                pltpu.VMEM((block, n_heads), jnp.float32),                # denominator acc
            ],
        ),
        compiler_params=pltpu.CompilerParams(
            # Row axis parallel (sharded across the 2 TCs on v7x); column axis
            # is the reduction -> arbitrary and innermost.
            dimension_semantics=("parallel", "arbitrary"),
            # 128x128 f32 tiles (double-buffered) are tiny; 32 MiB leaves ample
            # headroom and is within scoped VMEM on v5e/v6e/v7x.
            vmem_limit_bytes=32 * 1024 * 1024,
        ),
        cost_estimate=cost,
    )(adj, h, h, w, wl, wr_t, b_tiled)
    return out[:n]


def gat_reference(adj, h, w, wl, wr, b, use_activation):
    """Pure-JAX reference mirroring the torch GATLayer.forward."""
    x = h @ w
    el = x @ wl                                        # [N, H]
    er = x @ wr                                        # [N, H]
    logits = el[:, None, :] + er[None, :, :]           # [N, N, H]
    logits = jnp.where(logits > 0.0, logits, 0.2 * logits)
    e = jnp.where((adj != 0.0)[:, :, None], jnp.exp(logits), 0.0)
    den = jnp.maximum(jnp.sum(e, axis=1, keepdims=True), 1e-12)
    attn = e / den
    out = jnp.einsum('ijh,jf->ihf', attn, x) + b[None, None, :]
    if use_activation:
        out = jnp.where(out > 0.0, out, jnp.exp(out) - 1.0)   # ELU
    return out.reshape(h.shape[0], -1)


def xavier_uniform(key, shape):
    fan_in, fan_out = shape
    limit = math.sqrt(6.0 / (fan_in + fan_out))
    return jax.random.uniform(key, shape, jnp.float32, -limit, limit)


if __name__ == "__main__":
    key = jax.random.PRNGKey(0)

    def run_case(n, f_in, f_out, n_heads, density, use_activation, case_key):
        k_adj, k_feat, kw, kl, kr, kb = jax.random.split(case_key, 6)
        adj = (jax.random.uniform(k_adj, (n, n)) > (1.0 - density)).astype(jnp.float32)
        adj = jnp.maximum(adj, jnp.eye(n, dtype=jnp.float32))   # self loops
        h = jax.random.normal(k_feat, (n, f_in), jnp.float32)
        w = xavier_uniform(kw, (f_in, f_out))
        wl = xavier_uniform(kl, (f_out, n_heads))
        wr = xavier_uniform(kr, (f_out, n_heads))
        # The torch module zero-inits b; use a nonzero bias here so the
        # bias-add path in the kernel is actually exercised.
        b = 0.1 * jax.random.normal(kb, (f_out,), jnp.float32)

        out = gat_layer(adj, h, w, wl, wr, b, use_activation=use_activation)
        jax.block_until_ready(out)
        assert out.shape == (n, n_heads * f_out), out.shape
        assert out.dtype == jnp.float32

        ref = gat_reference(adj, h, w, wl, wr, b, use_activation)
        err = float(jnp.max(jnp.abs(out - ref)))
        assert jnp.allclose(out, ref, atol=2e-3, rtol=2e-3), err

    k1, k2 = jax.random.split(key)
    # Multi-head: H * F_out = 128 -> lane-dense output, 2x2 tile grid.
    run_case(n=256, f_in=32, f_out=32, n_heads=4, density=0.1,
             use_activation=True, case_key=k1)
    # Single head, ragged N (exercises node padding), no activation (last layer).
    run_case(n=96, f_in=16, f_out=32, n_heads=1, density=0.2,
             use_activation=False, case_key=k2)

    print("KERNEL_OK")
</pallas_src>

<mosaic_0001>
module attributes {stable_mosaic.version = 11 : i64} {
  func.func @_gat_kernel(%arg0: i32, %arg1: i32, %arg2: memref<128x128xf32, #tpu.memory_space<vmem>>, %arg3: memref<128x32xf32, #tpu.memory_space<vmem>>, %arg4: memref<128x32xf32, #tpu.memory_space<vmem>>, %arg5: memref<32x32xf32, #tpu.memory_space<vmem>>, %arg6: memref<32x4xf32, #tpu.memory_space<vmem>>, %arg7: memref<4x32xf32, #tpu.memory_space<vmem>>, %arg8: memref<1x128xf32, #tpu.memory_space<vmem>>, %arg9: memref<128x128xf32, #tpu.memory_space<vmem>>, %arg10: memref<128x4xf32, #tpu.memory_space<vmem>>, %arg11: memref<128x128xf32, #tpu.memory_space<vmem>>, %arg12: memref<128x4xf32, #tpu.memory_space<vmem>>) attributes {dimension_semantics = [#tpu.dimension_semantics<parallel>, #tpu.dimension_semantics<arbitrary>], iteration_bounds = array<i64: 2, 2>, scalar_prefetch = 0 : i64, scratch_operands = 3 : i64, tpu.core_type = #tpu.core_type<tc>, window_params = [{transform_indices = @transform_0, window_bounds = array<i64: 128, 128>}, {transform_indices = @transform_1, window_bounds = array<i64: 128, 32>}, {transform_indices = @transform_2, window_bounds = array<i64: 128, 32>}, {pipeline_mode = #tpu.pipeline_mode<synchronous>, transform_indices = @transform_3, window_bounds = array<i64: 32, 32>}, {pipeline_mode = #tpu.pipeline_mode<synchronous>, transform_indices = @transform_4, window_bounds = array<i64: 32, 4>}, {pipeline_mode = #tpu.pipeline_mode<synchronous>, transform_indices = @transform_5, window_bounds = array<i64: 4, 32>}, {pipeline_mode = #tpu.pipeline_mode<synchronous>, transform_indices = @transform_6, window_bounds = array<i64: 1, 128>}, {transform_indices = @transform_7, window_bounds = array<i64: 128, 128>}]} {
    %c0_i32 = arith.constant 0 : i32
    %0 = arith.cmpi eq, %arg1, %c0_i32 : i32
    %1 = arith.extui %0 : i1 to i32
    %c0_i32_0 = arith.constant 0 : i32
    %2 = arith.cmpi ne, %1, %c0_i32_0 : i32
    scf.if %2 {
      %c0_41 = arith.constant 0 : index
      %c0_42 = arith.constant 0 : index
      %87 = vector.load %arg3[%c0_41, %c0_42] : memref<128x32xf32, #tpu.memory_space<vmem>>, vector<128x32xf32>
      %c0_43 = arith.constant 0 : index
      %c0_44 = arith.constant 0 : index
      %88 = vector.load %arg5[%c0_43, %c0_44] : memref<32x32xf32, #tpu.memory_space<vmem>>, vector<32x32xf32>
      %cst_45 = arith.constant dense<0.000000e+00> : vector<128x32xf32>
      %89 = tpu.matmul %87, %88, %cst_45 {dimension_numbers = #tpu.dot_dimension_numbers<[1], [0], [0], [1], [0, 0, 1, 1], [], []>} : vector<128x32xf32>, vector<32x32xf32>, vector<128x32xf32> -> vector<128x32xf32>
      %c0_46 = arith.constant 0 : index
      %c0_47 = arith.constant 0 : index
      %90 = vector.load %arg6[%c0_46, %c0_47] : memref<32x4xf32, #tpu.memory_space<vmem>>, vector<32x4xf32>
      %cst_48 = arith.constant dense<0.000000e+00> : vector<128x4xf32>
      %91 = tpu.matmul %89, %90, %cst_48 {dimension_numbers = #tpu.dot_dimension_numbers<[1], [0], [0], [1], [0, 0, 1, 1], [], []>} : vector<128x32xf32>, vector<32x4xf32>, vector<128x4xf32> -> vector<128x4xf32>
      %c0_49 = arith.constant 0 : index
      %c0_50 = arith.constant 0 : index
      %92 = vector.load %arg10[%c0_49, %c0_50] : memref<128x4xf32, #tpu.memory_space<vmem>>, vector<128x4xf32>
      tpu.vector_store %arg10[%c0_49, %c0_50], %91 {strides = array<i32>} : memref<128x4xf32, #tpu.memory_space<vmem>>, vector<128x4xf32>,
      %cst_51 = arith.constant 0.000000e+00 : f32
      %93 = vector.broadcast %cst_51 : f32 to vector<128x128xf32>
      %c0_52 = arith.constant 0 : index
      %c0_53 = arith.constant 0 : index
      %94 = vector.load %arg11[%c0_52, %c0_53] : memref<128x128xf32, #tpu.memory_space<vmem>>, vector<128x128xf32>
      tpu.vector_store %arg11[%c0_52, %c0_53], %93 {strides = array<i32>} : memref<128x128xf32, #tpu.memory_space<vmem>>, vector<128x128xf32>,
      %cst_54 = arith.constant 0.000000e+00 : f32
      %95 = vector.broadcast %cst_54 : f32 to vector<128x4xf32>
      %c0_55 = arith.constant 0 : index
      %c0_56 = arith.constant 0 : index
      %96 = vector.load %arg12[%c0_55, %c0_56] : memref<128x4xf32, #tpu.memory_space<vmem>>, vector<128x4xf32>
      tpu.vector_store %arg12[%c0_55, %c0_56], %95 {strides = array<i32>} : memref<128x4xf32, #tpu.memory_space<vmem>>, vector<128x4xf32>,
    } else {
    }
    %c0 = arith.constant 0 : index
    %c0_1 = arith.constant 0 : index
    %3 = vector.load %arg4[%c0, %c0_1] : memref<128x32xf32, #tpu.memory_space<vmem>>, vector<128x32xf32>
    %c0_2 = arith.constant 0 : index
    %c0_3 = arith.constant 0 : index
    %4 = vector.load %arg5[%c0_2, %c0_3] : memref<32x32xf32, #tpu.memory_space<vmem>>, vector<32x32xf32>
    %cst = arith.constant dense<0.000000e+00> : vector<128x32xf32>
    %5 = tpu.matmul %3, %4, %cst {dimension_numbers = #tpu.dot_dimension_numbers<[1], [0], [0], [1], [0, 0, 1, 1], [], []>} : vector<128x32xf32>, vector<32x32xf32>, vector<128x32xf32> -> vector<128x32xf32>
    %c0_4 = arith.constant 0 : index
    %c0_5 = arith.constant 0 : index
    %6 = vector.load %arg7[%c0_4, %c0_5] : memref<4x32xf32, #tpu.memory_space<vmem>>, vector<4x32xf32>
    %cst_6 = arith.constant dense<0.000000e+00> : vector<4x128xf32>
    %7 = tpu.matmul %6, %5, %cst_6 {dimension_numbers = #tpu.dot_dimension_numbers<[1], [1], [0], [0], [0, 0, 1, 0], [], []>} : vector<4x32xf32>, vector<128x32xf32>, vector<4x128xf32> -> vector<4x128xf32>
    %c0_7 = arith.constant 0 : index
    %c0_8 = arith.constant 0 : index
    %8 = vector.load %arg2[%c0_7, %c0_8] : memref<128x128xf32, #tpu.memory_space<vmem>>, vector<128x128xf32>
    %cst_9 = arith.constant 0.000000e+00 : f32
    %9 = vector.broadcast %cst_9 : f32 to vector<128x128xf32>
    %10 = arith.cmpf one, %8, %9 : vector<128x128xf32>
    %c0_10 = arith.constant 0 : index
    %c0_11 = arith.constant 0 : index
    %11 = vector.load %arg10[%c0_10, %c0_11] : memref<128x4xf32, #tpu.memory_space<vmem>>, vector<128x4xf32>
    %12 = vector.extract_strided_slice %11 {offsets = [0, 0], sizes = [128, 1], strides = [1, 1]} : vector<128x4xf32> to vector<128x1xf32>
    %13 = vector.extract_strided_slice %7 {offsets = [0, 0], sizes = [1, 128], strides = [1, 1]} : vector<4x128xf32> to vector<1x128xf32>
    %14 = vector.broadcast %12 : vector<128x1xf32> to vector<128x128xf32>
    %15 = vector.broadcast %13 : vector<1x128xf32> to vector<128x128xf32>
    %16 = arith.addf %14, %15 : vector<128x128xf32>
    %cst_12 = arith.constant 0.000000e+00 : f32
    %17 = vector.broadcast %cst_12 : f32 to vector<128x128xf32>
    %18 = arith.cmpf ogt, %16, %17 : vector<128x128xf32>
    %cst_13 = arith.constant 2.000000e-01 : f32
    %19 = vector.broadcast %cst_13 : f32 to vector<128x128xf32>
    %20 = arith.mulf %19, %16 : vector<128x128xf32>
    %21 = arith.select %18, %16, %20 : vector<128x128xi1>, vector<128x128xf32>
    %22 = math.exp %21 : vector<128x128xf32>
    %cst_14 = arith.constant 0.000000e+00 : f32
    %23 = vector.broadcast %cst_14 : f32 to vector<128x128xf32>
    %24 = arith.select %10, %22, %23 : vector<128x128xi1>, vector<128x128xf32>
    %cst_15 = arith.constant dense<0.000000e+00> : vector<128x32xf32>
    %25 = tpu.matmul %24, %5, %cst_15 {dimension_numbers = #tpu.dot_dimension_numbers<[1], [0], [0], [1], [0, 0, 1, 1], [], []>} : vector<128x128xf32>, vector<128x32xf32>, vector<128x32xf32> -> vector<128x32xf32>
    %cst_16 = arith.constant dense<0.000000e+00> : vector<128xf32>
    %26 = vector.multi_reduction <add>, %24, %cst_16 [1] : vector<128x128xf32> to vector<128xf32>
    %27 = vector.shape_cast %26 : vector<128xf32> to vector<128x1xf32>
    %28 = vector.extract_strided_slice %11 {offsets = [0, 1], sizes = [128, 1], strides = [1, 1]} : vector<128x4xf32> to vector<128x1xf32>
    %29 = vector.extract_strided_slice %7 {offsets = [1, 0], sizes = [1, 128], strides = [1, 1]} : vector<4x128xf32> to vector<1x128xf32>
    %30 = vector.broadcast %28 : vector<128x1xf32> to vector<128x128xf32>
    %31 = vector.broadcast %29 : vector<1x128xf32> to vector<128x128xf32>
    %32 = arith.addf %30, %31 : vector<128x128xf32>
    %cst_17 = arith.constant 0.000000e+00 : f32
    %33 = vector.broadcast %cst_17 : f32 to vector<128x128xf32>
    %34 = arith.cmpf ogt, %32, %33 : vector<128x128xf32>
    %cst_18 = arith.constant 2.000000e-01 : f32
    %35 = vector.broadcast %cst_18 : f32 to vector<128x128xf32>
    %36 = arith.mulf %35, %32 : vector<128x128xf32>
    %37 = arith.select %34, %32, %36 : vector<128x128xi1>, vector<128x128xf32>
    %38 = math.exp %37 : vector<128x128xf32>
    %cst_19 = arith.constant 0.000000e+00 : f32
    %39 = vector.broadcast %cst_19 : f32 to vector<128x128xf32>
    %40 = arith.select %10, %38, %39 : vector<128x128xi1>, vector<128x128xf32>
    %cst_20 = arith.constant dense<0.000000e+00> : vector<128x32xf32>
    %41 = tpu.matmul %40, %5, %cst_20 {dimension_numbers = #tpu.dot_dimension_numbers<[1], [0], [0], [1], [0, 0, 1, 1], [], []>} : vector<128x128xf32>, vector<128x32xf32>, vector<128x32xf32> -> vector<128x32xf32>
    %cst_21 = arith.constant dense<0.000000e+00> : vector<128xf32>
    %42 = vector.multi_reduction <add>, %40, %cst_21 [1] : vector<128x128xf32> to vector<128xf32>
    %43 = vector.shape_cast %42 : vector<128xf32> to vector<128x1xf32>
    %44 = vector.extract_strided_slice %11 {offsets = [0, 2], sizes = [128, 1], strides = [1, 1]} : vector<128x4xf32> to vector<128x1xf32>
    %45 = vector.extract_strided_slice %7 {offsets = [2, 0], sizes = [1, 128], strides = [1, 1]} : vector<4x128xf32> to vector<1x128xf32>
    %46 = vector.broadcast %44 : vector<128x1xf32> to vector<128x128xf32>
    %47 = vector.broadcast %45 : vector<1x128xf32> to vector<128x128xf32>
    %48 = arith.addf %46, %47 : vector<128x128xf32>
    %cst_22 = arith.constant 0.000000e+00 : f32
    %49 = vector.broadcast %cst_22 : f32 to vector<128x128xf32>
    %50 = arith.cmpf ogt, %48, %49 : vector<128x128xf32>
    %cst_23 = arith.constant 2.000000e-01 : f32
    %51 = vector.broadcast %cst_23 : f32 to vector<128x128xf32>
    %52 = arith.mulf %51, %48 : vector<128x128xf32>
    %53 = arith.select %50, %48, %52 : vector<128x128xi1>, vector<128x128xf32>
    %54 = math.exp %53 : vector<128x128xf32>
    %cst_24 = arith.constant 0.000000e+00 : f32
    %55 = vector.broadcast %cst_24 : f32 to vector<128x128xf32>
    %56 = arith.select %10, %54, %55 : vector<128x128xi1>, vector<128x128xf32>
    %cst_25 = arith.constant dense<0.000000e+00> : vector<128x32xf32>
    %57 = tpu.matmul %56, %5, %cst_25 {dimension_numbers = #tpu.dot_dimension_numbers<[1], [0], [0], [1], [0, 0, 1, 1], [], []>} : vector<128x128xf32>, vector<128x32xf32>, vector<128x32xf32> -> vector<128x32xf32>
    %cst_26 = arith.constant dense<0.000000e+00> : vector<128xf32>
    %58 = vector.multi_reduction <add>, %56, %cst_26 [1] : vector<128x128xf32> to vector<128xf32>
    %59 = vector.shape_cast %58 : vector<128xf32> to vector<128x1xf32>
    %60 = vector.extract_strided_slice %11 {offsets = [0, 3], sizes = [128, 1], strides = [1, 1]} : vector<128x4xf32> to vector<128x1xf32>
    %61 = vector.extract_strided_slice %7 {offsets = [3, 0], sizes = [1, 128], strides = [1, 1]} : vector<4x128xf32> to vector<1x128xf32>
    %62 = vector.broadcast %60 : vector<128x1xf32> to vector<128x128xf32>
    %63 = vector.broadcast %61 : vector<1x128xf32> to vector<128x128xf32>
    %64 = arith.addf %62, %63 : vector<128x128xf32>
    %cst_27 = arith.constant 0.000000e+00 : f32
    %65 = vector.broadcast %cst_27 : f32 to vector<128x128xf32>
    %66 = arith.cmpf ogt, %64, %65 : vector<128x128xf32>
    %cst_28 = arith.constant 2.000000e-01 : f32
    %67 = vector.broadcast %cst_28 : f32 to vector<128x128xf32>
    %68 = arith.mulf %67, %64 : vector<128x128xf32>
    %69 = arith.select %66, %64, %68 : vector<128x128xi1>, vector<128x128xf32>
    %70 = math.exp %69 : vector<128x128xf32>
    %cst_29 = arith.constant 0.000000e+00 : f32
    %71 = vector.broadcast %cst_29 : f32 to vector<128x128xf32>
    %72 = arith.select %10, %70, %71 : vector<128x128xi1>, vector<128x128xf32>
    %cst_30 = arith.constant dense<0.000000e+00> : vector<128x32xf32>
    %73 = tpu.matmul %72, %5, %cst_30 {dimension_numbers = #tpu.dot_dimension_numbers<[1], [0], [0], [1], [0, 0, 1, 1], [], []>} : vector<128x128xf32>, vector<128x32xf32>, vector<128x32xf32> -> vector<128x32xf32>
    %cst_31 = arith.constant dense<0.000000e+00> : vector<128xf32>
    %74 = vector.multi_reduction <add>, %72, %cst_31 [1] : vector<128x128xf32> to vector<128xf32>
    %75 = vector.shape_cast %74 : vector<128xf32> to vector<128x1xf32>
    %c0_32 = arith.constant 0 : index
    %c0_33 = arith.constant 0 : index
    %76 = vector.load %arg11[%c0_32, %c0_33] : memref<128x128xf32, #tpu.memory_space<vmem>>, vector<128x128xf32>
    %77 = tpu.concatenate %25, %41, %57, %73 in 1 : vector<128x32xf32>, vector<128x32xf32>, vector<128x32xf32>, vector<128x32xf32> -> vector<128x128xf32>
    %78 = arith.addf %76, %77 : vector<128x128xf32>
    %c0_34 = arith.constant 0 : index
    %c0_35 = arith.constant 0 : index
    %79 = vector.load %arg11[%c0_34, %c0_35] : memref<128x128xf32, #tpu.memory_space<vmem>>, vector<128x128xf32>
    tpu.vector_store %arg11[%c0_34, %c0_35], %78 {strides = array<i32>} : memref<128x128xf32, #tpu.memory_space<vmem>>, vector<128x128xf32>,
    %c0_36 = arith.constant 0 : index
    %c0_37 = arith.constant 0 : index
    %80 = vector.load %arg12[%c0_36, %c0_37] : memref<128x4xf32, #tpu.memory_space<vmem>>, vector<128x4xf32>
    %81 = tpu.concatenate %27, %43, %59, %75 in 1 : vector<128x1xf32>, vector<128x1xf32>, vector<128x1xf32>, vector<128x1xf32> -> vector<128x4xf32>
    %82 = arith.addf %80, %81 : vector<128x4xf32>
    %c0_38 = arith.constant 0 : index
    %c0_39 = arith.constant 0 : index
    %83 = vector.load %arg12[%c0_38, %c0_39] : memref<128x4xf32, #tpu.memory_space<vmem>>, vector<128x4xf32>
    tpu.vector_store %arg12[%c0_38, %c0_39], %82 {strides = array<i32>} : memref<128x4xf32, #tpu.memory_space<vmem>>, vector<128x4xf32>,
    %c1_i32 = arith.constant 1 : i32
    %84 = arith.cmpi eq, %arg1, %c1_i32 : i32
    %85 = arith.extui %84 : i1 to i32
    %c0_i32_40 = arith.constant 0 : i32
    %86 = arith.cmpi ne, %85, %c0_i32_40 : i32
    scf.if %86 {
      %c0_41 = arith.constant 0 : index
      %c0_42 = arith.constant 0 : index
      %87 = vector.load %arg11[%c0_41, %c0_42] : memref<128x128xf32, #tpu.memory_space<vmem>>, vector<128x128xf32>
      %c0_43 = arith.constant 0 : index
      %c0_44 = arith.constant 0 : index
      %88 = vector.load %arg12[%c0_43, %c0_44] : memref<128x4xf32, #tpu.memory_space<vmem>>, vector<128x4xf32>
      %cst_45 = arith.constant 9.99999996E-13 : f32
      %89 = vector.broadcast %cst_45 : f32 to vector<128x4xf32>
      %90 = arith.maximumf %88, %89 : vector<128x4xf32>
      %91 = vector.extract_strided_slice %87 {offsets = [0, 0], sizes = [128, 32], strides = [1, 1]} : vector<128x128xf32> to vector<128x32xf32>
      %92 = vector.extract_strided_slice %90 {offsets = [0, 0], sizes = [128, 1], strides = [1, 1]} : vector<128x4xf32> to vector<128x1xf32>
      %93 = vector.broadcast %92 : vector<128x1xf32> to vector<128x32xf32>
      %94 = arith.divf %91, %93 : vector<128x32xf32>
      %95 = vector.extract_strided_slice %87 {offsets = [0, 32], sizes = [128, 32], strides = [1, 1]} : vector<128x128xf32> to vector<128x32xf32>
      %96 = vector.extract_strided_slice %90 {offsets = [0, 1], sizes = [128, 1], strides = [1, 1]} : vector<128x4xf32> to vector<128x1xf32>
      %97 = vector.broadcast %96 : vector<128x1xf32> to vector<128x32xf32>
      %98 = arith.divf %95, %97 : vector<128x32xf32>
      %99 = vector.extract_strided_slice %87 {offsets = [0, 64], sizes = [128, 32], strides = [1, 1]} : vector<128x128xf32> to vector<128x32xf32>
      %100 = vector.extract_strided_slice %90 {offsets = [0, 2], sizes = [128, 1], strides = [1, 1]} : vector<128x4xf32> to vector<128x1xf32>
      %101 = vector.broadcast %100 : vector<128x1xf32> to vector<128x32xf32>
      %102 = arith.divf %99, %101 : vector<128x32xf32>
      %103 = vector.extract_strided_slice %87 {offsets = [0, 96], sizes = [128, 32], strides = [1, 1]} : vector<128x128xf32> to vector<128x32xf32>
      %104 = vector.extract_strided_slice %90 {offsets = [0, 3], sizes = [128, 1], strides = [1, 1]} : vector<128x4xf32> to vector<128x1xf32>
      %105 = vector.broadcast %104 : vector<128x1xf32> to vector<128x32xf32>
      %106 = arith.divf %103, %105 : vector<128x32xf32>
      %107 = tpu.concatenate %94, %98, %102, %106 in 1 : vector<128x32xf32>, vector<128x32xf32>, vector<128x32xf32>, vector<128x32xf32> -> vector<128x128xf32>
      %c0_46 = arith.constant 0 : index
      %c0_47 = arith.constant 0 : index
      %108 = vector.load %arg8[%c0_46, %c0_47] : memref<1x128xf32, #tpu.memory_space<vmem>>, vector<1x128xf32>
      %109 = vector.broadcast %108 : vector<1x128xf32> to vector<128x128xf32>
      %110 = arith.addf %107, %109 : vector<128x128xf32>
      %cst_48 = arith.constant 0.000000e+00 : f32
      %111 = vector.broadcast %cst_48 : f32 to vector<128x128xf32>
      %112 = arith.cmpf ogt, %110, %111 : vector<128x128xf32>
      %113 = math.exp %110 : vector<128x128xf32>
      %cst_49 = arith.constant 1.000000e+00 : f32
      %114 = vector.broadcast %cst_49 : f32 to vector<128x128xf32>
      %115 = arith.subf %113, %114 : vector<128x128xf32>
      %116 = arith.select %112, %110, %115 : vector<128x128xi1>, vector<128x128xf32>
      %c0_50 = arith.constant 0 : index
      %c0_51 = arith.constant 0 : index
      %117 = vector.load %arg9[%c0_50, %c0_51] : memref<128x128xf32, #tpu.memory_space<vmem>>, vector<128x128xf32>
      tpu.vector_store %arg9[%c0_50, %c0_51], %116 {strides = array<i32>} : memref<128x128xf32, #tpu.memory_space<vmem>>, vector<128x128xf32>,
    } else {
    }
    return
  }
  func.func @transform_0(%arg0: i32, %arg1: i32) -> (i32, i32) {
    %c0_i32 = arith.constant 0 : i32
    return %arg0, %arg1 : i32, i32
  }
  func.func @transform_1(%arg0: i32, %arg1: i32) -> (i32, i32) {
    %c0_i32 = arith.constant 0 : i32
    %c0_i32_0 = arith.constant 0 : i32
    return %arg0, %c0_i32 : i32, i32
  }
  func.func @transform_2(%arg0: i32, %arg1: i32) -> (i32, i32) {
    %c0_i32 = arith.constant 0 : i32
    %c0_i32_0 = arith.constant 0 : i32
    return %arg1, %c0_i32 : i32, i32
  }
  func.func @transform_3(%arg0: i32, %arg1: i32) -> (i32, i32) {
    %c0_i32 = arith.constant 0 : i32
    %c0_i32_0 = arith.constant 0 : i32
    %c0_i32_1 = arith.constant 0 : i32
    return %c0_i32, %c0_i32_0 : i32, i32
  }
  func.func @transform_4(%arg0: i32, %arg1: i32) -> (i32, i32) {
    %c0_i32 = arith.constant 0 : i32
    %c0_i32_0 = arith.constant 0 : i32
    %c0_i32_1 = arith.constant 0 : i32
    return %c0_i32, %c0_i32_0 : i32, i32
  }
  func.func @transform_5(%arg0: i32, %arg1: i32) -> (i32, i32) {
    %c0_i32 = arith.constant 0 : i32
    %c0_i32_0 = arith.constant 0 : i32
    %c0_i32_1 = arith.constant 0 : i32
    return %c0_i32, %c0_i32_0 : i32, i32
  }
  func.func @transform_6(%arg0: i32, %arg1: i32) -> (i32, i32) {
    %c0_i32 = arith.constant 0 : i32
    %c0_i32_0 = arith.constant 0 : i32
    %c0_i32_1 = arith.constant 0 : i32
    return %c0_i32, %c0_i32_0 : i32, i32
  }
  func.func @transform_7(%arg0: i32, %arg1: i32) -> (i32, i32) {
    %c0_i32 = arith.constant 0 : i32
    %c0_i32_0 = arith.constant 0 : i32
    return %arg0, %c0_i32 : i32, i32
  }
}

</mosaic_0001>

<llo_original>
// kernel: tpu_custom_call.1
$region0: #{tpu_custom_call.1}
  #allocation0 [shape = 'u32[]', space=smem, size = 0x4, offset = 0x4, fixed_abs, tag = 'smem constant byte address 0x4 - core index']
  #allocation1 [shape = 'u32[144,128]{1,0:T(1,128)}', space=vmem, size = 0x12000, scoped, tag = 'internal scratch']
  #allocation2 [shape = 'f32[128,4]{1,0:T(8,128)}', space=vmem, size = 0x10000, scoped, tag = 'scratch operand']
  #allocation3 [shape = 'f32[128,128]{1,0:T(8,128)}', space=vmem, size = 0x10000, scoped, tag = 'scratch operand']
  #allocation4 [shape = 'f32[128,4]{1,0:T(8,128)}', space=vmem, size = 0x10000, scoped, tag = 'scratch operand']
  %s0 = inlined_call_operand.vmem [shape: f32[256,256], index: 0, kind: input, shape index: {}]
  %s1 = inlined_call_operand.vmem [shape: f32[256,32], index: 1, kind: input, shape index: {}]
  %s2 = inlined_call_operand.vmem [shape: f32[256,32], index: 2, kind: input, shape index: {}]
  %s3 = inlined_call_operand.vmem [shape: f32[32,32], index: 3, kind: input, shape index: {}]
  %s4 = inlined_call_operand.vmem [shape: f32[32,4], index: 4, kind: input, shape index: {}]
  %s5 = inlined_call_operand.vmem [shape: f32[4,32], index: 5, kind: input, shape index: {}]
  %s6 = inlined_call_operand.vmem [shape: f32[1,128], index: 6, kind: input, shape index: {}]
  %s7 = inlined_call_operand.hbm [shape: f32[256,128], index: 7, kind: output, shape index: {}]
  %s8 = sld [smem:[#allocation0]]
  $region107: #{tpu_custom_call.1} parent=0
    _
  %s10 = ssub.s32 1, %s8
  %s11 = scalar_select 0, %s10, %s8
  $region1: #{tpu_custom_call.1} parent=0
    #allocation5 [shape = 'u8[131072]{0}', space=vmem, size = 0x20000, scoped, tag = 'input window, operand 0']
    #allocation6 [shape = 'u8[131072]{0}', space=vmem, size = 0x20000, scoped, tag = 'output window, operand 0']
    #allocation7 [shape = 's32[2]{0}', space=sflag, size = 0x8, scoped, tag = 'scoped memory for tpu_custom_call.1']
    %12 = vsyncpa [#allocation7], 0
    %s13 = scalar_lea.sflag [#allocation7], 1
    %14 = vsyncpa %s13, 0
    loop: start=0, step=1, limit=6
    $region2: #{tpu_custom_call.1} parent=1 // loop_pre_header
      _
    $region3: #{tpu_custom_call.1} parent=1 // loop_header
      %s16 = sphi 0, %s20
      %p17 = scmp.ge.s32.totalorder %s16, 6
      %s23 = sphi 0, %s35
      %s24 = sphi 0, %s31
      %s25 = sphi 0, %s23
      %s26 = sphi 0, %s24
      %s27 = sphi 0, %s25
      %s28 = sphi 0, %s26
      %s40 = sphi 0, %s42
      %s43 = sphi 0, %s40
      %s44 = sphi 0, %s43
      %s60 = sphi 0, %s44
      %s66 = sphi 0, %s68
      %s69 = sphi 0, %s66
      %s70 = sphi 0, %s69
      %s86 = sphi 0, %s70
      %s92 = sphi 0, %s94
      %s95 = sphi 0, %s92
      %s96 = sphi 0, %s95
      %s112 = sphi 0, %s96
      %s116 = sphi 0, %s116
      %s118 = sphi 0, %s116
      %s119 = sphi 0, %s118
      %s133 = sphi 0, %s119
      %s137 = sphi 0, %s137
      %s139 = sphi 0, %s137
      %s140 = sphi 0, %s139
      %s154 = sphi 0, %s140
      %s158 = sphi 0, %s158
      %s160 = sphi 0, %s158
      %s161 = sphi 0, %s160
      %s175 = sphi 0, %s161
      %s179 = sphi 0, %s179
      %s181 = sphi 0, %s179
      %s182 = sphi 0, %s181
      %s196 = sphi 0, %s182
      %s202 = sphi 0, %s204
      %s205 = sphi 0, %s202
      %s206 = sphi 0, %s205
      %s222 = sphi 0, %s206
    $region4: #{tpu_custom_call.1} parent=1 // loop_header_branch
      %19 = sbr.rel (%p17) target = $region8
    $region5: #{tpu_custom_call.1} parent=1 // loop_body
      %s21 = ssub.s32 %s16, 1
      %s22 = ssub.s32 %s16, 2
      %s29 = sadd.s32 1, %s24
      %p30 = scmp.ge.s32.totalorder %s29, 2
      %s31 = scalar_select %p30, 0, %s29
      %s32 = sadd.s32 1, %s23
      %s33 = scalar_select %p30, %s32, %s23
      %p34 = scmp.ge.s32.totalorder %s33, 2
      %s35 = scalar_select %p34, 0, %s33
      %s36 = ssub.s32 %s23, %s35
      %s37 = ssub.s32 %s24, %s31
      %s38 = sor.u32 %s36, %s37
      %p39 = scmp.eq.s32.totalorder %s38, 0
      %s41 = sadd.s32 %s40, 1
      %s42 = scalar_select %p39, %s40, %s41
      %p45 = pneg %p39
      %p46 = scmp.eq.s32.totalorder %s16, 3
      %p47 = por %p45, %p46
      %p48 = scmp.ne.s32.totalorder %s40, %s43
      %p49 = scmp.eq.s32.totalorder %s16, 0
      %p50 = por %p48, %p49
      %p51 = scmp.ne.s32.totalorder %s40, %s43
      %p52 = scmp.eq.s32.totalorder %s21, 3
      %p53 = por %p51, %p52
      %p54 = scmp.ne.s32.totalorder %s43, %s44
      %p55 = scmp.eq.s32.totalorder %s21, 0
      %p56 = por %p54, %p55
      %p57 = scmp.ne.s32.totalorder %s43, %s44
      %p58 = scmp.eq.s32.totalorder %s22, 3
      %p59 = por %p57, %p58
      %p61 = scmp.ne.s32.totalorder %s44, %s60
      %p62 = scmp.eq.s32.totalorder %s22, 0
      %p63 = por %p61, %p62
      %s64 = ssub.s32 %s23, %s35
      %p65 = scmp.eq.s32.totalorder %s64, 0
      %s67 = sadd.s32 %s66, 1
      %s68 = scalar_select %p65, %s66, %s67
      %p71 = pneg %p65
      %p72 = scmp.eq.s32.totalorder %s16, 3
      %p73 = por %p71, %p72
      %p74 = scmp.ne.s32.totalorder %s66, %s69
      %p75 = scmp.eq.s32.totalorder %s16, 0
      %p76 = por %p74, %p75
      %p77 = scmp.ne.s32.totalorder %s66, %s69
      %p78 = scmp.eq.s32.totalorder %s21, 3
      %p79 = por %p77, %p78
      %p80 = scmp.ne.s32.totalorder %s69, %s70
      %p81 = scmp.eq.s32.totalorder %s21, 0
      %p82 = por %p80, %p81
      %p83 = scmp.ne.s32.totalorder %s69, %s70
      %p84 = scmp.eq.s32.totalorder %s22, 3
      %p85 = por %p83, %p84
      %p87 = scmp.ne.s32.totalorder %s70, %s86
      %p88 = scmp.eq.s32.totalorder %s22, 0
      %p89 = por %p87, %p88
      %s90 = ssub.s32 %s24, %s31
      %p91 = scmp.eq.s32.totalorder %s90, 0
      %s93 = sadd.s32 %s92, 1
      %s94 = scalar_select %p91, %s92, %s93
      %p97 = pneg %p91
      %p98 = scmp.eq.s32.totalorder %s16, 3
      %p99 = por %p97, %p98
      %p100 = scmp.ne.s32.totalorder %s92, %s95
      %p101 = scmp.eq.s32.totalorder %s16, 0
      %p102 = por %p100, %p101
      %p103 = scmp.ne.s32.totalorder %s92, %s95
      %p104 = scmp.eq.s32.totalorder %s21, 3
      %p105 = por %p103, %p104
      %p106 = scmp.ne.s32.totalorder %s95, %s96
      %p107 = scmp.eq.s32.totalorder %s21, 0
      %p108 = por %p106, %p107
      %p109 = scmp.ne.s32.totalorder %s95, %s96
      %p110 = scmp.eq.s32.totalorder %s22, 3
      %p111 = por %p109, %p110
      %p113 = scmp.ne.s32.totalorder %s96, %s112
      %p114 = scmp.eq.s32.totalorder %s22, 0
      %p115 = por %p113, %p114
      %s117 = sadd.s32 %s116, 1
      %p120 = scmp.eq.s32.totalorder %s16, 3
      %p121 = scmp.ne.s32.totalorder %s116, %s118
      %p122 = scmp.eq.s32.totalorder %s16, 0
      %p123 = por %p121, %p122
      %p124 = scmp.ne.s32.totalorder %s116, %s118
      %p125 = scmp.eq.s32.totalorder %s21, 3
      %p126 = por %p124, %p125
      %p127 = scmp.ne.s32.totalorder %s118, %s119
      %p128 = scmp.eq.s32.totalorder %s21, 0
      %p129 = por %p127, %p128
      %p130 = scmp.ne.s32.totalorder %s118, %s119
      %p131 = scmp.eq.s32.totalorder %s22, 3
      %p132 = por %p130, %p131
      %p134 = scmp.ne.s32.totalorder %s119, %s133
      %p135 = scmp.eq.s32.totalorder %s22, 0
      %p136 = por %p134, %p135
      %s138 = sadd.s32 %s137, 1
      %p141 = scmp.eq.s32.totalorder %s16, 3
      %p142 = scmp.ne.s32.totalorder %s137, %s139
      %p143 = scmp.eq.s32.totalorder %s16, 0
      %p144 = por %p142, %p143
      %p145 = scmp.ne.s32.totalorder %s137, %s139
      %p146 = scmp.eq.s32.totalorder %s21, 3
      %p147 = por %p145, %p146
      %p148 = scmp.ne.s32.totalorder %s139, %s140
      %p149 = scmp.eq.s32.totalorder %s21, 0
      %p150 = por %p148, %p149
      %p151 = scmp.ne.s32.totalorder %s139, %s140
      %p152 = scmp.eq.s32.totalorder %s22, 3
      %p153 = por %p151, %p152
      %p155 = scmp.ne.s32.totalorder %s140, %s154
      %p156 = scmp.eq.s32.totalorder %s22, 0
      %p157 = por %p155, %p156
      %s159 = sadd.s32 %s158, 1
      %p162 = scmp.eq.s32.totalorder %s16, 3
      %p163 = scmp.ne.s32.totalorder %s158, %s160
      %p164 = scmp.eq.s32.totalorder %s16, 0
      %p165 = por %p163, %p164
      %p166 = scmp.ne.s32.totalorder %s158, %s160
      %p167 = scmp.eq.s32.totalorder %s21, 3
      %p168 = por %p166, %p167
      %p169 = scmp.ne.s32.totalorder %s160, %s161
      %p170 = scmp.eq.s32.totalorder %s21, 0
      %p171 = por %p169, %p170
      %p172 = scmp.ne.s32.totalorder %s160, %s161
      %p173 = scmp.eq.s32.totalorder %s22, 3
      %p174 = por %p172, %p173
      %p176 = scmp.ne.s32.totalorder %s161, %s175
      %p177 = scmp.eq.s32.totalorder %s22, 0
      %p178 = por %p176, %p177
      %s180 = sadd.s32 %s179, 1
      %p183 = scmp.eq.s32.totalorder %s16, 3
      %p184 = scmp.ne.s32.totalorder %s179, %s181
      %p185 = scmp.eq.s32.totalorder %s16, 0
      %p186 = por %p184, %p185
      %p187 = scmp.ne.s32.totalorder %s179, %s181
      %p188 = scmp.eq.s32.totalorder %s21, 3
      %p189 = por %p187, %p188
      %p190 = scmp.ne.s32.totalorder %s181, %s182
      %p191 = scmp.eq.s32.totalorder %s21, 0
      %p192 = por %p190, %p191
      %p193 = scmp.ne.s32.totalorder %s181, %s182
      %p194 = scmp.eq.s32.totalorder %s22, 3
      %p195 = por %p193, %p194
      %p197 = scmp.ne.s32.totalorder %s182, %s196
      %p198 = scmp.eq.s32.totalorder %s22, 0
      %p199 = por %p197, %p198
      %s200 = ssub.s32 %s23, %s35
      %p201 = scmp.eq.s32.totalorder %s200, 0
      %s203 = sadd.s32 %s202, 1
      %s204 = scalar_select %p201, %s202, %s203
      %p207 = pneg %p201
      %p208 = scmp.eq.s32.totalorder %s16, 3
      %p209 = por %p207, %p208
      %p210 = scmp.ne.s32.totalorder %s202, %s205
      %p211 = scmp.eq.s32.totalorder %s16, 0
      %p212 = por %p210, %p211
      %p213 = scmp.ne.s32.totalorder %s202, %s205
      %p214 = scmp.eq.s32.totalorder %s21, 3
      %p215 = por %p213, %p214
      %p216 = scmp.ne.s32.totalorder %s205, %s206
      %p217 = scmp.eq.s32.totalorder %s21, 0
      %p218 = por %p216, %p217
      %p219 = scmp.ne.s32.totalorder %s205, %s206
      %p220 = scmp.eq.s32.totalorder %s22, 3
      %p221 = por %p219, %p220
      %p223 = scmp.ne.s32.totalorder %s206, %s222
      %p224 = scmp.eq.s32.totalorder %s22, 0
      %p225 = por %p223, %p224
      %p226 = scmp.le.s32.totalorder 1, %s16
      %p227 = scmp.lt.s32.totalorder %s16, 5
      %p228 = pnand %p226, %p227
      %p229 = pneg %p228
      // Predicated region
      $region9: #{tpu_custom_call.1} parent=5 // pred_check
        _
      $region10: #{tpu_custom_call.1} parent=5 // pred_check_branch
        %231 = sbr.rel (%p228) target = $region12
      $region11: #{tpu_custom_call.1} parent=5 // pred_region
        %s232 = ssub.s32 %s16, 1
        // Predicated region
        $region13: #{tpu_custom_call.1} parent=11 // pred_check
          %p233 = pneg %p129
        $region14: #{tpu_custom_call.1} parent=11 // pred_check_branch
          %235 = sbr.rel (%p233) target = $region16
        $region15: #{tpu_custom_call.1} parent=11 // pred_region
          _
        $region16: #{tpu_custom_call.1} parent=11 // pred_fallthru
          _
        // Predicated region
        $region17: #{tpu_custom_call.1} parent=11 // pred_check
          %p236 = pneg %p150
        $region18: #{tpu_custom_call.1} parent=11 // pred_check_branch
          %238 = sbr.rel (%p236) target = $region20
        $region19: #{tpu_custom_call.1} parent=11 // pred_region
          _
        $region20: #{tpu_custom_call.1} parent=11 // pred_fallthru
          _
        // Predicated region
        $region21: #{tpu_custom_call.1} parent=11 // pred_check
          %p239 = pneg %p171
        $region22: #{tpu_custom_call.1} parent=11 // pred_check_branch
          %241 = sbr.rel (%p239) target = $region24
        $region23: #{tpu_custom_call.1} parent=11 // pred_region
          _
        $region24: #{tpu_custom_call.1} parent=11 // pred_fallthru
          _
        // Predicated region
        $region25: #{tpu_custom_call.1} parent=11 // pred_check
          %p242 = pneg %p192
        $region26: #{tpu_custom_call.1} parent=11 // pred_check_branch
          %244 = sbr.rel (%p242) target = $region28
        $region27: #{tpu_custom_call.1} parent=11 // pred_region
          _
        $region28: #{tpu_custom_call.1} parent=11 // pred_fallthru
          _
      $region12: #{tpu_custom_call.1} parent=5 // pred_fallthru
        _
      %p245 = scmp.lt.s32.totalorder %s16, 4
      // Predicated region
      $region29: #{tpu_custom_call.1} parent=5 // pred_check
        %p246 = pneg %p245
      $region30: #{tpu_custom_call.1} parent=5 // pred_check_branch
        %248 = sbr.rel (%p246) target = $region32
      $region31: #{tpu_custom_call.1} parent=5 // pred_region
        // Predicated region
        $region33: #{tpu_custom_call.1} parent=31 // pred_check
          %p249 = pneg %p50
        $region34: #{tpu_custom_call.1} parent=31 // pred_check_branch
          %251 = sbr.rel (%p249) target = $region36
        $region35: #{tpu_custom_call.1} parent=31 // pred_region
          %s252 = sand.u32 %s40, 1
          %s253 = sand.u32 %s40, 1
          %s254 = smul.addr %s253, 128
          %s255 = scalar_lea.vmem [#allocation5], %s254
          %s256 = smul.u32 16, %s23
          %s257 = smul.addr %s256, 2
          %s258 = sadd.s32 %s24, %s257
          %s259 = smul.addr %s258, 8
          %s260 = scalar_lea.vmem %s0, %s259
          // Predicated region
          $region37: #{tpu_custom_call.1} parent=35 // pred_check
            _
          $region38: #{tpu_custom_call.1} parent=35 // pred_check_branch
            %262 = sbr.rel (0) target = $region40
          $region39: #{tpu_custom_call.1} parent=35 // pred_region
            // Predicated region
            $region41: #{tpu_custom_call.1} parent=39 // pred_check
              _
            $region42: #{tpu_custom_call.1} parent=39 // pred_check_branch
              %264 = sbr.rel (0) target = $region44
            $region43: #{tpu_custom_call.1} parent=39 // pred_region
              // Predicated region
              $region56: #{tpu_custom_call.1} parent=43 // pred_check
                _
              $region57: #{tpu_custom_call.1} parent=43 // pred_check_branch
                %310 = sbr.rel (0) target = $region59
              $region58: #{tpu_custom_call.1} parent=43 // pred_region
                loop: start=0, step=1, limit=1
                $region60: #{tpu_custom_call.1} parent=58 // loop_pre_header
                  _
                $region61: #{tpu_custom_call.1} parent=58 // loop_header
                  %s312 = sphi 0, %s316
                  %p313 = scmp.ge.s32.totalorder %s312, 1
                  %s317 = sphi %s260, %s260
                  %s318 = sphi %s255, %s255
                $region62: #{tpu_custom_call.1} parent=58 // loop_header_branch
                  %315 = sbr.rel (%p313) target = $region66
                $region63: #{tpu_custom_call.1} parent=58 // loop_body
                  %v319 = vld [vmem:[%s317] sm:$0xff]
                  %320 = vst [vmem:[%s318] sm:$0xff] %v319
                  %v321 = vld [vmem:[%s317 + $0x10] sm:$0xff]
                  %322 = vst [vmem:[%s318 + $0x8] sm:$0xff] %v321
                  %v323 = vld [vmem:[%s317 + $0x20] sm:$0xff]
                  %324 = vst [vmem:[%s318 + $0x10] sm:$0xff] %v323
                  %v325 = vld [vmem:[%s317 + $0x30] sm:$0xff]
                  %326 = vst [vmem:[%s318 + $0x18] sm:$0xff] %v325
                  %v327 = vld [vmem:[%s317 + $0x40] sm:$0xff]
                  %328 = vst [vmem:[%s318 + $0x20] sm:$0xff] %v327
                  %v329 = vld [vmem:[%s317 + $0x50] sm:$0xff]
                  %330 = vst [vmem:[%s318 + $0x28] sm:$0xff] %v329
                  %v331 = vld [vmem:[%s317 + $0x60] sm:$0xff]
                  %332 = vst [vmem:[%s318 + $0x30] sm:$0xff] %v331
                  %v333 = vld [vmem:[%s317 + $0x70] sm:$0xff]
                  %334 = vst [vmem:[%s318 + $0x38] sm:$0xff] %v333
                  %v335 = vld [vmem:[%s317 + $0x80] sm:$0xff]
                  %336 = vst [vmem:[%s318 + $0x40] sm:$0xff] %v335
                  %v337 = vld [vmem:[%s317 + $0x90] sm:$0xff]
                  %338 = vst [vmem:[%s318 + $0x48] sm:$0xff] %v337
                  %v339 = vld [vmem:[%s317 + $0xa0] sm:$0xff]
                  %340 = vst [vmem:[%s318 + $0x50] sm:$0xff] %v339
                  %v341 = vld [vmem:[%s317 + $0xb0] sm:$0xff]
                  %342 = vst [vmem:[%s318 + $0x58] sm:$0xff] %v341
                  %v343 = vld [vmem:[%s317 + $0xc0] sm:$0xff]
                  %344 = vst [vmem:[%s318 + $0x60] sm:$0xff] %v343
                  %v345 = vld [vmem:[%s317 + $0xd0] sm:$0xff]
                  %346 = vst [vmem:[%s318 + $0x68] sm:$0xff] %v345
                  %v347 = vld [vmem:[%s317 + $0xe0] sm:$0xff]
                  %348 = vst [vmem:[%s318 + $0x70] sm:$0xff] %v347
                  %v349 = vld [vmem:[%s317 + $0xf0] sm:$0xff]
                  %350 = vst [vmem:[%s318 + $0x78] sm:$0xff] %v349
                $region64: #{tpu_custom_call.1} parent=58 // loop_footer
                  %s316 = sadd.s32 1, %s312
                $region65: #{tpu_custom_call.1} parent=58 // loop_footer_branch
                  %311 = sbr.rel target = $region61
                $region66: #{tpu_custom_call.1} parent=58 // loop_exit
                  _
              $region59: #{tpu_custom_call.1} parent=43 // pred_fallthru
                _
              // Predicated region
              $region67: #{tpu_custom_call.1} parent=43 // pred_check
                _
              $region68: #{tpu_custom_call.1} parent=43 // pred_check_branch
                %352 = sbr.rel target = $region70
              $region69: #{tpu_custom_call.1} parent=43 // pred_region
                _
              $region70: #{tpu_custom_call.1} parent=43 // pred_fallthru
                _
            $region44: #{tpu_custom_call.1} parent=39 // pred_fallthru
              _
            // Predicated region
            $region45: #{tpu_custom_call.1} parent=39 // pred_check
              _
            $region46: #{tpu_custom_call.1} parent=39 // pred_check_branch
              %266 = sbr.rel target = $region48
            $region47: #{tpu_custom_call.1} parent=39 // pred_region
              %s268 = ssub.s32 256, 1
              loop: start=0, step=1, limit=1
              $region49: #{tpu_custom_call.1} parent=47 // loop_pre_header
                _
              $region50: #{tpu_custom_call.1} parent=47 // loop_header
                %s270 = sphi 0, %s274
                %p271 = scmp.ge.s32.totalorder %s270, 1
                %s275 = sphi %s260, %s260
                %s276 = sphi %s255, %s255
              $region51: #{tpu_custom_call.1} parent=47 // loop_header_branch
                %273 = sbr.rel (%p271) target = $region55
              $region52: #{tpu_custom_call.1} parent=47 // loop_body
                %v277 = vld [vmem:[%s275] sm:%s268]
                %278 = vst [vmem:[%s276] sm:%s268] %v277
                %v279 = vld [vmem:[%s275 + $0x10] sm:%s268]
                %280 = vst [vmem:[%s276 + $0x8] sm:%s268] %v279
                %v281 = vld [vmem:[%s275 + $0x20] sm:%s268]
                %282 = vst [vmem:[%s276 + $0x10] sm:%s268] %v281
                %v283 = vld [vmem:[%s275 + $0x30] sm:%s268]
                %284 = vst [vmem:[%s276 + $0x18] sm:%s268] %v283
                %v285 = vld [vmem:[%s275 + $0x40] sm:%s268]
                %286 = vst [vmem:[%s276 + $0x20] sm:%s268] %v285
                %v287 = vld [vmem:[%s275 + $0x50] sm:%s268]
                %288 = vst [vmem:[%s276 + $0x28] sm:%s268] %v287
                %v289 = vld [vmem:[%s275 + $0x60] sm:%s268]
                %290 = vst [vmem:[%s276 + $0x30] sm:%s268] %v289
                %v291 = vld [vmem:[%s275 + $0x70] sm:%s268]
                %292 = vst [vmem:[%s276 + $0x38] sm:%s268] %v291
                %v293 = vld [vmem:[%s275 + $0x80] sm:%s268]
                %294 = vst [vmem:[%s276 + $0x40] sm:%s268] %v293
                %v295 = vld [vmem:[%s275 + $0x90] sm:%s268]
                %296 = vst [vmem:[%s276 + $0x48] sm:%s268] %v295
                %v297 = vld [vmem:[%s275 + $0xa0] sm:%s268]
                %298 = vst [vmem:[%s276 + $0x50] sm:%s268] %v297
                %v299 = vld [vmem:[%s275 + $0xb0] sm:%s268]
                %300 = vst [vmem:[%s276 + $0x58] sm:%s268] %v299
                %v301 = vld [vmem:[%s275 + $0xc0] sm:%s268]
                %302 = vst [vmem:[%s276 + $0x60] sm:%s268] %v301
                %v303 = vld [vmem:[%s275 + $0xd0] sm:%s268]
                %304 = vst [vmem:[%s276 + $0x68] sm:%s268] %v303
                %v305 = vld [vmem:[%s275 + $0xe0] sm:%s268]
                %306 = vst [vmem:[%s276 + $0x70] sm:%s268] %v305
                %v307 = vld [vmem:[%s275 + $0xf0] sm:%s268]
                %308 = vst [vmem:[%s276 + $0x78] sm:%s268] %v307
              $region53: #{tpu_custom_call.1} parent=47 // loop_footer
                %s274 = sadd.s32 1, %s270
              $region54: #{tpu_custom_call.1} parent=47 // loop_footer_branch
                %269 = sbr.rel target = $region50
              $region55: #{tpu_custom_call.1} parent=47 // loop_exit
                _
            $region48: #{tpu_custom_call.1} parent=39 // pred_fallthru
              _
          $region40: #{tpu_custom_call.1} parent=35 // pred_fallthru
            _
          %353 = vnop
        $region36: #{tpu_custom_call.1} parent=31 // pred_fallthru
          _
        // Predicated region
        $region71: #{tpu_custom_call.1} parent=31 // pred_check
          %p354 = pneg %p76
        $region72: #{tpu_custom_call.1} parent=31 // pred_check_branch
          %356 = sbr.rel (%p354) target = $region74
        $region73: #{tpu_custom_call.1} parent=31 // pred_region
          %s357 = smul.u32 16, %s23
          %p358 = scmp.lt.s32.totalorder %s357, 31
          %s359 = scalar_select %p358, %s357, 31
          %s360 = smul.addr %s359, 8
          %s361 = scalar_lea.vmem %s1, %s360
          %s362 = smul.u32 16, %s23
        $region74: #{tpu_custom_call.1} parent=31 // pred_fallthru
          _
        // Predicated region
        $region75: #{tpu_custom_call.1} parent=31 // pred_check
          %p363 = pneg %p102
        $region76: #{tpu_custom_call.1} parent=31 // pred_check_branch
          %365 = sbr.rel (%p363) target = $region78
        $region77: #{tpu_custom_call.1} parent=31 // pred_region
          %s366 = smul.u32 16, %s24
          %p367 = scmp.lt.s32.totalorder %s366, 31
          %s368 = scalar_select %p367, %s366, 31
          %s369 = smul.addr %s368, 8
          %s370 = scalar_lea.vmem %s2, %s369
          %s371 = smul.u32 16, %s24
        $region78: #{tpu_custom_call.1} parent=31 // pred_fallthru
          _
      $region32: #{tpu_custom_call.1} parent=5 // pred_fallthru
        _
      %p372 = scmp.le.s32.totalorder 1, %s16
      %p373 = scmp.lt.s32.totalorder %s16, 5
      %p374 = pnand %p372, %p373
      %p375 = pneg %p374
      // Predicated region
      $region79: #{tpu_custom_call.1} parent=5 // pred_check
        _
      $region80: #{tpu_custom_call.1} parent=5 // pred_check_branch
        %377 = sbr.rel (%p374) target = $region82
      $region81: #{tpu_custom_call.1} parent=5 // pred_region
        %s378 = ssub.s32 %s16, 1
        %s379 = sand.u32 %s43, 1
        %s380 = sand.u32 %s43, 1
        %s381 = smul.addr %s380, 128
        %s382 = scalar_lea.vmem [#allocation5], %s381
        // Predicated region
        $region83: #{tpu_custom_call.1} parent=81 // pred_check
          %p383 = pneg %p56
        $region84: #{tpu_custom_call.1} parent=81 // pred_check_branch
          %385 = sbr.rel (%p383) target = $region86
        $region85: #{tpu_custom_call.1} parent=81 // pred_region
          _
        $region86: #{tpu_custom_call.1} parent=81 // pred_fallthru
          _
        %s386 = sand.u32 %s43, 1
        %s387 = sand.u32 %s43, 1
        %s388 = smul.addr %s387, 128
        %s389 = scalar_lea.vmem [#allocation5], %s388
        %p390 = pneg %p56
        %p391 = pneg %p53
        %s392 = smul.u32 16, %s25
        %p393 = scmp.lt.s32.totalorder %s392, 31
        %s394 = scalar_select %p393, %s392, 31
        %s395 = smul.addr %s394, 8
        %s396 = scalar_lea.vmem %s1, %s395
        %p397 = pneg %p82
        %p398 = pneg %p79
        %s399 = smul.u32 16, %s26
        %p400 = scmp.lt.s32.totalorder %s399, 31
        %s401 = scalar_select %p400, %s399, 31
        %s402 = smul.addr %s401, 8
        %s403 = scalar_lea.vmem %s2, %s402
        %p404 = pneg %p108
        %p405 = pneg %p105
        %p406 = pneg %p129
        %p407 = pneg %p126
        %p408 = pneg %p150
        %p409 = pneg %p147
        %p410 = pneg %p171
        %p411 = pneg %p168
        %p412 = pneg %p192
        %p413 = pneg %p189
        %p414 = pneg %p218
        %p415 = pneg %p215
        %s416 = sand.u32 %s205, 1
        %s417 = scalar_lea.sflag [#allocation7], %s416
        %s418 = sand.u32 %s205, 1
        %s419 = smul.addr %s418, 128
        %s420 = scalar_lea.vmem [#allocation6], %s419
        %s421 = smul.u32 16, %s25
        %s422 = smul.u32 16, %s25
        %p423 = scmp.lt.s32.totalorder %s422, 31
        %s424 = scalar_select %p423, %s422, 31
        %s425 = smul.addr %s424, 8
        %s426 = scalar_lea.vmem %s1, %s425
        %s427 = smul.u32 16, %s25
        %s428 = smul.u32 16, %s26
        %p429 = scmp.lt.s32.totalorder %s428, 31
        %s430 = scalar_select %p429, %s428, 31
        %s431 = smul.addr %s430, 8
        %s432 = scalar_lea.vmem %s2, %s431
        %s433 = smul.u32 16, %s26
        %s434 = smul.u32 16, %s25
        %p435 = scmp.eq.s32.totalorder %s26, 0
        // Predicated region
        $region87: #{tpu_custom_call.1} parent=81 // pred_check
          %p436 = pneg %p435
        $region88: #{tpu_custom_call.1} parent=81 // pred_check_branch
          %438 = sbr.rel (%p436) target = $region90
        $region89: #{tpu_custom_call.1} parent=81 // pred_region
          %v439 = vld [vmem:[%s426] sm:$0xff]
          %v440 = vld [vmem:[%s426 + $0x8] sm:$0xff]
          %v441 = vld [vmem:[%s426 + $0x10] sm:$0xff]
          %v442 = vld [vmem:[%s426 + $0x18] sm:$0xff]
          %v443 = vld [vmem:[%s426 + $0x20] sm:$0xff]
          %v444 = vld [vmem:[%s426 + $0x28] sm:$0xff]
          %v445 = vld [vmem:[%s426 + $0x30] sm:$0xff]
          %v446 = vld [vmem:[%s426 + $0x38] sm:$0xff]
          %v447 = vld [vmem:[%s426 + $0x40] sm:$0xff]
          %v448 = vld [vmem:[%s426 + $0x48] sm:$0xff]
          %v449 = vld [vmem:[%s426 + $0x50] sm:$0xff]
          %v450 = vld [vmem:[%s426 + $0x58] sm:$0xff]
          %v451 = vld [vmem:[%s426 + $0x60] sm:$0xff]
          %v452 = vld [vmem:[%s426 + $0x68] sm:$0xff]
          %v453 = vld [vmem:[%s426 + $0x70] sm:$0xff]
          %v454 = vld [vmem:[%s426 + $0x78] sm:$0xff]
          %v455 = vld [vmem:[%s3] sm:$0xff]
          %v456 = vld [vmem:[%s3 + $0x8] sm:$0xff]
          %v457 = vld [vmem:[%s3 + $0x10] sm:$0xff]
          %v458 = vld [vmem:[%s3 + $0x18] sm:$0xff]
          %vm459 = vcmask 261120
          %v461 = vsel %vm459, %v439, 0
          %v464 = vsel %vm459, %v440, 0
          %v467 = vsel %vm459, %v441, 0
          %v470 = vsel %vm459, %v442, 0
          %v473 = vsel %vm459, %v443, 0
          %v476 = vsel %vm459, %v444, 0
          %v479 = vsel %vm459, %v445, 0
          %v482 = vsel %vm459, %v446, 0
          %v485 = vsel %vm459, %v447, 0
          %v488 = vsel %vm459, %v448, 0
          %v491 = vsel %vm459, %v449, 0
          %v494 = vsel %vm459, %v450, 0
          %v497 = vsel %vm459, %v451, 0
          %v500 = vsel %vm459, %v452, 0
          %v503 = vsel %vm459, %v453, 0
          %v506 = vsel %vm459, %v454, 0
          %508 = vmatprep.subr.mxu0 0.0
          %509 = vmatpush1.msra.mxu0 0.0
          %510 = vmatprep.subr.mxu0 0.0
          %511 = vmatpush1.msra.mxu0 0.0
          %512 = vmatprep.subr.mxu0 0.0
          %513 = vmatpush1.msra.mxu0 0.0
          %514 = vmatprep.subr.mxu0 0.0
          %515 = vmatpush1.msra.mxu0 0.0
          %516 = vmatprep.subr.mxu0 0.0
          %517 = vmatpush1.msra.mxu0 0.0
          %518 = vmatprep.subr.mxu0 0.0
          %519 = vmatpush1.msra.mxu0 0.0
          %520 = vmatprep.subr.mxu0 0.0
          %521 = vmatpush1.msra.mxu0 0.0
          %522 = vmatprep.subr.mxu0 0.0
          %523 = vmatpush1.msra.mxu0 0.0
          %524 = vmatprep.subr.mxu0 0.0
          %525 = vmatpush1.msra.mxu0 0.0
          %526 = vmatprep.subr.mxu0 0.0
          %527 = vmatpush1.msra.mxu0 0.0
          %528 = vmatprep.subr.mxu0 0.0
          %529 = vmatpush1.msra.mxu0 0.0
          %530 = vmatprep.subr.mxu0 0.0
          %531 = vmatpush1.msra.mxu0 0.0
          %532 = vmatprep.subr.mxu0 0.0
          %533 = vmatpush1.msra.mxu0 %v458
          %534 = vmatprep.subr.mxu0 0.0
          %535 = vmatpush1.msra.mxu0 %v457
          %536 = vmatprep.subr.mxu0 0.0
          %537 = vmatpush1.msra.mxu0 %v456
          %538 = vmatprep.subr.mxu0 0.0
          %539 = vmatpush1.msra.mxu0 %v455
          %540 = vmatprep.subr.mxu0 0.0
          %541 = vmatpush2.msra.mxu0 0.0
          %542 = vmatprep.subr.mxu0 0.0
          %543 = vmatpush2.msra.mxu0 0.0
          %544 = vmatprep.subr.mxu0 0.0
          %545 = vmatpush2.msra.mxu0 0.0
          %546 = vmatprep.subr.mxu0 0.0
          %547 = vmatpush2.msra.mxu0 0.0
          %548 = vmatprep.subr.mxu0 0.0
          %549 = vmatpush2.msra.mxu0 0.0
          %550 = vmatprep.subr.mxu0 0.0
          %551 = vmatpush2.msra.mxu0 0.0
          %552 = vmatprep.subr.mxu0 0.0
          %553 = vmatpush2.msra.mxu0 0.0
          %554 = vmatprep.subr.mxu0 0.0
          %555 = vmatpush2.msra.mxu0 0.0
          %556 = vmatprep.subr.mxu0 0.0
          %557 = vmatpush2.msra.mxu0 0.0
          %558 = vmatprep.subr.mxu0 0.0
          %559 = vmatpush2.msra.mxu0 0.0
          %560 = vmatprep.subr.mxu0 0.0
          %561 = vmatpush2.msra.mxu0 0.0
          %562 = vmatprep.subr.mxu0 0.0
          %563 = vmatpush2.msra.mxu0 0.0
          %564 = vmatprep.subr.mxu0 0.0
          %565 = vmatpush2.msra.mxu0 0.0
          %566 = vmatprep.subr.mxu0 0.0
          %567 = vmatpush2.msra.mxu0 0.0
          %568 = vmatprep.subr.mxu0 0.0
          %569 = vmatpush2.msra.mxu0 0.0
          %570 = vmatprep.subr.mxu0 0.0
          %571 = vmatpush2.msra.mxu0 0.0
          %572 = vmatprep.mubr.f32.mxu0 0.0
          %573 = vmatmul.mubr.f32.gmra.mxu0 %v461
          %v574 = vpop.f32.mrf.mxu0
          %v575 = vadd.f32 0.0, %v574
          %v576 = vpop.f32.mrf.mxu0
          %577 = vmatprep.mubr.f32.mxu0 0.0
          %578 = vmatmul.mubr.f32.gmra.mxu0 %v464
          %v579 = vpop.f32.mrf.mxu0
          %v580 = vadd.f32 0.0, %v579
          %v581 = vpop.f32.mrf.mxu0
          %582 = vmatprep.mubr.f32.mxu0 0.0
          %583 = vmatmul.mubr.f32.gmra.mxu0 %v467
          %v584 = vpop.f32.mrf.mxu0
          %v585 = vadd.f32 0.0, %v584
          %v586 = vpop.f32.mrf.mxu0
          %587 = vmatprep.mubr.f32.mxu0 0.0
          %588 = vmatmul.mubr.f32.gmra.mxu0 %v470
          %v589 = vpop.f32.mrf.mxu0
          %v590 = vadd.f32 0.0, %v589
          %v591 = vpop.f32.mrf.mxu0
          %592 = vmatprep.mubr.f32.mxu0 0.0
          %593 = vmatmul.mubr.f32.gmra.mxu0 %v473
          %v594 = vpop.f32.mrf.mxu0
          %v595 = vadd.f32 0.0, %v594
          %v596 = vpop.f32.mrf.mxu0
          %597 = vmatprep.mubr.f32.mxu0 0.0
          %598 = vmatmul.mubr.f32.gmra.mxu0 %v476
          %v599 = vpop.f32.mrf.mxu0
          %v600 = vadd.f32 0.0, %v599
          %v601 = vpop.f32.mrf.mxu0
          %602 = vmatprep.mubr.f32.mxu0 0.0
          %603 = vmatmul.mubr.f32.gmra.mxu0 %v479
          %v604 = vpop.f32.mrf.mxu0
          %v605 = vadd.f32 0.0, %v604
          %v606 = vpop.f32.mrf.mxu0
          %607 = vmatprep.mubr.f32.mxu0 0.0
          %608 = vmatmul.mubr.f32.gmra.mxu0 %v482
          %v609 = vpop.f32.mrf.mxu0
          %v610 = vadd.f32 0.0, %v609
          %v611 = vpop.f32.mrf.mxu0
          %612 = vmatprep.mubr.f32.mxu0 0.0
          %613 = vmatmul.mubr.f32.gmra.mxu0 %v485
          %v614 = vpop.f32.mrf.mxu0
          %v615 = vadd.f32 0.0, %v614
          %v616 = vpop.f32.mrf.mxu0
          %617 = vmatprep.mubr.f32.mxu0 0.0
          %618 = vmatmul.mubr.f32.gmra.mxu0 %v488
          %v619 = vpop.f32.mrf.mxu0
          %v620 = vadd.f32 0.0, %v619
          %v621 = vpop.f32.mrf.mxu0
          %622 = vmatprep.mubr.f32.mxu0 0.0
          %623 = vmatmul.mubr.f32.gmra.mxu0 %v491
          %v624 = vpop.f32.mrf.mxu0
          %v625 = vadd.f32 0.0, %v624
          %v626 = vpop.f32.mrf.mxu0
          %627 = vmatprep.mubr.f32.mxu0 0.0
          %628 = vmatmul.mubr.f32.gmra.mxu0 %v494
          %v629 = vpop.f32.mrf.mxu0
          %v630 = vadd.f32 0.0, %v629
          %v631 = vpop.f32.mrf.mxu0
          %632 = vmatprep.mubr.f32.mxu0 0.0
          %633 = vmatmul.mubr.f32.gmra.mxu0 %v497
          %v634 = vpop.f32.mrf.mxu0
          %v635 = vadd.f32 0.0, %v634
          %v636 = vpop.f32.mrf.mxu0
          %637 = vmatprep.mubr.f32.mxu0 0.0
          %638 = vmatmul.mubr.f32.gmra.mxu0 %v500
          %v639 = vpop.f32.mrf.mxu0
          %v640 = vadd.f32 0.0, %v639
          %v641 = vpop.f32.mrf.mxu0
          %642 = vmatprep.mubr.f32.mxu0 0.0
          %643 = vmatmul.mubr.f32.gmra.mxu0 %v503
          %v644 = vpop.f32.mrf.mxu0
          %v645 = vadd.f32 0.0, %v644
          %v646 = vpop.f32.mrf.mxu0
          %647 = vmatprep.mubr.f32.mxu0 0.0
          %648 = vmatmul.mubr.f32.gmra.mxu0 %v506
          %v649 = vpop.f32.mrf.mxu0
          %v650 = vadd.f32 0.0, %v649
          %v651 = vpop.f32.mrf.mxu0
          %652 = vdwg.mxu0
          %v653 = vld [vmem:[%s4] sm:$0xff]
          %v654 = vld [vmem:[%s4 + $0x8] sm:$0xff]
          %v655 = vld [vmem:[%s4 + $0x10] sm:$0xff]
          %v656 = vld [vmem:[%s4 + $0x18] sm:$0xff]
          %v658 = vsel %vm459, %v575, 0
          %v661 = vsel %vm459, %v580, 0
          %v664 = vsel %vm459, %v585, 0
          %v667 = vsel %vm459, %v590, 0
          %v670 = vsel %vm459, %v595, 0
          %v673 = vsel %vm459, %v600, 0
          %v676 = vsel %vm459, %v605, 0
          %v679 = vsel %vm459, %v610, 0
          %v682 = vsel %vm459, %v615, 0
          %v685 = vsel %vm459, %v620, 0
          %v688 = vsel %vm459, %v625, 0
          %v691 = vsel %vm459, %v630, 0
          %v694 = vsel %vm459, %v635, 0
          %v697 = vsel %vm459, %v640, 0
          %v700 = vsel %vm459, %v645, 0
          %v703 = vsel %vm459, %v650, 0
          %705 = vmatprep.subr.mxu0 0.0
          %706 = vmatpush1.msra.mxu0 0.0
          %707 = vmatprep.subr.mxu0 0.0
          %708 = vmatpush1.msra.mxu0 0.0
          %709 = vmatprep.subr.mxu0 0.0
          %710 = vmatpush1.msra.mxu0 0.0
          %711 = vmatprep.subr.mxu0 0.0
          %712 = vmatpush1.msra.mxu0 0.0
          %713 = vmatprep.subr.mxu0 0.0
          %714 = vmatpush1.msra.mxu0 0.0
          %715 = vmatprep.subr.mxu0 0.0
          %716 = vmatpush1.msra.mxu0 0.0
          %717 = vmatprep.subr.mxu0 0.0
          %718 = vmatpush1.msra.mxu0 0.0
          %719 = vmatprep.subr.mxu0 0.0
          %720 = vmatpush1.msra.mxu0 0.0
          %721 = vmatprep.subr.mxu0 0.0
          %722 = vmatpush1.msra.mxu0 0.0
          %723 = vmatprep.subr.mxu0 0.0
          %724 = vmatpush1.msra.mxu0 0.0
          %725 = vmatprep.subr.mxu0 0.0
          %726 = vmatpush1.msra.mxu0 0.0
          %727 = vmatprep.subr.mxu0 0.0
          %728 = vmatpush1.msra.mxu0 0.0
          %729 = vmatprep.subr.mxu0 0.0
          %730 = vmatpush1.msra.mxu0 %v656
          %731 = vmatprep.subr.mxu0 0.0
          %732 = vmatpush1.msra.mxu0 %v655
          %733 = vmatprep.subr.mxu0 0.0
          %734 = vmatpush1.msra.mxu0 %v654
          %735 = vmatprep.subr.mxu0 0.0
          %736 = vmatpush1.msra.mxu0 %v653
          %737 = vmatprep.subr.mxu0 0.0
          %738 = vmatpush2.msra.mxu0 0.0
          %739 = vmatprep.subr.mxu0 0.0
          %740 = vmatpush2.msra.mxu0 0.0
          %741 = vmatprep.subr.mxu0 0.0
          %742 = vmatpush2.msra.mxu0 0.0
          %743 = vmatprep.subr.mxu0 0.0
          %744 = vmatpush2.msra.mxu0 0.0
          %745 = vmatprep.subr.mxu0 0.0
          %746 = vmatpush2.msra.mxu0 0.0
          %747 = vmatprep.subr.mxu0 0.0
          %748 = vmatpush2.msra.mxu0 0.0
          %749 = vmatprep.subr.mxu0 0.0
          %750 = vmatpush2.msra.mxu0 0.0
          %751 = vmatprep.subr.mxu0 0.0
          %752 = vmatpush2.msra.mxu0 0.0
          %753 = vmatprep.subr.mxu0 0.0
          %754 = vmatpush2.msra.mxu0 0.0
          %755 = vmatprep.subr.mxu0 0.0
          %756 = vmatpush2.msra.mxu0 0.0
          %757 = vmatprep.subr.mxu0 0.0
          %758 = vmatpush2.msra.mxu0 0.0
          %759 = vmatprep.subr.mxu0 0.0
          %760 = vmatpush2.msra.mxu0 0.0
          %761 = vmatprep.subr.mxu0 0.0
          %762 = vmatpush2.msra.mxu0 0.0
          %763 = vmatprep.subr.mxu0 0.0
          %764 = vmatpush2.msra.mxu0 0.0
          %765 = vmatprep.subr.mxu0 0.0
          %766 = vmatpush2.msra.mxu0 0.0
          %767 = vmatprep.subr.mxu0 0.0
          %768 = vmatpush2.msra.mxu0 0.0
          %769 = vmatprep.mubr.f32.mxu0 0.0
          %770 = vmatmul.mubr.f32.gmra.mxu0 %v658
          %v771 = vpop.f32.mrf.mxu0
          %v772 = vadd.f32 0.0, %v771
          %v773 = vpop.f32.mrf.mxu0
          %774 = vmatprep.mubr.f32.mxu0 0.0
          %775 = vmatmul.mubr.f32.gmra.mxu0 %v661
          %v776 = vpop.f32.mrf.mxu0
          %v777 = vadd.f32 0.0, %v776
          %v778 = vpop.f32.mrf.mxu0
          %779 = vmatprep.mubr.f32.mxu0 0.0
          %780 = vmatmul.mubr.f32.gmra.mxu0 %v664
          %v781 = vpop.f32.mrf.mxu0
          %v782 = vadd.f32 0.0, %v781
          %v783 = vpop.f32.mrf.mxu0
          %784 = vmatprep.mubr.f32.mxu0 0.0
          %785 = vmatmul.mubr.f32.gmra.mxu0 %v667
          %v786 = vpop.f32.mrf.mxu0
          %v787 = vadd.f32 0.0, %v786
          %v788 = vpop.f32.mrf.mxu0
          %789 = vmatprep.mubr.f32.mxu0 0.0
          %790 = vmatmul.mubr.f32.gmra.mxu0 %v670
          %v791 = vpop.f32.mrf.mxu0
          %v792 = vadd.f32 0.0, %v791
          %v793 = vpop.f32.mrf.mxu0
          %794 = vmatprep.mubr.f32.mxu0 0.0
          %795 = vmatmul.mubr.f32.gmra.mxu0 %v673
          %v796 = vpop.f32.mrf.mxu0
          %v797 = vadd.f32 0.0, %v796
          %v798 = vpop.f32.mrf.mxu0
          %799 = vmatprep.mubr.f32.mxu0 0.0
          %800 = vmatmul.mubr.f32.gmra.mxu0 %v676
          %v801 = vpop.f32.mrf.mxu0
          %v802 = vadd.f32 0.0, %v801
          %v803 = vpop.f32.mrf.mxu0
          %804 = vmatprep.mubr.f32.mxu0 0.0
          %805 = vmatmul.mubr.f32.gmra.mxu0 %v679
          %v806 = vpop.f32.mrf.mxu0
          %v807 = vadd.f32 0.0, %v806
          %v808 = vpop.f32.mrf.mxu0
          %809 = vmatprep.mubr.f32.mxu0 0.0
          %810 = vmatmul.mubr.f32.gmra.mxu0 %v682
          %v811 = vpop.f32.mrf.mxu0
          %v812 = vadd.f32 0.0, %v811
          %v813 = vpop.f32.mrf.mxu0
          %814 = vmatprep.mubr.f32.mxu0 0.0
          %815 = vmatmul.mubr.f32.gmra.mxu0 %v685
          %v816 = vpop.f32.mrf.mxu0
          %v817 = vadd.f32 0.0, %v816
          %v818 = vpop.f32.mrf.mxu0
          %819 = vmatprep.mubr.f32.mxu0 0.0
          %820 = vmatmul.mubr.f32.gmra.mxu0 %v688
          %v821 = vpop.f32.mrf.mxu0
          %v822 = vadd.f32 0.0, %v821
          %v823 = vpop.f32.mrf.mxu0
          %824 = vmatprep.mubr.f32.mxu0 0.0
          %825 = vmatmul.mubr.f32.gmra.mxu0 %v691
          %v826 = vpop.f32.mrf.mxu0
          %v827 = vadd.f32 0.0, %v826
          %v828 = vpop.f32.mrf.mxu0
          %829 = vmatprep.mubr.f32.mxu0 0.0
          %830 = vmatmul.mubr.f32.gmra.mxu0 %v694
          %v831 = vpop.f32.mrf.mxu0
          %v832 = vadd.f32 0.0, %v831
          %v833 = vpop.f32.mrf.mxu0
          %834 = vmatprep.mubr.f32.mxu0 0.0
          %835 = vmatmul.mubr.f32.gmra.mxu0 %v697
          %v836 = vpop.f32.mrf.mxu0
          %v837 = vadd.f32 0.0, %v836
          %v838 = vpop.f32.mrf.mxu0
          %839 = vmatprep.mubr.f32.mxu0 0.0
          %840 = vmatmul.mubr.f32.gmra.mxu0 %v700
          %v841 = vpop.f32.mrf.mxu0
          %v842 = vadd.f32 0.0, %v841
          %v843 = vpop.f32.mrf.mxu0
          %844 = vmatprep.mubr.f32.mxu0 0.0
          %845 = vmatmul.mubr.f32.gmra.mxu0 %v703
          %v846 = vpop.f32.mrf.mxu0
          %v847 = vadd.f32 0.0, %v846
          %v848 = vpop.f32.mrf.mxu0
          %849 = vdwg.mxu0
          %vm850 = vcmask 31744
          %851 = vst.msk [vmem:[#allocation2] sm:$0xff] %vm850, %v772
          %852 = vst.msk [vmem:[#allocation2 + $0x8] sm:$0xff] %vm850, %v777
          %853 = vst.msk [vmem:[#allocation2 + $0x10] sm:$0xff] %vm850, %v782
          %854 = vst.msk [vmem:[#allocation2 + $0x18] sm:$0xff] %vm850, %v787
          %855 = vst.msk [vmem:[#allocation2 + $0x20] sm:$0xff] %vm850, %v792
          %856 = vst.msk [vmem:[#allocation2 + $0x28] sm:$0xff] %vm850, %v797
          %857 = vst.msk [vmem:[#allocation2 + $0x30] sm:$0xff] %vm850, %v802
          %858 = vst.msk [vmem:[#allocation2 + $0x38] sm:$0xff] %vm850, %v807
          %859 = vst.msk [vmem:[#allocation2 + $0x40] sm:$0xff] %vm850, %v812
          %860 = vst.msk [vmem:[#allocation2 + $0x48] sm:$0xff] %vm850, %v817
          %861 = vst.msk [vmem:[#allocation2 + $0x50] sm:$0xff] %vm850, %v822
          %862 = vst.msk [vmem:[#allocation2 + $0x58] sm:$0xff] %vm850, %v827
          %863 = vst.msk [vmem:[#allocation2 + $0x60] sm:$0xff] %vm850, %v832
          %864 = vst.msk [vmem:[#allocation2 + $0x68] sm:$0xff] %vm850, %v837
          %865 = vst.msk [vmem:[#allocation2 + $0x70] sm:$0xff] %vm850, %v842
          %866 = vst.msk [vmem:[#allocation2 + $0x78] sm:$0xff] %vm850, %v847
          %867 = vst [vmem:[#allocation3] sm:$0xff] 0.0
          %868 = vst [vmem:[#allocation3 + $0x8] sm:$0xff] 0.0
          %869 = vst [vmem:[#allocation3 + $0x10] sm:$0xff] 0.0
          %870 = vst [vmem:[#allocation3 + $0x18] sm:$0xff] 0.0
          %871 = vst [vmem:[#allocation3 + $0x20] sm:$0xff] 0.0
          %872 = vst [vmem:[#allocation3 + $0x28] sm:$0xff] 0.0
          %873 = vst [vmem:[#allocation3 + $0x30] sm:$0xff] 0.0
          %874 = vst [vmem:[#allocation3 + $0x38] sm:$0xff] 0.0
          %875 = vst [vmem:[#allocation3 + $0x40] sm:$0xff] 0.0
          %876 = vst [vmem:[#allocation3 + $0x48] sm:$0xff] 0.0
          %877 = vst [vmem:[#allocation3 + $0x50] sm:$0xff] 0.0
          %878 = vst [vmem:[#allocation3 + $0x58] sm:$0xff] 0.0
          %879 = vst [vmem:[#allocation3 + $0x60] sm:$0xff] 0.0
          %880 = vst [vmem:[#allocation3 + $0x68] sm:$0xff] 0.0
          %881 = vst [vmem:[#allocation3 + $0x70] sm:$0xff] 0.0
          %882 = vst [vmem:[#allocation3 + $0x78] sm:$0xff] 0.0
          %883 = vst.msk [vmem:[#allocation4] sm:$0xff] %vm850, 0.0
          %884 = vst.msk [vmem:[#allocation4 + $0x8] sm:$0xff] %vm850, 0.0
          %885 = vst.msk [vmem:[#allocation4 + $0x10] sm:$0xff] %vm850, 0.0
          %886 = vst.msk [vmem:[#allocation4 + $0x18] sm:$0xff] %vm850, 0.0
          %887 = vst.msk [vmem:[#allocation4 + $0x20] sm:$0xff] %vm850, 0.0
          %888 = vst.msk [vmem:[#allocation4 + $0x28] sm:$0xff] %vm850, 0.0
          %889 = vst.msk [vmem:[#allocation4 + $0x30] sm:$0xff] %vm850, 0.0
          %890 = vst.msk [vmem:[#allocation4 + $0x38] sm:$0xff] %vm850, 0.0
          %891 = vst.msk [vmem:[#allocation4 + $0x40] sm:$0xff] %vm850, 0.0
          %892 = vst.msk [vmem:[#allocation4 + $0x48] sm:$0xff] %vm850, 0.0
          %893 = vst.msk [vmem:[#allocation4 + $0x50] sm:$0xff] %vm850, 0.0
          %894 = vst.msk [vmem:[#allocation4 + $0x58] sm:$0xff] %vm850, 0.0
          %895 = vst.msk [vmem:[#allocation4 + $0x60] sm:$0xff] %vm850, 0.0
          %896 = vst.msk [vmem:[#allocation4 + $0x68] sm:$0xff] %vm850, 0.0
          %897 = vst.msk [vmem:[#allocation4 + $0x70] sm:$0xff] %vm850, 0.0
          %898 = vst.msk [vmem:[#allocation4 + $0x78] sm:$0xff] %vm850, 0.0
        $region90: #{tpu_custom_call.1} parent=81 // pred_fallthru
          _
        %v899 = vld [vmem:[%s432] sm:$0xff]
        %v900 = vld [vmem:[%s432 + $0x8] sm:$0xff]
        %v901 = vld [vmem:[%s432 + $0x10] sm:$0xff]
        %v902 = vld [vmem:[%s432 + $0x18] sm:$0xff]
        %v903 = vld [vmem:[%s432 + $0x20] sm:$0xff]
        %v904 = vld [vmem:[%s432 + $0x28] sm:$0xff]
        %v905 = vld [vmem:[%s432 + $0x30] sm:$0xff]
        %v906 = vld [vmem:[%s432 + $0x38] sm:$0xff]
        %v907 = vld [vmem:[%s432 + $0x40] sm:$0xff]
        %v908 = vld [vmem:[%s432 + $0x48] sm:$0xff]
        %v909 = vld [vmem:[%s432 + $0x50] sm:$0xff]
        %v910 = vld [vmem:[%s432 + $0x58] sm:$0xff]
        %v911 = vld [vmem:[%s432 + $0x60] sm:$0xff]
        %v912 = vld [vmem:[%s432 + $0x68] sm:$0xff]
        %v913 = vld [vmem:[%s432 + $0x70] sm:$0xff]
        %v914 = vld [vmem:[%s432 + $0x78] sm:$0xff]
        %v915 = vld [vmem:[%s3] sm:$0xff]
        %v916 = vld [vmem:[%s3 + $0x8] sm:$0xff]
        %v917 = vld [vmem:[%s3 + $0x10] sm:$0xff]
        %v918 = vld [vmem:[%s3 + $0x18] sm:$0xff]
        %vm919 = vcmask 261120
        %v921 = vsel %vm919, %v899, 0
        %v924 = vsel %vm919, %v900, 0
        %v927 = vsel %vm919, %v901, 0
        %v930 = vsel %vm919, %v902, 0
        %v933 = vsel %vm919, %v903, 0
        %v936 = vsel %vm919, %v904, 0
        %v939 = vsel %vm919, %v905, 0
        %v942 = vsel %vm919, %v906, 0
        %v945 = vsel %vm919, %v907, 0
        %v948 = vsel %vm919, %v908, 0
        %v951 = vsel %vm919, %v909, 0
        %v954 = vsel %vm919, %v910, 0
        %v957 = vsel %vm919, %v911, 0
        %v960 = vsel %vm919, %v912, 0
        %v963 = vsel %vm919, %v913, 0
        %v966 = vsel %vm919, %v914, 0
        %968 = vmatprep.subr.mxu0 0.0
        %969 = vmatpush1.msra.mxu0 0.0
        %970 = vmatprep.subr.mxu0 0.0
        %971 = vmatpush1.msra.mxu0 0.0
        %972 = vmatprep.subr.mxu0 0.0
        %973 = vmatpush1.msra.mxu0 0.0
        %974 = vmatprep.subr.mxu0 0.0
        %975 = vmatpush1.msra.mxu0 0.0
        %976 = vmatprep.subr.mxu0 0.0
        %977 = vmatpush1.msra.mxu0 0.0
        %978 = vmatprep.subr.mxu0 0.0
        %979 = vmatpush1.msra.mxu0 0.0
        %980 = vmatprep.subr.mxu0 0.0
        %981 = vmatpush1.msra.mxu0 0.0
        %982 = vmatprep.subr.mxu0 0.0
        %983 = vmatpush1.msra.mxu0 0.0
        %984 = vmatprep.subr.mxu0 0.0
        %985 = vmatpush1.msra.mxu0 0.0
        %986 = vmatprep.subr.mxu0 0.0
        %987 = vmatpush1.msra.mxu0 0.0
        %988 = vmatprep.subr.mxu0 0.0
        %989 = vmatpush1.msra.mxu0 0.0
        %990 = vmatprep.subr.mxu0 0.0
        %991 = vmatpush1.msra.mxu0 0.0
        %992 = vmatprep.subr.mxu0 0.0
        %993 = vmatpush1.msra.mxu0 %v918
        %994 = vmatprep.subr.mxu0 0.0
        %995 = vmatpush1.msra.mxu0 %v917
        %996 = vmatprep.subr.mxu0 0.0
        %997 = vmatpush1.msra.mxu0 %v916
        %998 = vmatprep.subr.mxu0 0.0
        %999 = vmatpush1.msra.mxu0 %v915
        %1000 = vmatprep.subr.mxu0 0.0
        %1001 = vmatpush2.msra.mxu0 0.0
        %1002 = vmatprep.subr.mxu0 0.0
        %1003 = vmatpush2.msra.mxu0 0.0
        %1004 = vmatprep.subr.mxu0 0.0
        %1005 = vmatpush2.msra.mxu0 0.0
        %1006 = vmatprep.subr.mxu0 0.0
        %1007 = vmatpush2.msra.mxu0 0.0
        %1008 = vmatprep.subr.mxu0 0.0
        %1009 = vmatpush2.msra.mxu0 0.0
        %1010 = vmatprep.subr.mxu0 0.0
        %1011 = vmatpush2.msra.mxu0 0.0
        %1012 = vmatprep.subr.mxu0 0.0
        %1013 = vmatpush2.msra.mxu0 0.0
        %1014 = vmatprep.subr.mxu0 0.0
        %1015 = vmatpush2.msra.mxu0 0.0
        %1016 = vmatprep.subr.mxu0 0.0
        %1017 = vmatpush2.msra.mxu0 0.0
        %1018 = vmatprep.subr.mxu0 0.0
        %1019 = vmatpush2.msra.mxu0 0.0
        %1020 = vmatprep.subr.mxu0 0.0
        %1021 = vmatpush2.msra.mxu0 0.0
        %1022 = vmatprep.subr.mxu0 0.0
        %1023 = vmatpush2.msra.mxu0 0.0
        %1024 = vmatprep.subr.mxu0 0.0
        %1025 = vmatpush2.msra.mxu0 0.0
        %1026 = vmatprep.subr.mxu0 0.0
        %1027 = vmatpush2.msra.mxu0 0.0
        %1028 = vmatprep.subr.mxu0 0.0
        %1029 = vmatpush2.msra.mxu0 0.0
        %1030 = vmatprep.subr.mxu0 0.0
        %1031 = vmatpush2.msra.mxu0 0.0
        %1032 = vmatprep.mubr.f32.mxu0 0.0
        %1033 = vmatmul.mubr.f32.gmra.mxu0 %v921
        %v1034 = vpop.f32.mrf.mxu0
        %v1035 = vadd.f32 0.0, %v1034
        %v1036 = vpop.f32.mrf.mxu0
        %1037 = vmatprep.mubr.f32.mxu0 0.0
        %1038 = vmatmul.mubr.f32.gmra.mxu0 %v924
        %v1039 = vpop.f32.mrf.mxu0
        %v1040 = vadd.f32 0.0, %v1039
        %v1041 = vpop.f32.mrf.mxu0
        %1042 = vmatprep.mubr.f32.mxu0 0.0
        %1043 = vmatmul.mubr.f32.gmra.mxu0 %v927
        %v1044 = vpop.f32.mrf.mxu0
        %v1045 = vadd.f32 0.0, %v1044
        %v1046 = vpop.f32.mrf.mxu0
        %1047 = vmatprep.mubr.f32.mxu0 0.0
        %1048 = vmatmul.mubr.f32.gmra.mxu0 %v930
        %v1049 = vpop.f32.mrf.mxu0
        %v1050 = vadd.f32 0.0, %v1049
        %v1051 = vpop.f32.mrf.mxu0
        %1052 = vmatprep.mubr.f32.mxu0 0.0
        %1053 = vmatmul.mubr.f32.gmra.mxu0 %v933
        %v1054 = vpop.f32.mrf.mxu0
        %v1055 = vadd.f32 0.0, %v1054
        %v1056 = vpop.f32.mrf.mxu0
        %1057 = vmatprep.mubr.f32.mxu0 0.0
        %1058 = vmatmul.mubr.f32.gmra.mxu0 %v936
        %v1059 = vpop.f32.mrf.mxu0
        %v1060 = vadd.f32 0.0, %v1059
        %v1061 = vpop.f32.mrf.mxu0
        %1062 = vmatprep.mubr.f32.mxu0 0.0
        %1063 = vmatmul.mubr.f32.gmra.mxu0 %v939
        %v1064 = vpop.f32.mrf.mxu0
        %v1065 = vadd.f32 0.0, %v1064
        %v1066 = vpop.f32.mrf.mxu0
        %1067 = vmatprep.mubr.f32.mxu0 0.0
        %1068 = vmatmul.mubr.f32.gmra.mxu0 %v942
        %v1069 = vpop.f32.mrf.mxu0
        %v1070 = vadd.f32 0.0, %v1069
        %v1071 = vpop.f32.mrf.mxu0
        %1072 = vmatprep.mubr.f32.mxu0 0.0
        %1073 = vmatmul.mubr.f32.gmra.mxu0 %v945
        %v1074 = vpop.f32.mrf.mxu0
        %v1075 = vadd.f32 0.0, %v1074
        %v1076 = vpop.f32.mrf.mxu0
        %1077 = vmatprep.mubr.f32.mxu0 0.0
        %1078 = vmatmul.mubr.f32.gmra.mxu0 %v948
        %v1079 = vpop.f32.mrf.mxu0
        %v1080 = vadd.f32 0.0, %v1079
        %v1081 = vpop.f32.mrf.mxu0
        %1082 = vmatprep.mubr.f32.mxu0 0.0
        %1083 = vmatmul.mubr.f32.gmra.mxu0 %v951
        %v1084 = vpop.f32.mrf.mxu0
        %v1085 = vadd.f32 0.0, %v1084
        %v1086 = vpop.f32.mrf.mxu0
        %1087 = vmatprep.mubr.f32.mxu0 0.0
        %1088 = vmatmul.mubr.f32.gmra.mxu0 %v954
        %v1089 = vpop.f32.mrf.mxu0
        %v1090 = vadd.f32 0.0, %v1089
        %v1091 = vpop.f32.mrf.mxu0
        %1092 = vmatprep.mubr.f32.mxu0 0.0
        %1093 = vmatmul.mubr.f32.gmra.mxu0 %v957
        %v1094 = vpop.f32.mrf.mxu0
        %v1095 = vadd.f32 0.0, %v1094
        %v1096 = vpop.f32.mrf.mxu0
        %1097 = vmatprep.mubr.f32.mxu0 0.0
        %1098 = vmatmul.mubr.f32.gmra.mxu0 %v960
        %v1099 = vpop.f32.mrf.mxu0
        %v1100 = vadd.f32 0.0, %v1099
        %v1101 = vpop.f32.mrf.mxu0
        %1102 = vmatprep.mubr.f32.mxu0 0.0
        %1103 = vmatmul.mubr.f32.gmra.mxu0 %v963
        %v1104 = vpop.f32.mrf.mxu0
        %v1105 = vadd.f32 0.0, %v1104
        %v1106 = vpop.f32.mrf.mxu0
        %1107 = vmatprep.mubr.f32.mxu0 0.0
        %1108 = vmatmul.mubr.f32.gmra.mxu0 %v966
        %v1109 = vpop.f32.mrf.mxu0
        %v1110 = vadd.f32 0.0, %v1109
        %v1111 = vpop.f32.mrf.mxu0
        %1112 = vdwg.mxu0
        %v1113 = vld [vmem:[%s5] sm:$0xf]
        %v1115 = vsel %vm919, %v1113, 0
        %v1118 = vsel %vm919, %v1035, 0
        %v1121 = vsel %vm919, %v1040, 0
        %v1124 = vsel %vm919, %v1045, 0
        %v1127 = vsel %vm919, %v1050, 0
        %v1130 = vsel %vm919, %v1055, 0
        %v1133 = vsel %vm919, %v1060, 0
        %v1136 = vsel %vm919, %v1065, 0
        %v1139 = vsel %vm919, %v1070, 0
        %v1142 = vsel %vm919, %v1075, 0
        %v1145 = vsel %vm919, %v1080, 0
        %v1148 = vsel %vm919, %v1085, 0
        %v1151 = vsel %vm919, %v1090, 0
        %v1154 = vsel %vm919, %v1095, 0
        %v1157 = vsel %vm919, %v1100, 0
        %v1160 = vsel %vm919, %v1105, 0
        %v1163 = vsel %vm919, %v1110, 0
        %1165 = vmatprep.subr.mxu0 0.0
        %1166 = vmatpush1.xpose.msra.mxu0 %v1163
        %1167 = vmatprep.subr.mxu0 0.0
        %1168 = vmatpush1.xpose.msra.mxu0 %v1160
        %1169 = vmatprep.subr.mxu0 0.0
        %1170 = vmatpush1.xpose.msra.mxu0 %v1157
        %1171 = vmatprep.subr.mxu0 0.0
        %1172 = vmatpush1.xpose.msra.mxu0 %v1154
        %1173 = vmatprep.subr.mxu0 0.0
        %1174 = vmatpush1.xpose.msra.mxu0 %v1151
        %1175 = vmatprep.subr.mxu0 0.0
        %1176 = vmatpush1.xpose.msra.mxu0 %v1148
        %1177 = vmatprep.subr.mxu0 0.0
        %1178 = vmatpush1.xpose.msra.mxu0 %v1145
        %1179 = vmatprep.subr.mxu0 0.0
        %1180 = vmatpush1.xpose.msra.mxu0 %v1142
        %1181 = vmatprep.subr.mxu0 0.0
        %1182 = vmatpush1.xpose.msra.mxu0 %v1139
        %1183 = vmatprep.subr.mxu0 0.0
        %1184 = vmatpush1.xpose.msra.mxu0 %v1136
        %1185 = vmatprep.subr.mxu0 0.0
        %1186 = vmatpush1.xpose.msra.mxu0 %v1133
        %1187 = vmatprep.subr.mxu0 0.0
        %1188 = vmatpush1.xpose.msra.mxu0 %v1130
        %1189 = vmatprep.subr.mxu0 0.0
        %1190 = vmatpush1.xpose.msra.mxu0 %v1127
        %1191 = vmatprep.subr.mxu0 0.0
        %1192 = vmatpush1.xpose.msra.mxu0 %v1124
        %1193 = vmatprep.subr.mxu0 0.0
        %1194 = vmatpush1.xpose.msra.mxu0 %v1121
        %1195 = vmatprep.subr.mxu0 0.0
        %1196 = vmatpush1.xpose.msra.mxu0 %v1118
        %1197 = vmatprep.subr.mxu0 0.0
        %1198 = vmatpush2.xpose.msra.mxu0 0.0
        %1199 = vmatprep.subr.mxu0 0.0
        %1200 = vmatpush2.xpose.msra.mxu0 0.0
        %1201 = vmatprep.subr.mxu0 0.0
        %1202 = vmatpush2.xpose.msra.mxu0 0.0
        %1203 = vmatprep.subr.mxu0 0.0
        %1204 = vmatpush2.xpose.msra.mxu0 0.0
        %1205 = vmatprep.subr.mxu0 0.0
        %1206 = vmatpush2.xpose.msra.mxu0 0.0
        %1207 = vmatprep.subr.mxu0 0.0
        %1208 = vmatpush2.xpose.msra.mxu0 0.0
        %1209 = vmatprep.subr.mxu0 0.0
        %1210 = vmatpush2.xpose.msra.mxu0 0.0
        %1211 = vmatprep.subr.mxu0 0.0
        %1212 = vmatpush2.xpose.msra.mxu0 0.0
        %1213 = vmatprep.subr.mxu0 0.0
        %1214 = vmatpush2.xpose.msra.mxu0 0.0
        %1215 = vmatprep.subr.mxu0 0.0
        %1216 = vmatpush2.xpose.msra.mxu0 0.0
        %1217 = vmatprep.subr.mxu0 0.0
        %1218 = vmatpush2.xpose.msra.mxu0 0.0
        %1219 = vmatprep.subr.mxu0 0.0
        %1220 = vmatpush2.xpose.msra.mxu0 0.0
        %1221 = vmatprep.subr.mxu0 0.0
        %1222 = vmatpush2.xpose.msra.mxu0 0.0
        %1223 = vmatprep.subr.mxu0 0.0
        %1224 = vmatpush2.xpose.msra.mxu0 0.0
        %1225 = vmatprep.subr.mxu0 0.0
        %1226 = vmatpush2.xpose.msra.mxu0 0.0
        %1227 = vmatprep.subr.mxu0 0.0
        %1228 = vmatpush2.xpose.msra.mxu0 0.0
        %1229 = vmatprep.mubr.f32.mxu0 0.0
        %1230 = vmatmul.mubr.f32.gmra.mxu0 %v1115
        %v1231 = vpop.f32.mrf.mxu0
        %v1232 = vadd.f32 0.0, %v1231
        %v1233 = vpop.f32.mrf.mxu0
        %1234 = vdwg.mxu0
        %v1235 = vld [vmem:[%s382] sm:$0xff]
        %v1236 = vld [vmem:[%s382 + $0x8] sm:$0xff]
        %v1237 = vld [vmem:[%s382 + $0x10] sm:$0xff]
        %v1238 = vld [vmem:[%s382 + $0x18] sm:$0xff]
        %v1239 = vld [vmem:[%s382 + $0x20] sm:$0xff]
        %v1240 = vld [vmem:[%s382 + $0x28] sm:$0xff]
        %v1241 = vld [vmem:[%s382 + $0x30] sm:$0xff]
        %v1242 = vld [vmem:[%s382 + $0x38] sm:$0xff]
        %v1243 = vld [vmem:[%s382 + $0x40] sm:$0xff]
        %v1244 = vld [vmem:[%s382 + $0x48] sm:$0xff]
        %v1245 = vld [vmem:[%s382 + $0x50] sm:$0xff]
        %v1246 = vld [vmem:[%s382 + $0x58] sm:$0xff]
        %v1247 = vld [vmem:[%s382 + $0x60] sm:$0xff]
        %v1248 = vld [vmem:[%s382 + $0x68] sm:$0xff]
        %v1249 = vld [vmem:[%s382 + $0x70] sm:$0xff]
        %v1250 = vld [vmem:[%s382 + $0x78] sm:$0xff]
        %vm1251 = vcmp.ne.f32.partialorder %v1235, 0.0
        %vm1252 = vcmp.ne.f32.partialorder %v1236, 0.0
        %vm1253 = vcmp.ne.f32.partialorder %v1237, 0.0
        %vm1254 = vcmp.ne.f32.partialorder %v1238, 0.0
        %vm1255 = vcmp.ne.f32.partialorder %v1239, 0.0
        %vm1256 = vcmp.ne.f32.partialorder %v1240, 0.0
        %vm1257 = vcmp.ne.f32.partialorder %v1241, 0.0
        %vm1258 = vcmp.ne.f32.partialorder %v1242, 0.0
        %vm1259 = vcmp.ne.f32.partialorder %v1243, 0.0
        %vm1260 = vcmp.ne.f32.partialorder %v1244, 0.0
        %vm1261 = vcmp.ne.f32.partialorder %v1245, 0.0
        %vm1262 = vcmp.ne.f32.partialorder %v1246, 0.0
        %vm1263 = vcmp.ne.f32.partialorder %v1247, 0.0
        %vm1264 = vcmp.ne.f32.partialorder %v1248, 0.0
        %vm1265 = vcmp.ne.f32.partialorder %v1249, 0.0
        %vm1266 = vcmp.ne.f32.partialorder %v1250, 0.0
        %v1267 = vld [vmem:[#allocation2] sm:$0xff]
        %v1268 = vld [vmem:[#allocation2 + $0x8] sm:$0xff]
        %v1269 = vld [vmem:[#allocation2 + $0x10] sm:$0xff]
        %v1270 = vld [vmem:[#allocation2 + $0x18] sm:$0xff]
        %v1271 = vld [vmem:[#allocation2 + $0x20] sm:$0xff]
        %v1272 = vld [vmem:[#allocation2 + $0x28] sm:$0xff]
        %v1273 = vld [vmem:[#allocation2 + $0x30] sm:$0xff]
        %v1274 = vld [vmem:[#allocation2 + $0x38] sm:$0xff]
        %v1275 = vld [vmem:[#allocation2 + $0x40] sm:$0xff]
        %v1276 = vld [vmem:[#allocation2 + $0x48] sm:$0xff]
        %v1277 = vld [vmem:[#allocation2 + $0x50] sm:$0xff]
        %v1278 = vld [vmem:[#allocation2 + $0x58] sm:$0xff]
        %v1279 = vld [vmem:[#allocation2 + $0x60] sm:$0xff]
        %v1280 = vld [vmem:[#allocation2 + $0x68] sm:$0xff]
        %v1281 = vld [vmem:[#allocation2 + $0x70] sm:$0xff]
        %v1282 = vld [vmem:[#allocation2 + $0x78] sm:$0xff]
        %1284 = vset.pattern.permute.xlu0 0
        %1285 = vperm.xlu0 %1284, %v1267
        %v1286 = vpop.permute.xlu0 %1285
        %1289 = vset.pattern.permute.xlu0 0
        %1290 = vperm.xlu0 %1289, %v1268
        %v1291 = vpop.permute.xlu0 %1290
        %1294 = vset.pattern.permute.xlu0 0
        %1295 = vperm.xlu0 %1294, %v1269
        %v1296 = vpop.permute.xlu0 %1295
        %1299 = vset.pattern.permute.xlu0 0
        %1300 = vperm.xlu0 %1299, %v1270
        %v1301 = vpop.permute.xlu0 %1300
        %1304 = vset.pattern.permute.xlu0 0
        %1305 = vperm.xlu0 %1304, %v1271
        %v1306 = vpop.permute.xlu0 %1305
        %1309 = vset.pattern.permute.xlu0 0
        %1310 = vperm.xlu0 %1309, %v1272
        %v1311 = vpop.permute.xlu0 %1310
        %1314 = vset.pattern.permute.xlu0 0
        %1315 = vperm.xlu0 %1314, %v1273
        %v1316 = vpop.permute.xlu0 %1315
        %1319 = vset.pattern.permute.xlu0 0
        %1320 = vperm.xlu0 %1319, %v1274
        %v1321 = vpop.permute.xlu0 %1320
        %1324 = vset.pattern.permute.xlu0 0
        %1325 = vperm.xlu0 %1324, %v1275
        %v1326 = vpop.permute.xlu0 %1325
        %1329 = vset.pattern.permute.xlu0 0
        %1330 = vperm.xlu0 %1329, %v1276
        %v1331 = vpop.permute.xlu0 %1330
        %1334 = vset.pattern.permute.xlu0 0
        %1335 = vperm.xlu0 %1334, %v1277
        %v1336 = vpop.permute.xlu0 %1335
        %1339 = vset.pattern.permute.xlu0 0
        %1340 = vperm.xlu0 %1339, %v1278
        %v1341 = vpop.permute.xlu0 %1340
        %1344 = vset.pattern.permute.xlu0 0
        %1345 = vperm.xlu0 %1344, %v1279
        %v1346 = vpop.permute.xlu0 %1345
        %1349 = vset.pattern.permute.xlu0 0
        %1350 = vperm.xlu0 %1349, %v1280
        %v1351 = vpop.permute.xlu0 %1350
        %1354 = vset.pattern.permute.xlu0 0
        %1355 = vperm.xlu0 %1354, %v1281
        %v1356 = vpop.permute.xlu0 %1355
        %1359 = vset.pattern.permute.xlu0 0
        %1360 = vperm.xlu0 %1359, %v1282
        %v1361 = vpop.permute.xlu0 %1360
        %v1363 = vlaneseq
        %v1364 = vshrl.u32 %v1363, 7
        %v1365 = vsub.s32 0, %v1364
        %v1366 = vrot.slane %v1232, %v1365
        %v1367 = vadd.f32 %v1286, %v1366
        %v1368 = vadd.f32 %v1291, %v1366
        %v1369 = vadd.f32 %v1296, %v1366
        %v1370 = vadd.f32 %v1301, %v1366
        %v1371 = vadd.f32 %v1306, %v1366
        %v1372 = vadd.f32 %v1311, %v1366
        %v1373 = vadd.f32 %v1316, %v1366
        %v1374 = vadd.f32 %v1321, %v1366
        %v1375 = vadd.f32 %v1326, %v1366
        %v1376 = vadd.f32 %v1331, %v1366
        %v1377 = vadd.f32 %v1336, %v1366
        %v1378 = vadd.f32 %v1341, %v1366
        %v1379 = vadd.f32 %v1346, %v1366
        %v1380 = vadd.f32 %v1351, %v1366
        %v1381 = vadd.f32 %v1356, %v1366
        %v1382 = vadd.f32 %v1361, %v1366
        %vm1383 = vcmp.gt.f32.partialorder %v1367, 0.0
        %vm1384 = vcmp.gt.f32.partialorder %v1368, 0.0
        %vm1385 = vcmp.gt.f32.partialorder %v1369, 0.0
        %vm1386 = vcmp.gt.f32.partialorder %v1370, 0.0
        %vm1387 = vcmp.gt.f32.partialorder %v1371, 0.0
        %vm1388 = vcmp.gt.f32.partialorder %v1372, 0.0
        %vm1389 = vcmp.gt.f32.partialorder %v1373, 0.0
        %vm1390 = vcmp.gt.f32.partialorder %v1374, 0.0
        %vm1391 = vcmp.gt.f32.partialorder %v1375, 0.0
        %vm1392 = vcmp.gt.f32.partialorder %v1376, 0.0
        %vm1393 = vcmp.gt.f32.partialorder %v1377, 0.0
        %vm1394 = vcmp.gt.f32.partialorder %v1378, 0.0
        %vm1395 = vcmp.gt.f32.partialorder %v1379, 0.0
        %vm1396 = vcmp.gt.f32.partialorder %v1380, 0.0
        %vm1397 = vcmp.gt.f32.partialorder %v1381, 0.0
        %vm1398 = vcmp.gt.f32.partialorder %v1382, 0.0
        %v1399 = vmul.f32 %v1367, 0.2
        %v1400 = vmul.f32 %v1368, 0.2
        %v1401 = vmul.f32 %v1369, 0.2
        %v1402 = vmul.f32 %v1370, 0.2
        %v1403 = vmul.f32 %v1371, 0.2
        %v1404 = vmul.f32 %v1372, 0.2
        %v1405 = vmul.f32 %v1373, 0.2
        %v1406 = vmul.f32 %v1374, 0.2
        %v1407 = vmul.f32 %v1375, 0.2
        %v1408 = vmul.f32 %v1376, 0.2
        %v1409 = vmul.f32 %v1377, 0.2
        %v1410 = vmul.f32 %v1378, 0.2
        %v1411 = vmul.f32 %v1379, 0.2
        %v1412 = vmul.f32 %v1380, 0.2
        %v1413 = vmul.f32 %v1381, 0.2
        %v1414 = vmul.f32 %v1382, 0.2
        %v1415 = vsel %vm1383, %v1367, %v1399
        %v1416 = vsel %vm1384, %v1368, %v1400
        %v1417 = vsel %vm1385, %v1369, %v1401
        %v1418 = vsel %vm1386, %v1370, %v1402
        %v1419 = vsel %vm1387, %v1371, %v1403
        %v1420 = vsel %vm1388, %v1372, %v1404
        %v1421 = vsel %vm1389, %v1373, %v1405
        %v1422 = vsel %vm1390, %v1374, %v1406
        %v1423 = vsel %vm1391, %v1375, %v1407
        %v1424 = vsel %vm1392, %v1376, %v1408
        %v1425 = vsel %vm1393, %v1377, %v1409
        %v1426 = vsel %vm1394, %v1378, %v1410
        %v1427 = vsel %vm1395, %v1379, %v1411
        %v1428 = vsel %vm1396, %v1380, %v1412
        %v1429 = vsel %vm1397, %v1381, %v1413
        %v1430 = vsel %vm1398, %v1382, %v1414
        %v1431 = vmul.f32 %v1415, 1.442695
        %v1432 = vpow.pop %v1431
        %v1433 = vmul.f32 %v1416, 1.442695
        %v1434 = vpow.pop %v1433
        %v1435 = vmul.f32 %v1417, 1.442695
        %v1436 = vpow.pop %v1435
        %v1437 = vmul.f32 %v1418, 1.442695
        %v1438 = vpow.pop %v1437
        %v1439 = vmul.f32 %v1419, 1.442695
        %v1440 = vpow.pop %v1439
        %v1441 = vmul.f32 %v1420, 1.442695
        %v1442 = vpow.pop %v1441
        %v1443 = vmul.f32 %v1421, 1.442695
        %v1444 = vpow.pop %v1443
        %v1445 = vmul.f32 %v1422, 1.442695
        %v1446 = vpow.pop %v1445
        %v1447 = vmul.f32 %v1423, 1.442695
        %v1448 = vpow.pop %v1447
        %v1449 = vmul.f32 %v1424, 1.442695
        %v1450 = vpow.pop %v1449
        %v1451 = vmul.f32 %v1425, 1.442695
        %v1452 = vpow.pop %v1451
        %v1453 = vmul.f32 %v1426, 1.442695
        %v1454 = vpow.pop %v1453
        %v1455 = vmul.f32 %v1427, 1.442695
        %v1456 = vpow.pop %v1455
        %v1457 = vmul.f32 %v1428, 1.442695
        %v1458 = vpow.pop %v1457
        %v1459 = vmul.f32 %v1429, 1.442695
        %v1460 = vpow.pop %v1459
        %v1461 = vmul.f32 %v1430, 1.442695
        %v1462 = vpow.pop %v1461
        %v1463 = vsel %vm1251, %v1432, 0.0
        %v1464 = vsel %vm1252, %v1434, 0.0
        %v1465 = vsel %vm1253, %v1436, 0.0
        %v1466 = vsel %vm1254, %v1438, 0.0
        %v1467 = vsel %vm1255, %v1440, 0.0
        %v1468 = vsel %vm1256, %v1442, 0.0
        %v1469 = vsel %vm1257, %v1444, 0.0
        %v1470 = vsel %vm1258, %v1446, 0.0
        %v1471 = vsel %vm1259, %v1448, 0.0
        %v1472 = vsel %vm1260, %v1450, 0.0
        %v1473 = vsel %vm1261, %v1452, 0.0
        %v1474 = vsel %vm1262, %v1454, 0.0
        %v1475 = vsel %vm1263, %v1456, 0.0
        %v1476 = vsel %vm1264, %v1458, 0.0
        %v1477 = vsel %vm1265, %v1460, 0.0
        %v1478 = vsel %vm1266, %v1462, 0.0
        %1479 = vmatprep.subr.mxu0 0.0
        %1480 = vmatpush1.msra.mxu0 %v1110
        %1481 = vmatprep.subr.mxu0 0.0
        %1482 = vmatpush1.msra.mxu0 %v1105
        %1483 = vmatprep.subr.mxu0 0.0
        %1484 = vmatpush1.msra.mxu0 %v1100
        %1485 = vmatprep.subr.mxu0 0.0
        %1486 = vmatpush1.msra.mxu0 %v1095
        %1487 = vmatprep.subr.mxu0 0.0
        %1488 = vmatpush1.msra.mxu0 %v1090
        %1489 = vmatprep.subr.mxu0 0.0
        %1490 = vmatpush1.msra.mxu0 %v1085
        %1491 = vmatprep.subr.mxu0 0.0
        %1492 = vmatpush1.msra.mxu0 %v1080
        %1493 = vmatprep.subr.mxu0 0.0
        %1494 = vmatpush1.msra.mxu0 %v1075
        %1495 = vmatprep.subr.mxu0 0.0
        %1496 = vmatpush1.msra.mxu0 %v1070
        %1497 = vmatprep.subr.mxu0 0.0
        %1498 = vmatpush1.msra.mxu0 %v1065
        %1499 = vmatprep.subr.mxu0 0.0
        %1500 = vmatpush1.msra.mxu0 %v1060
        %1501 = vmatprep.subr.mxu0 0.0
        %1502 = vmatpush1.msra.mxu0 %v1055
        %1503 = vmatprep.subr.mxu0 0.0
        %1504 = vmatpush1.msra.mxu0 %v1050
        %1505 = vmatprep.subr.mxu0 0.0
        %1506 = vmatpush1.msra.mxu0 %v1045
        %1507 = vmatprep.subr.mxu0 0.0
        %1508 = vmatpush1.msra.mxu0 %v1040
        %1509 = vmatprep.subr.mxu0 0.0
        %1510 = vmatpush1.msra.mxu0 %v1035
        %1511 = vmatprep.subr.mxu0 0.0
        %1512 = vmatpush2.msra.mxu0 0.0
        %1513 = vmatprep.subr.mxu0 0.0
        %1514 = vmatpush2.msra.mxu0 0.0
        %1515 = vmatprep.subr.mxu0 0.0
        %1516 = vmatpush2.msra.mxu0 0.0
        %1517 = vmatprep.subr.mxu0 0.0
        %1518 = vmatpush2.msra.mxu0 0.0
        %1519 = vmatprep.subr.mxu0 0.0
        %1520 = vmatpush2.msra.mxu0 0.0
        %1521 = vmatprep.subr.mxu0 0.0
        %1522 = vmatpush2.msra.mxu0 0.0
        %1523 = vmatprep.subr.mxu0 0.0
        %1524 = vmatpush2.msra.mxu0 0.0
        %1525 = vmatprep.subr.mxu0 0.0
        %1526 = vmatpush2.msra.mxu0 0.0
        %1527 = vmatprep.subr.mxu0 0.0
        %1528 = vmatpush2.msra.mxu0 0.0
        %1529 = vmatprep.subr.mxu0 0.0
        %1530 = vmatpush2.msra.mxu0 0.0
        %1531 = vmatprep.subr.mxu0 0.0
        %1532 = vmatpush2.msra.mxu0 0.0
        %1533 = vmatprep.subr.mxu0 0.0
        %1534 = vmatpush2.msra.mxu0 0.0
        %1535 = vmatprep.subr.mxu0 0.0
        %1536 = vmatpush2.msra.mxu0 0.0
        %1537 = vmatprep.subr.mxu0 0.0
        %1538 = vmatpush2.msra.mxu0 0.0
        %1539 = vmatprep.subr.mxu0 0.0
        %1540 = vmatpush2.msra.mxu0 0.0
        %1541 = vmatprep.subr.mxu0 0.0
        %1542 = vmatpush2.msra.mxu0 0.0
        %1543 = vmatprep.mubr.f32.mxu0 0.0
        %1544 = vmatmul.mubr.f32.gmra.mxu0 %v1463
        %v1545 = vpop.f32.mrf.mxu0
        %v1546 = vadd.f32 0.0, %v1545
        %v1547 = vpop.f32.mrf.mxu0
        %1548 = vmatprep.mubr.f32.mxu0 0.0
        %1549 = vmatmul.mubr.f32.gmra.mxu0 %v1464
        %v1550 = vpop.f32.mrf.mxu0
        %v1551 = vadd.f32 0.0, %v1550
        %v1552 = vpop.f32.mrf.mxu0
        %1553 = vmatprep.mubr.f32.mxu0 0.0
        %1554 = vmatmul.mubr.f32.gmra.mxu0 %v1465
        %v1555 = vpop.f32.mrf.mxu0
        %v1556 = vadd.f32 0.0, %v1555
        %v1557 = vpop.f32.mrf.mxu0
        %1558 = vmatprep.mubr.f32.mxu0 0.0
        %1559 = vmatmul.mubr.f32.gmra.mxu0 %v1466
        %v1560 = vpop.f32.mrf.mxu0
        %v1561 = vadd.f32 0.0, %v1560
        %v1562 = vpop.f32.mrf.mxu0
        %1563 = vmatprep.mubr.f32.mxu0 0.0
        %1564 = vmatmul.mubr.f32.gmra.mxu0 %v1467
        %v1565 = vpop.f32.mrf.mxu0
        %v1566 = vadd.f32 0.0, %v1565
        %v1567 = vpop.f32.mrf.mxu0
        %1568 = vmatprep.mubr.f32.mxu0 0.0
        %1569 = vmatmul.mubr.f32.gmra.mxu0 %v1468
        %v1570 = vpop.f32.mrf.mxu0
        %v1571 = vadd.f32 0.0, %v1570
        %v1572 = vpop.f32.mrf.mxu0
        %1573 = vmatprep.mubr.f32.mxu0 0.0
        %1574 = vmatmul.mubr.f32.gmra.mxu0 %v1469
        %v1575 = vpop.f32.mrf.mxu0
        %v1576 = vadd.f32 0.0, %v1575
        %v1577 = vpop.f32.mrf.mxu0
        %1578 = vmatprep.mubr.f32.mxu0 0.0
        %1579 = vmatmul.mubr.f32.gmra.mxu0 %v1470
        %v1580 = vpop.f32.mrf.mxu0
        %v1581 = vadd.f32 0.0, %v1580
        %v1582 = vpop.f32.mrf.mxu0
        %1583 = vmatprep.mubr.f32.mxu0 0.0
        %1584 = vmatmul.mubr.f32.gmra.mxu0 %v1471
        %v1585 = vpop.f32.mrf.mxu0
        %v1586 = vadd.f32 0.0, %v1585
        %v1587 = vpop.f32.mrf.mxu0
        %1588 = vmatprep.mubr.f32.mxu0 0.0
        %1589 = vmatmul.mubr.f32.gmra.mxu0 %v1472
        %v1590 = vpop.f32.mrf.mxu0
        %v1591 = vadd.f32 0.0, %v1590
        %v1592 = vpop.f32.mrf.mxu0
        %1593 = vmatprep.mubr.f32.mxu0 0.0
        %1594 = vmatmul.mubr.f32.gmra.mxu0 %v1473
        %v1595 = vpop.f32.mrf.mxu0
        %v1596 = vadd.f32 0.0, %v1595
        %v1597 = vpop.f32.mrf.mxu0
        %1598 = vmatprep.mubr.f32.mxu0 0.0
        %1599 = vmatmul.mubr.f32.gmra.mxu0 %v1474
        %v1600 = vpop.f32.mrf.mxu0
        %v1601 = vadd.f32 0.0, %v1600
        %v1602 = vpop.f32.mrf.mxu0
        %1603 = vmatprep.mubr.f32.mxu0 0.0
        %1604 = vmatmul.mubr.f32.gmra.mxu0 %v1475
        %v1605 = vpop.f32.mrf.mxu0
        %v1606 = vadd.f32 0.0, %v1605
        %v1607 = vpop.f32.mrf.mxu0
        %1608 = vmatprep.mubr.f32.mxu0 0.0
        %1609 = vmatmul.mubr.f32.gmra.mxu0 %v1476
        %v1610 = vpop.f32.mrf.mxu0
        %v1611 = vadd.f32 0.0, %v1610
        %v1612 = vpop.f32.mrf.mxu0
        %1613 = vmatprep.mubr.f32.mxu0 0.0
        %1614 = vmatmul.mubr.f32.gmra.mxu0 %v1477
        %v1615 = vpop.f32.mrf.mxu0
        %v1616 = vadd.f32 0.0, %v1615
        %v1617 = vpop.f32.mrf.mxu0
        %1618 = vmatprep.mubr.f32.mxu0 0.0
        %1619 = vmatmul.mubr.f32.gmra.mxu0 %v1478
        %v1620 = vpop.f32.mrf.mxu0
        %v1621 = vadd.f32 0.0, %v1620
        %v1622 = vpop.f32.mrf.mxu0
        %1623 = vdwg.mxu0
        %1624 = vadd.xlane.f32.xlu0 %v1463
        %v1625 = vpop.xlane.xlu0 %1624
        %1626 = vadd.xlane.f32.xlu0 %v1464
        %v1627 = vpop.xlane.xlu0 %1626
        %1628 = vadd.xlane.f32.xlu0 %v1465
        %v1629 = vpop.xlane.xlu0 %1628
        %1630 = vadd.xlane.f32.xlu0 %v1466
        %v1631 = vpop.xlane.xlu0 %1630
        %1632 = vadd.xlane.f32.xlu0 %v1467
        %v1633 = vpop.xlane.xlu0 %1632
        %1634 = vadd.xlane.f32.xlu0 %v1468
        %v1635 = vpop.xlane.xlu0 %1634
        %1636 = vadd.xlane.f32.xlu0 %v1469
        %v1637 = vpop.xlane.xlu0 %1636
        %1638 = vadd.xlane.f32.xlu0 %v1470
        %v1639 = vpop.xlane.xlu0 %1638
        %1640 = vadd.xlane.f32.xlu0 %v1471
        %v1641 = vpop.xlane.xlu0 %1640
        %1642 = vadd.xlane.f32.xlu0 %v1472
        %v1643 = vpop.xlane.xlu0 %1642
        %1644 = vadd.xlane.f32.xlu0 %v1473
        %v1645 = vpop.xlane.xlu0 %1644
        %1646 = vadd.xlane.f32.xlu0 %v1474
        %v1647 = vpop.xlane.xlu0 %1646
        %1648 = vadd.xlane.f32.xlu0 %v1475
        %v1649 = vpop.xlane.xlu0 %1648
        %1650 = vadd.xlane.f32.xlu0 %v1476
        %v1651 = vpop.xlane.xlu0 %1650
        %1652 = vadd.xlane.f32.xlu0 %v1477
        %v1653 = vpop.xlane.xlu0 %1652
        %1654 = vadd.xlane.f32.xlu0 %v1478
        %v1655 = vpop.xlane.xlu0 %1654
        %1656 = vset.pattern.permute.xlu0 1
        %1657 = vperm.xlu0 %1656, %v1267
        %v1658 = vpop.permute.xlu0 %1657
        %1660 = vset.pattern.permute.xlu0 1
        %1661 = vperm.xlu0 %1660, %v1268
        %v1662 = vpop.permute.xlu0 %1661
        %1664 = vset.pattern.permute.xlu0 1
        %1665 = vperm.xlu0 %1664, %v1269
        %v1666 = vpop.permute.xlu0 %1665
        %1668 = vset.pattern.permute.xlu0 1
        %1669 = vperm.xlu0 %1668, %v1270
        %v1670 = vpop.permute.xlu0 %1669
        %1672 = vset.pattern.permute.xlu0 1
        %1673 = vperm.xlu0 %1672, %v1271
        %v1674 = vpop.permute.xlu0 %1673
        %1676 = vset.pattern.permute.xlu0 1
        %1677 = vperm.xlu0 %1676, %v1272
        %v1678 = vpop.permute.xlu0 %1677
        %1680 = vset.pattern.permute.xlu0 1
        %1681 = vperm.xlu0 %1680, %v1273
        %v1682 = vpop.permute.xlu0 %1681
        %1684 = vset.pattern.permute.xlu0 1
        %1685 = vperm.xlu0 %1684, %v1274
        %v1686 = vpop.permute.xlu0 %1685
        %1688 = vset.pattern.permute.xlu0 1
        %1689 = vperm.xlu0 %1688, %v1275
        %v1690 = vpop.permute.xlu0 %1689
        %1692 = vset.pattern.permute.xlu0 1
        %1693 = vperm.xlu0 %1692, %v1276
        %v1694 = vpop.permute.xlu0 %1693
        %1696 = vset.pattern.permute.xlu0 1
        %1697 = vperm.xlu0 %1696, %v1277
        %v1698 = vpop.permute.xlu0 %1697
        %1700 = vset.pattern.permute.xlu0 1
        %1701 = vperm.xlu0 %1700, %v1278
        %v1702 = vpop.permute.xlu0 %1701
        %1704 = vset.pattern.permute.xlu0 1
        %1705 = vperm.xlu0 %1704, %v1279
        %v1706 = vpop.permute.xlu0 %1705
        %1708 = vset.pattern.permute.xlu0 1
        %1709 = vperm.xlu0 %1708, %v1280
        %v1710 = vpop.permute.xlu0 %1709
        %1712 = vset.pattern.permute.xlu0 1
        %1713 = vperm.xlu0 %1712, %v1281
        %v1714 = vpop.permute.xlu0 %1713
        %1716 = vset.pattern.permute.xlu0 1
        %1717 = vperm.xlu0 %1716, %v1282
        %v1718 = vpop.permute.xlu0 %1717
        %v1720 = vlaneseq
        %v1721 = vshrl.u32 %v1720, 7
        %v1722 = vsub.s32 1, %v1721
        %v1723 = vrot.slane %v1232, %v1722
        %v1724 = vadd.f32 %v1658, %v1723
        %v1725 = vadd.f32 %v1662, %v1723
        %v1726 = vadd.f32 %v1666, %v1723
        %v1727 = vadd.f32 %v1670, %v1723
        %v1728 = vadd.f32 %v1674, %v1723
        %v1729 = vadd.f32 %v1678, %v1723
        %v1730 = vadd.f32 %v1682, %v1723
        %v1731 = vadd.f32 %v1686, %v1723
        %v1732 = vadd.f32 %v1690, %v1723
        %v1733 = vadd.f32 %v1694, %v1723
        %v1734 = vadd.f32 %v1698, %v1723
        %v1735 = vadd.f32 %v1702, %v1723
        %v1736 = vadd.f32 %v1706, %v1723
        %v1737 = vadd.f32 %v1710, %v1723
        %v1738 = vadd.f32 %v1714, %v1723
        %v1739 = vadd.f32 %v1718, %v1723
        %vm1740 = vcmp.gt.f32.partialorder %v1724, 0.0
        %vm1741 = vcmp.gt.f32.partialorder %v1725, 0.0
        %vm1742 = vcmp.gt.f32.partialorder %v1726, 0.0
        %vm1743 = vcmp.gt.f32.partialorder %v1727, 0.0
        %vm1744 = vcmp.gt.f32.partialorder %v1728, 0.0
        %vm1745 = vcmp.gt.f32.partialorder %v1729, 0.0
        %vm1746 = vcmp.gt.f32.partialorder %v1730, 0.0
        %vm1747 = vcmp.gt.f32.partialorder %v1731, 0.0
        %vm1748 = vcmp.gt.f32.partialorder %v1732, 0.0
        %vm1749 = vcmp.gt.f32.partialorder %v1733, 0.0
        %vm1750 = vcmp.gt.f32.partialorder %v1734, 0.0
        %vm1751 = vcmp.gt.f32.partialorder %v1735, 0.0
        %vm1752 = vcmp.gt.f32.partialorder %v1736, 0.0
        %vm1753 = vcmp.gt.f32.partialorder %v1737, 0.0
        %vm1754 = vcmp.gt.f32.partialorder %v1738, 0.0
        %vm1755 = vcmp.gt.f32.partialorder %v1739, 0.0
        %v1756 = vmul.f32 %v1724, 0.2
        %v1757 = vmul.f32 %v1725, 0.2
        %v1758 = vmul.f32 %v1726, 0.2
        %v1759 = vmul.f32 %v1727, 0.2
        %v1760 = vmul.f32 %v1728, 0.2
        %v1761 = vmul.f32 %v1729, 0.2
        %v1762 = vmul.f32 %v1730, 0.2
        %v1763 = vmul.f32 %v1731, 0.2
        %v1764 = vmul.f32 %v1732, 0.2
        %v1765 = vmul.f32 %v1733, 0.2
        %v1766 = vmul.f32 %v1734, 0.2
        %v1767 = vmul.f32 %v1735, 0.2
        %v1768 = vmul.f32 %v1736, 0.2
        %v1769 = vmul.f32 %v1737, 0.2
        %v1770 = vmul.f32 %v1738, 0.2
        %v1771 = vmul.f32 %v1739, 0.2
        %v1772 = vsel %vm1740, %v1724, %v1756
        %v1773 = vsel %vm1741, %v1725, %v1757
        %v1774 = vsel %vm1742, %v1726, %v1758
        %v1775 = vsel %vm1743, %v1727, %v1759
        %v1776 = vsel %vm1744, %v1728, %v1760
        %v1777 = vsel %vm1745, %v1729, %v1761
        %v1778 = vsel %vm1746, %v1730, %v1762
        %v1779 = vsel %vm1747, %v1731, %v1763
        %v1780 = vsel %vm1748, %v1732, %v1764
        %v1781 = vsel %vm1749, %v1733, %v1765
        %v1782 = vsel %vm1750, %v1734, %v1766
        %v1783 = vsel %vm1751, %v1735, %v1767
        %v1784 = vsel %vm1752, %v1736, %v1768
        %v1785 = vsel %vm1753, %v1737, %v1769
        %v1786 = vsel %vm1754, %v1738, %v1770
        %v1787 = vsel %vm1755, %v1739, %v1771
        %v1788 = vmul.f32 %v1772, 1.442695
        %v1789 = vpow.pop %v1788
        %v1790 = vmul.f32 %v1773, 1.442695
        %v1791 = vpow.pop %v1790
        %v1792 = vmul.f32 %v1774, 1.442695
        %v1793 = vpow.pop %v1792
        %v1794 = vmul.f32 %v1775, 1.442695
        %v1795 = vpow.pop %v1794
        %v1796 = vmul.f32 %v1776, 1.442695
        %v1797 = vpow.pop %v1796
        %v1798 = vmul.f32 %v1777, 1.442695
        %v1799 = vpow.pop %v1798
        %v1800 = vmul.f32 %v1778, 1.442695
        %v1801 = vpow.pop %v1800
        %v1802 = vmul.f32 %v1779, 1.442695
        %v1803 = vpow.pop %v1802
        %v1804 = vmul.f32 %v1780, 1.442695
        %v1805 = vpow.pop %v1804
        %v1806 = vmul.f32 %v1781, 1.442695
        %v1807 = vpow.pop %v1806
        %v1808 = vmul.f32 %v1782, 1.442695
        %v1809 = vpow.pop %v1808
        %v1810 = vmul.f32 %v1783, 1.442695
        %v1811 = vpow.pop %v1810
        %v1812 = vmul.f32 %v1784, 1.442695
        %v1813 = vpow.pop %v1812
        %v1814 = vmul.f32 %v1785, 1.442695
        %v1815 = vpow.pop %v1814
        %v1816 = vmul.f32 %v1786, 1.442695
        %v1817 = vpow.pop %v1816
        %v1818 = vmul.f32 %v1787, 1.442695
        %v1819 = vpow.pop %v1818
        %v1820 = vsel %vm1251, %v1789, 0.0
        %v1821 = vsel %vm1252, %v1791, 0.0
        %v1822 = vsel %vm1253, %v1793, 0.0
        %v1823 = vsel %vm1254, %v1795, 0.0
        %v1824 = vsel %vm1255, %v1797, 0.0
        %v1825 = vsel %vm1256, %v1799, 0.0
        %v1826 = vsel %vm1257, %v1801, 0.0
        %v1827 = vsel %vm1258, %v1803, 0.0
        %v1828 = vsel %vm1259, %v1805, 0.0
        %v1829 = vsel %vm1260, %v1807, 0.0
        %v1830 = vsel %vm1261, %v1809, 0.0
        %v1831 = vsel %vm1262, %v1811, 0.0
        %v1832 = vsel %vm1263, %v1813, 0.0
        %v1833 = vsel %vm1264, %v1815, 0.0
        %v1834 = vsel %vm1265, %v1817, 0.0
        %v1835 = vsel %vm1266, %v1819, 0.0
        %1836 = vmatprep.subr.mxu0 0.0
        %1837 = vmatpush1.msra.mxu0 %v1110
        %1838 = vmatprep.subr.mxu0 0.0
        %1839 = vmatpush1.msra.mxu0 %v1105
        %1840 = vmatprep.subr.mxu0 0.0
        %1841 = vmatpush1.msra.mxu0 %v1100
        %1842 = vmatprep.subr.mxu0 0.0
        %1843 = vmatpush1.msra.mxu0 %v1095
        %1844 = vmatprep.subr.mxu0 0.0
        %1845 = vmatpush1.msra.mxu0 %v1090
        %1846 = vmatprep.subr.mxu0 0.0
        %1847 = vmatpush1.msra.mxu0 %v1085
        %1848 = vmatprep.subr.mxu0 0.0
        %1849 = vmatpush1.msra.mxu0 %v1080
        %1850 = vmatprep.subr.mxu0 0.0
        %1851 = vmatpush1.msra.mxu0 %v1075
        %1852 = vmatprep.subr.mxu0 0.0
        %1853 = vmatpush1.msra.mxu0 %v1070
        %1854 = vmatprep.subr.mxu0 0.0
        %1855 = vmatpush1.msra.mxu0 %v1065
        %1856 = vmatprep.subr.mxu0 0.0
        %1857 = vmatpush1.msra.mxu0 %v1060
        %1858 = vmatprep.subr.mxu0 0.0
        %1859 = vmatpush1.msra.mxu0 %v1055
        %1860 = vmatprep.subr.mxu0 0.0
        %1861 = vmatpush1.msra.mxu0 %v1050
        %1862 = vmatprep.subr.mxu0 0.0
        %1863 = vmatpush1.msra.mxu0 %v1045
        %1864 = vmatprep.subr.mxu0 0.0
        %1865 = vmatpush1.msra.mxu0 %v1040
        %1866 = vmatprep.subr.mxu0 0.0
        %1867 = vmatpush1.msra.mxu0 %v1035
        %1868 = vmatprep.subr.mxu0 0.0
        %1869 = vmatpush2.msra.mxu0 0.0
        %1870 = vmatprep.subr.mxu0 0.0
        %1871 = vmatpush2.msra.mxu0 0.0
        %1872 = vmatprep.subr.mxu0 0.0
        %1873 = vmatpush2.msra.mxu0 0.0
        %1874 = vmatprep.subr.mxu0 0.0
        %1875 = vmatpush2.msra.mxu0 0.0
        %1876 = vmatprep.subr.mxu0 0.0
        %1877 = vmatpush2.msra.mxu0 0.0
        %1878 = vmatprep.subr.mxu0 0.0
        %1879 = vmatpush2.msra.mxu0 0.0
        %1880 = vmatprep.subr.mxu0 0.0
        %1881 = vmatpush2.msra.mxu0 0.0
        %1882 = vmatprep.subr.mxu0 0.0
        %1883 = vmatpush2.msra.mxu0 0.0
        %1884 = vmatprep.subr.mxu0 0.0
        %1885 = vmatpush2.msra.mxu0 0.0
        %1886 = vmatprep.subr.mxu0 0.0
        %1887 = vmatpush2.msra.mxu0 0.0
        %1888 = vmatprep.subr.mxu0 0.0
        %1889 = vmatpush2.msra.mxu0 0.0
        %1890 = vmatprep.subr.mxu0 0.0
        %1891 = vmatpush2.msra.mxu0 0.0
        %1892 = vmatprep.subr.mxu0 0.0
        %1893 = vmatpush2.msra.mxu0 0.0
        %1894 = vmatprep.subr.mxu0 0.0
        %1895 = vmatpush2.msra.mxu0 0.0
        %1896 = vmatprep.subr.mxu0 0.0
        %1897 = vmatpush2.msra.mxu0 0.0
        %1898 = vmatprep.subr.mxu0 0.0
        %1899 = vmatpush2.msra.mxu0 0.0
        %1900 = vmatprep.mubr.f32.mxu0 0.0
        %1901 = vmatmul.mubr.f32.gmra.mxu0 %v1820
        %v1902 = vpop.f32.mrf.mxu0
        %v1903 = vadd.f32 0.0, %v1902
        %v1904 = vpop.f32.mrf.mxu0
        %1905 = vmatprep.mubr.f32.mxu0 0.0
        %1906 = vmatmul.mubr.f32.gmra.mxu0 %v1821
        %v1907 = vpop.f32.mrf.mxu0
        %v1908 = vadd.f32 0.0, %v1907
        %v1909 = vpop.f32.mrf.mxu0
        %1910 = vmatprep.mubr.f32.mxu0 0.0
        %1911 = vmatmul.mubr.f32.gmra.mxu0 %v1822
        %v1912 = vpop.f32.mrf.mxu0
        %v1913 = vadd.f32 0.0, %v1912
        %v1914 = vpop.f32.mrf.mxu0
        %1915 = vmatprep.mubr.f32.mxu0 0.0
        %1916 = vmatmul.mubr.f32.gmra.mxu0 %v1823
        %v1917 = vpop.f32.mrf.mxu0
        %v1918 = vadd.f32 0.0, %v1917
        %v1919 = vpop.f32.mrf.mxu0
        %1920 = vmatprep.mubr.f32.mxu0 0.0
        %1921 = vmatmul.mubr.f32.gmra.mxu0 %v1824
        %v1922 = vpop.f32.mrf.mxu0
        %v1923 = vadd.f32 0.0, %v1922
        %v1924 = vpop.f32.mrf.mxu0
        %1925 = vmatprep.mubr.f32.mxu0 0.0
        %1926 = vmatmul.mubr.f32.gmra.mxu0 %v1825
        %v1927 = vpop.f32.mrf.mxu0
        %v1928 = vadd.f32 0.0, %v1927
        %v1929 = vpop.f32.mrf.mxu0
        %1930 = vmatprep.mubr.f32.mxu0 0.0
        %1931 = vmatmul.mubr.f32.gmra.mxu0 %v1826
        %v1932 = vpop.f32.mrf.mxu0
        %v1933 = vadd.f32 0.0, %v1932
        %v1934 = vpop.f32.mrf.mxu0
        %1935 = vmatprep.mubr.f32.mxu0 0.0
        %1936 = vmatmul.mubr.f32.gmra.mxu0 %v1827
        %v1937 = vpop.f32.mrf.mxu0
        %v1938 = vadd.f32 0.0, %v1937
        %v1939 = vpop.f32.mrf.mxu0
        %1940 = vmatprep.mubr.f32.mxu0 0.0
        %1941 = vmatmul.mubr.f32.gmra.mxu0 %v1828
        %v1942 = vpop.f32.mrf.mxu0
        %v1943 = vadd.f32 0.0, %v1942
        %v1944 = vpop.f32.mrf.mxu0
        %1945 = vmatprep.mubr.f32.mxu0 0.0
        %1946 = vmatmul.mubr.f32.gmra.mxu0 %v1829
        %v1947 = vpop.f32.mrf.mxu0
        %v1948 = vadd.f32 0.0, %v1947
        %v1949 = vpop.f32.mrf.mxu0
        %1950 = vmatprep.mubr.f32.mxu0 0.0
        %1951 = vmatmul.mubr.f32.gmra.mxu0 %v1830
        %v1952 = vpop.f32.mrf.mxu0
        %v1953 = vadd.f32 0.0, %v1952
        %v1954 = vpop.f32.mrf.mxu0
        %1955 = vmatprep.mubr.f32.mxu0 0.0
        %1956 = vmatmul.mubr.f32.gmra.mxu0 %v1831
        %v1957 = vpop.f32.mrf.mxu0
        %v1958 = vadd.f32 0.0, %v1957
        %v1959 = vpop.f32.mrf.mxu0
        %1960 = vmatprep.mubr.f32.mxu0 0.0
        %1961 = vmatmul.mubr.f32.gmra.mxu0 %v1832
        %v1962 = vpop.f32.mrf.mxu0
        %v1963 = vadd.f32 0.0, %v1962
        %v1964 = vpop.f32.mrf.mxu0
        %1965 = vmatprep.mubr.f32.mxu0 0.0
        %1966 = vmatmul.mubr.f32.gmra.mxu0 %v1833
        %v1967 = vpop.f32.mrf.mxu0
        %v1968 = vadd.f32 0.0, %v1967
        %v1969 = vpop.f32.mrf.mxu0
        %1970 = vmatprep.mubr.f32.mxu0 0.0
        %1971 = vmatmul.mubr.f32.gmra.mxu0 %v1834
        %v1972 = vpop.f32.mrf.mxu0
        %v1973 = vadd.f32 0.0, %v1972
        %v1974 = vpop.f32.mrf.mxu0
        %1975 = vmatprep.mubr.f32.mxu0 0.0
        %1976 = vmatmul.mubr.f32.gmra.mxu0 %v1835
        %v1977 = vpop.f32.mrf.mxu0
        %v1978 = vadd.f32 0.0, %v1977
        %v1979 = vpop.f32.mrf.mxu0
        %1980 = vdwg.mxu0
        %1981 = vadd.xlane.f32.xlu0 %v1820
        %v1982 = vpop.xlane.xlu0 %1981
        %1983 = vadd.xlane.f32.xlu0 %v1821
        %v1984 = vpop.xlane.xlu0 %1983
        %1985 = vadd.xlane.f32.xlu0 %v1822
        %v1986 = vpop.xlane.xlu0 %1985
        %1987 = vadd.xlane.f32.xlu0 %v1823
        %v1988 = vpop.xlane.xlu0 %1987
        %1989 = vadd.xlane.f32.xlu0 %v1824
        %v1990 = vpop.xlane.xlu0 %1989
        %1991 = vadd.xlane.f32.xlu0 %v1825
        %v1992 = vpop.xlane.xlu0 %1991
        %1993 = vadd.xlane.f32.xlu0 %v1826
        %v1994 = vpop.xlane.xlu0 %1993
        %1995 = vadd.xlane.f32.xlu0 %v1827
        %v1996 = vpop.xlane.xlu0 %1995
        %1997 = vadd.xlane.f32.xlu0 %v1828
        %v1998 = vpop.xlane.xlu0 %1997
        %1999 = vadd.xlane.f32.xlu0 %v1829
        %v2000 = vpop.xlane.xlu0 %1999
        %2001 = vadd.xlane.f32.xlu0 %v1830
        %v2002 = vpop.xlane.xlu0 %2001
        %2003 = vadd.xlane.f32.xlu0 %v1831
        %v2004 = vpop.xlane.xlu0 %2003
        %2005 = vadd.xlane.f32.xlu0 %v1832
        %v2006 = vpop.xlane.xlu0 %2005
        %2007 = vadd.xlane.f32.xlu0 %v1833
        %v2008 = vpop.xlane.xlu0 %2007
        %2009 = vadd.xlane.f32.xlu0 %v1834
        %v2010 = vpop.xlane.xlu0 %2009
        %2011 = vadd.xlane.f32.xlu0 %v1835
        %v2012 = vpop.xlane.xlu0 %2011
        %2013 = vset.pattern.permute.xlu0 2
        %2014 = vperm.xlu0 %2013, %v1267
        %v2015 = vpop.permute.xlu0 %2014
        %2017 = vset.pattern.permute.xlu0 2
        %2018 = vperm.xlu0 %2017, %v1268
        %v2019 = vpop.permute.xlu0 %2018
        %2021 = vset.pattern.permute.xlu0 2
        %2022 = vperm.xlu0 %2021, %v1269
        %v2023 = vpop.permute.xlu0 %2022
        %2025 = vset.pattern.permute.xlu0 2
        %2026 = vperm.xlu0 %2025, %v1270
        %v2027 = vpop.permute.xlu0 %2026
        %2029 = vset.pattern.permute.xlu0 2
        %2030 = vperm.xlu0 %2029, %v1271
        %v2031 = vpop.permute.xlu0 %2030
        %2033 = vset.pattern.permute.xlu0 2
        %2034 = vperm.xlu0 %2033, %v1272
        %v2035 = vpop.permute.xlu0 %2034
        %2037 = vset.pattern.permute.xlu0 2
        %2038 = vperm.xlu0 %2037, %v1273
        %v2039 = vpop.permute.xlu0 %2038
        %2041 = vset.pattern.permute.xlu0 2
        %2042 = vperm.xlu0 %2041, %v1274
        %v2043 = vpop.permute.xlu0 %2042
        %2045 = vset.pattern.permute.xlu0 2
        %2046 = vperm.xlu0 %2045, %v1275
        %v2047 = vpop.permute.xlu0 %2046
        %2049 = vset.pattern.permute.xlu0 2
        %2050 = vperm.xlu0 %2049, %v1276
        %v2051 = vpop.permute.xlu0 %2050
        %2053 = vset.pattern.permute.xlu0 2
        %2054 = vperm.xlu0 %2053, %v1277
        %v2055 = vpop.permute.xlu0 %2054
        %2057 = vset.pattern.permute.xlu0 2
        %2058 = vperm.xlu0 %2057, %v1278
        %v2059 = vpop.permute.xlu0 %2058
        %2061 = vset.pattern.permute.xlu0 2
        %2062 = vperm.xlu0 %2061, %v1279
        %v2063 = vpop.permute.xlu0 %2062
        %2065 = vset.pattern.permute.xlu0 2
        %2066 = vperm.xlu0 %2065, %v1280
        %v2067 = vpop.permute.xlu0 %2066
        %2069 = vset.pattern.permute.xlu0 2
        %2070 = vperm.xlu0 %2069, %v1281
        %v2071 = vpop.permute.xlu0 %2070
        %2073 = vset.pattern.permute.xlu0 2
        %2074 = vperm.xlu0 %2073, %v1282
        %v2075 = vpop.permute.xlu0 %2074
        %v2077 = vlaneseq
        %v2078 = vshrl.u32 %v2077, 7
        %v2079 = vsub.s32 2, %v2078
        %v2080 = vrot.slane %v1232, %v2079
        %v2081 = vadd.f32 %v2015, %v2080
        %v2082 = vadd.f32 %v2019, %v2080
        %v2083 = vadd.f32 %v2023, %v2080
        %v2084 = vadd.f32 %v2027, %v2080
        %v2085 = vadd.f32 %v2031, %v2080
        %v2086 = vadd.f32 %v2035, %v2080
        %v2087 = vadd.f32 %v2039, %v2080
        %v2088 = vadd.f32 %v2043, %v2080
        %v2089 = vadd.f32 %v2047, %v2080
        %v2090 = vadd.f32 %v2051, %v2080
        %v2091 = vadd.f32 %v2055, %v2080
        %v2092 = vadd.f32 %v2059, %v2080
        %v2093 = vadd.f32 %v2063, %v2080
        %v2094 = vadd.f32 %v2067, %v2080
        %v2095 = vadd.f32 %v2071, %v2080
        %v2096 = vadd.f32 %v2075, %v2080
        %vm2097 = vcmp.gt.f32.partialorder %v2081, 0.0
        %vm2098 = vcmp.gt.f32.partialorder %v2082, 0.0
        %vm2099 = vcmp.gt.f32.partialorder %v2083, 0.0
        %vm2100 = vcmp.gt.f32.partialorder %v2084, 0.0
        %vm2101 = vcmp.gt.f32.partialorder %v2085, 0.0
        %vm2102 = vcmp.gt.f32.partialorder %v2086, 0.0
        %vm2103 = vcmp.gt.f32.partialorder %v2087, 0.0
        %vm2104 = vcmp.gt.f32.partialorder %v2088, 0.0
        %vm2105 = vcmp.gt.f32.partialorder %v2089, 0.0
        %vm2106 = vcmp.gt.f32.partialorder %v2090, 0.0
        %vm2107 = vcmp.gt.f32.partialorder %v2091, 0.0
        %vm2108 = vcmp.gt.f32.partialorder %v2092, 0.0
        %vm2109 = vcmp.gt.f32.partialorder %v2093, 0.0
        %vm2110 = vcmp.gt.f32.partialorder %v2094, 0.0
        %vm2111 = vcmp.gt.f32.partialorder %v2095, 0.0
        %vm2112 = vcmp.gt.f32.partialorder %v2096, 0.0
        %v2113 = vmul.f32 %v2081, 0.2
        %v2114 = vmul.f32 %v2082, 0.2
        %v2115 = vmul.f32 %v2083, 0.2
        %v2116 = vmul.f32 %v2084, 0.2
        %v2117 = vmul.f32 %v2085, 0.2
        %v2118 = vmul.f32 %v2086, 0.2
        %v2119 = vmul.f32 %v2087, 0.2
        %v2120 = vmul.f32 %v2088, 0.2
        %v2121 = vmul.f32 %v2089, 0.2
        %v2122 = vmul.f32 %v2090, 0.2
        %v2123 = vmul.f32 %v2091, 0.2
        %v2124 = vmul.f32 %v2092, 0.2
        %v2125 = vmul.f32 %v2093, 0.2
        %v2126 = vmul.f32 %v2094, 0.2
        %v2127 = vmul.f32 %v2095, 0.2
        %v2128 = vmul.f32 %v2096, 0.2
        %v2129 = vsel %vm2097, %v2081, %v2113
        %v2130 = vsel %vm2098, %v2082, %v2114
        %v2131 = vsel %vm2099, %v2083, %v2115
        %v2132 = vsel %vm2100, %v2084, %v2116
        %v2133 = vsel %vm2101, %v2085, %v2117
        %v2134 = vsel %vm2102, %v2086, %v2118
        %v2135 = vsel %vm2103, %v2087, %v2119
        %v2136 = vsel %vm2104, %v2088, %v2120
        %v2137 = vsel %vm2105, %v2089, %v2121
        %v2138 = vsel %vm2106, %v2090, %v2122
        %v2139 = vsel %vm2107, %v2091, %v2123
        %v2140 = vsel %vm2108, %v2092, %v2124
        %v2141 = vsel %vm2109, %v2093, %v2125
        %v2142 = vsel %vm2110, %v2094, %v2126
        %v2143 = vsel %vm2111, %v2095, %v2127
        %v2144 = vsel %vm2112, %v2096, %v2128
        %v2145 = vmul.f32 %v2129, 1.442695
        %v2146 = vpow.pop %v2145
        %v2147 = vmul.f32 %v2130, 1.442695
        %v2148 = vpow.pop %v2147
        %v2149 = vmul.f32 %v2131, 1.442695
        %v2150 = vpow.pop %v2149
        %v2151 = vmul.f32 %v2132, 1.442695
        %v2152 = vpow.pop %v2151
        %v2153 = vmul.f32 %v2133, 1.442695
        %v2154 = vpow.pop %v2153
        %v2155 = vmul.f32 %v2134, 1.442695
        %v2156 = vpow.pop %v2155
        %v2157 = vmul.f32 %v2135, 1.442695
        %v2158 = vpow.pop %v2157
        %v2159 = vmul.f32 %v2136, 1.442695
        %v2160 = vpow.pop %v2159
        %v2161 = vmul.f32 %v2137, 1.442695
        %v2162 = vpow.pop %v2161
        %v2163 = vmul.f32 %v2138, 1.442695
        %v2164 = vpow.pop %v2163
        %v2165 = vmul.f32 %v2139, 1.442695
        %v2166 = vpow.pop %v2165
        %v2167 = vmul.f32 %v2140, 1.442695
        %v2168 = vpow.pop %v2167
        %v2169 = vmul.f32 %v2141, 1.442695
        %v2170 = vpow.pop %v2169
        %v2171 = vmul.f32 %v2142, 1.442695
        %v2172 = vpow.pop %v2171
        %v2173 = vmul.f32 %v2143, 1.442695
        %v2174 = vpow.pop %v2173
        %v2175 = vmul.f32 %v2144, 1.442695
        %v2176 = vpow.pop %v2175
        %v2177 = vsel %vm1251, %v2146, 0.0
        %v2178 = vsel %vm1252, %v2148, 0.0
        %v2179 = vsel %vm1253, %v2150, 0.0
        %v2180 = vsel %vm1254, %v2152, 0.0
        %v2181 = vsel %vm1255, %v2154, 0.0
        %v2182 = vsel %vm1256, %v2156, 0.0
        %v2183 = vsel %vm1257, %v2158, 0.0
        %v2184 = vsel %vm1258, %v2160, 0.0
        %v2185 = vsel %vm1259, %v2162, 0.0
        %v2186 = vsel %vm1260, %v2164, 0.0
        %v2187 = vsel %vm1261, %v2166, 0.0
        %v2188 = vsel %vm1262, %v2168, 0.0
        %v2189 = vsel %vm1263, %v2170, 0.0
        %v2190 = vsel %vm1264, %v2172, 0.0
        %v2191 = vsel %vm1265, %v2174, 0.0
        %v2192 = vsel %vm1266, %v2176, 0.0
        %2193 = vmatprep.subr.mxu0 0.0
        %2194 = vmatpush1.msra.mxu0 %v1110
        %2195 = vmatprep.subr.mxu0 0.0
        %2196 = vmatpush1.msra.mxu0 %v1105
        %2197 = vmatprep.subr.mxu0 0.0
        %2198 = vmatpush1.msra.mxu0 %v1100
        %2199 = vmatprep.subr.mxu0 0.0
        %2200 = vmatpush1.msra.mxu0 %v1095
        %2201 = vmatprep.subr.mxu0 0.0
        %2202 = vmatpush1.msra.mxu0 %v1090
        %2203 = vmatprep.subr.mxu0 0.0
        %2204 = vmatpush1.msra.mxu0 %v1085
        %2205 = vmatprep.subr.mxu0 0.0
        %2206 = vmatpush1.msra.mxu0 %v1080
        %2207 = vmatprep.subr.mxu0 0.0
        %2208 = vmatpush1.msra.mxu0 %v1075
        %2209 = vmatprep.subr.mxu0 0.0
        %2210 = vmatpush1.msra.mxu0 %v1070
        %2211 = vmatprep.subr.mxu0 0.0
        %2212 = vmatpush1.msra.mxu0 %v1065
        %2213 = vmatprep.subr.mxu0 0.0
        %2214 = vmatpush1.msra.mxu0 %v1060
        %2215 = vmatprep.subr.mxu0 0.0
        %2216 = vmatpush1.msra.mxu0 %v1055
        %2217 = vmatprep.subr.mxu0 0.0
        %2218 = vmatpush1.msra.mxu0 %v1050
        %2219 = vmatprep.subr.mxu0 0.0
        %2220 = vmatpush1.msra.mxu0 %v1045
        %2221 = vmatprep.subr.mxu0 0.0
        %2222 = vmatpush1.msra.mxu0 %v1040
        %2223 = vmatprep.subr.mxu0 0.0
        %2224 = vmatpush1.msra.mxu0 %v1035
        %2225 = vmatprep.subr.mxu0 0.0
        %2226 = vmatpush2.msra.mxu0 0.0
        %2227 = vmatprep.subr.mxu0 0.0
        %2228 = vmatpush2.msra.mxu0 0.0
        %2229 = vmatprep.subr.mxu0 0.0
        %2230 = vmatpush2.msra.mxu0 0.0
        %2231 = vmatprep.subr.mxu0 0.0
        %2232 = vmatpush2.msra.mxu0 0.0
        %2233 = vmatprep.subr.mxu0 0.0
        %2234 = vmatpush2.msra.mxu0 0.0
        %2235 = vmatprep.subr.mxu0 0.0
        %2236 = vmatpush2.msra.mxu0 0.0
        %2237 = vmatprep.subr.mxu0 0.0
        %2238 = vmatpush2.msra.mxu0 0.0
        %2239 = vmatprep.subr.mxu0 0.0
        %2240 = vmatpush2.msra.mxu0 0.0
        %2241 = vmatprep.subr.mxu0 0.0
        %2242 = vmatpush2.msra.mxu0 0.0
        %2243 = vmatprep.subr.mxu0 0.0
        %2244 = vmatpush2.msra.mxu0 0.0
        %2245 = vmatprep.subr.mxu0 0.0
        %2246 = vmatpush2.msra.mxu0 0.0
        %2247 = vmatprep.subr.mxu0 0.0
        %2248 = vmatpush2.msra.mxu0 0.0
        %2249 = vmatprep.subr.mxu0 0.0
        %2250 = vmatpush2.msra.mxu0 0.0
        %2251 = vmatprep.subr.mxu0 0.0
        %2252 = vmatpush2.msra.mxu0 0.0
        %2253 = vmatprep.subr.mxu0 0.0
        %2254 = vmatpush2.msra.mxu0 0.0
        %2255 = vmatprep.subr.mxu0 0.0
        %2256 = vmatpush2.msra.mxu0 0.0
        %2257 = vmatprep.mubr.f32.mxu0 0.0
        %2258 = vmatmul.mubr.f32.gmra.mxu0 %v2177
        %v2259 = vpop.f32.mrf.mxu0
        %v2260 = vadd.f32 0.0, %v2259
        %v2261 = vpop.f32.mrf.mxu0
        %2262 = vmatprep.mubr.f32.mxu0 0.0
        %2263 = vmatmul.mubr.f32.gmra.mxu0 %v2178
        %v2264 = vpop.f32.mrf.mxu0
        %v2265 = vadd.f32 0.0, %v2264
        %v2266 = vpop.f32.mrf.mxu0
        %2267 = vmatprep.mubr.f32.mxu0 0.0
        %2268 = vmatmul.mubr.f32.gmra.mxu0 %v2179
        %v2269 = vpop.f32.mrf.mxu0
        %v2270 = vadd.f32 0.0, %v2269
        %v2271 = vpop.f32.mrf.mxu0
        %2272 = vmatprep.mubr.f32.mxu0 0.0
        %2273 = vmatmul.mubr.f32.gmra.mxu0 %v2180
        %v2274 = vpop.f32.mrf.mxu0
        %v2275 = vadd.f32 0.0, %v2274
        %v2276 = vpop.f32.mrf.mxu0
        %2277 = vmatprep.mubr.f32.mxu0 0.0
        %2278 = vmatmul.mubr.f32.gmra.mxu0 %v2181
        %v2279 = vpop.f32.mrf.mxu0
        %v2280 = vadd.f32 0.0, %v2279
        %v2281 = vpop.f32.mrf.mxu0
        %2282 = vmatprep.mubr.f32.mxu0 0.0
        %2283 = vmatmul.mubr.f32.gmra.mxu0 %v2182
        %v2284 = vpop.f32.mrf.mxu0
        %v2285 = vadd.f32 0.0, %v2284
        %v2286 = vpop.f32.mrf.mxu0
        %2287 = vmatprep.mubr.f32.mxu0 0.0
        %2288 = vmatmul.mubr.f32.gmra.mxu0 %v2183
        %v2289 = vpop.f32.mrf.mxu0
        %v2290 = vadd.f32 0.0, %v2289
        %v2291 = vpop.f32.mrf.mxu0
        %2292 = vmatprep.mubr.f32.mxu0 0.0
        %2293 = vmatmul.mubr.f32.gmra.mxu0 %v2184
        %v2294 = vpop.f32.mrf.mxu0
        %v2295 = vadd.f32 0.0, %v2294
        %v2296 = vpop.f32.mrf.mxu0
        %2297 = vmatprep.mubr.f32.mxu0 0.0
        %2298 = vmatmul.mubr.f32.gmra.mxu0 %v2185
        %v2299 = vpop.f32.mrf.mxu0
        %v2300 = vadd.f32 0.0, %v2299
        %v2301 = vpop.f32.mrf.mxu0
        %2302 = vmatprep.mubr.f32.mxu0 0.0
        %2303 = vmatmul.mubr.f32.gmra.mxu0 %v2186
        %v2304 = vpop.f32.mrf.mxu0
        %v2305 = vadd.f32 0.0, %v2304
        %v2306 = vpop.f32.mrf.mxu0
        %2307 = vmatprep.mubr.f32.mxu0 0.0
        %2308 = vmatmul.mubr.f32.gmra.mxu0 %v2187
        %v2309 = vpop.f32.mrf.mxu0
        %v2310 = vadd.f32 0.0, %v2309
        %v2311 = vpop.f32.mrf.mxu0
        %2312 = vmatprep.mubr.f32.mxu0 0.0
        %2313 = vmatmul.mubr.f32.gmra.mxu0 %v2188
        %v2314 = vpop.f32.mrf.mxu0
        %v2315 = vadd.f32 0.0, %v2314
        %v2316 = vpop.f32.mrf.mxu0
        %2317 = vmatprep.mubr.f32.mxu0 0.0
        %2318 = vmatmul.mubr.f32.gmra.mxu0 %v2189
        %v2319 = vpop.f32.mrf.mxu0
        %v2320 = vadd.f32 0.0, %v2319
        %v2321 = vpop.f32.mrf.mxu0
        %2322 = vmatprep.mubr.f32.mxu0 0.0
        %2323 = vmatmul.mubr.f32.gmra.mxu0 %v2190
        %v2324 = vpop.f32.mrf.mxu0
        %v2325 = vadd.f32 0.0, %v2324
        %v2326 = vpop.f32.mrf.mxu0
        %2327 = vmatprep.mubr.f32.mxu0 0.0
        %2328 = vmatmul.mubr.f32.gmra.mxu0 %v2191
        %v2329 = vpop.f32.mrf.mxu0
        %v2330 = vadd.f32 0.0, %v2329
        %v2331 = vpop.f32.mrf.mxu0
        %2332 = vmatprep.mubr.f32.mxu0 0.0
        %2333 = vmatmul.mubr.f32.gmra.mxu0 %v2192
        %v2334 = vpop.f32.mrf.mxu0
        %v2335 = vadd.f32 0.0, %v2334
        %v2336 = vpop.f32.mrf.mxu0
        %2337 = vdwg.mxu0
        %2338 = vadd.xlane.f32.xlu0 %v2177
        %v2339 = vpop.xlane.xlu0 %2338
        %2340 = vadd.xlane.f32.xlu0 %v2178
        %v2341 = vpop.xlane.xlu0 %2340
        %2342 = vadd.xlane.f32.xlu0 %v2179
        %v2343 = vpop.xlane.xlu0 %2342
        %2344 = vadd.xlane.f32.xlu0 %v2180
        %v2345 = vpop.xlane.xlu0 %2344
        %2346 = vadd.xlane.f32.xlu0 %v2181
        %v2347 = vpop.xlane.xlu0 %2346
        %2348 = vadd.xlane.f32.xlu0 %v2182
        %v2349 = vpop.xlane.xlu0 %2348
        %2350 = vadd.xlane.f32.xlu0 %v2183
        %v2351 = vpop.xlane.xlu0 %2350
        %2352 = vadd.xlane.f32.xlu0 %v2184
        %v2353 = vpop.xlane.xlu0 %2352
        %2354 = vadd.xlane.f32.xlu0 %v2185
        %v2355 = vpop.xlane.xlu0 %2354
        %2356 = vadd.xlane.f32.xlu0 %v2186
        %v2357 = vpop.xlane.xlu0 %2356
        %2358 = vadd.xlane.f32.xlu0 %v2187
        %v2359 = vpop.xlane.xlu0 %2358
        %2360 = vadd.xlane.f32.xlu0 %v2188
        %v2361 = vpop.xlane.xlu0 %2360
        %2362 = vadd.xlane.f32.xlu0 %v2189
        %v2363 = vpop.xlane.xlu0 %2362
        %2364 = vadd.xlane.f32.xlu0 %v2190
        %v2365 = vpop.xlane.xlu0 %2364
        %2366 = vadd.xlane.f32.xlu0 %v2191
        %v2367 = vpop.xlane.xlu0 %2366
        %2368 = vadd.xlane.f32.xlu0 %v2192
        %v2369 = vpop.xlane.xlu0 %2368
        %2370 = vset.pattern.permute.xlu0 3
        %2371 = vperm.xlu0 %2370, %v1267
        %v2372 = vpop.permute.xlu0 %2371
        %2374 = vset.pattern.permute.xlu0 3
        %2375 = vperm.xlu0 %2374, %v1268
        %v2376 = vpop.permute.xlu0 %2375
        %2378 = vset.pattern.permute.xlu0 3
        %2379 = vperm.xlu0 %2378, %v1269
        %v2380 = vpop.permute.xlu0 %2379
        %2382 = vset.pattern.permute.xlu0 3
        %2383 = vperm.xlu0 %2382, %v1270
        %v2384 = vpop.permute.xlu0 %2383
        %2386 = vset.pattern.permute.xlu0 3
        %2387 = vperm.xlu0 %2386, %v1271
        %v2388 = vpop.permute.xlu0 %2387
        %2390 = vset.pattern.permute.xlu0 3
        %2391 = vperm.xlu0 %2390, %v1272
        %v2392 = vpop.permute.xlu0 %2391
        %2394 = vset.pattern.permute.xlu0 3
        %2395 = vperm.xlu0 %2394, %v1273
        %v2396 = vpop.permute.xlu0 %2395
        %2398 = vset.pattern.permute.xlu0 3
        %2399 = vperm.xlu0 %2398, %v1274
        %v2400 = vpop.permute.xlu0 %2399
        %2402 = vset.pattern.permute.xlu0 3
        %2403 = vperm.xlu0 %2402, %v1275
        %v2404 = vpop.permute.xlu0 %2403
        %2406 = vset.pattern.permute.xlu0 3
        %2407 = vperm.xlu0 %2406, %v1276
        %v2408 = vpop.permute.xlu0 %2407
        %2410 = vset.pattern.permute.xlu0 3
        %2411 = vperm.xlu0 %2410, %v1277
        %v2412 = vpop.permute.xlu0 %2411
        %2414 = vset.pattern.permute.xlu0 3
        %2415 = vperm.xlu0 %2414, %v1278
        %v2416 = vpop.permute.xlu0 %2415
        %2418 = vset.pattern.permute.xlu0 3
        %2419 = vperm.xlu0 %2418, %v1279
        %v2420 = vpop.permute.xlu0 %2419
        %2422 = vset.pattern.permute.xlu0 3
        %2423 = vperm.xlu0 %2422, %v1280
        %v2424 = vpop.permute.xlu0 %2423
        %2426 = vset.pattern.permute.xlu0 3
        %2427 = vperm.xlu0 %2426, %v1281
        %v2428 = vpop.permute.xlu0 %2427
        %2430 = vset.pattern.permute.xlu0 3
        %2431 = vperm.xlu0 %2430, %v1282
        %v2432 = vpop.permute.xlu0 %2431
        %v2434 = vlaneseq
        %v2435 = vshrl.u32 %v2434, 7
        %v2436 = vsub.s32 3, %v2435
        %v2437 = vrot.slane %v1232, %v2436
        %v2438 = vadd.f32 %v2372, %v2437
        %v2439 = vadd.f32 %v2376, %v2437
        %v2440 = vadd.f32 %v2380, %v2437
        %v2441 = vadd.f32 %v2384, %v2437
        %v2442 = vadd.f32 %v2388, %v2437
        %v2443 = vadd.f32 %v2392, %v2437
        %v2444 = vadd.f32 %v2396, %v2437
        %v2445 = vadd.f32 %v2400, %v2437
        %v2446 = vadd.f32 %v2404, %v2437
        %v2447 = vadd.f32 %v2408, %v2437
        %v2448 = vadd.f32 %v2412, %v2437
        %v2449 = vadd.f32 %v2416, %v2437
        %v2450 = vadd.f32 %v2420, %v2437
        %v2451 = vadd.f32 %v2424, %v2437
        %v2452 = vadd.f32 %v2428, %v2437
        %v2453 = vadd.f32 %v2432, %v2437
        %vm2454 = vcmp.gt.f32.partialorder %v2438, 0.0
        %vm2455 = vcmp.gt.f32.partialorder %v2439, 0.0
        %vm2456 = vcmp.gt.f32.partialorder %v2440, 0.0
        %vm2457 = vcmp.gt.f32.partialorder %v2441, 0.0
        %vm2458 = vcmp.gt.f32.partialorder %v2442, 0.0
        %vm2459 = vcmp.gt.f32.partialorder %v2443, 0.0
        %vm2460 = vcmp.gt.f32.partialorder %v2444, 0.0
        %vm2461 = vcmp.gt.f32.partialorder %v2445, 0.0
        %vm2462 = vcmp.gt.f32.partialorder %v2446, 0.0
        %vm2463 = vcmp.gt.f32.partialorder %v2447, 0.0
        %vm2464 = vcmp.gt.f32.partialorder %v2448, 0.0
        %vm2465 = vcmp.gt.f32.partialorder %v2449, 0.0
        %vm2466 = vcmp.gt.f32.partialorder %v2450, 0.0
        %vm2467 = vcmp.gt.f32.partialorder %v2451, 0.0
        %vm2468 = vcmp.gt.f32.partialorder %v2452, 0.0
        %vm2469 = vcmp.gt.f32.partialorder %v2453, 0.0
        %v2470 = vmul.f32 %v2438, 0.2
        %v2471 = vmul.f32 %v2439, 0.2
        %v2472 = vmul.f32 %v2440, 0.2
        %v2473 = vmul.f32 %v2441, 0.2
        %v2474 = vmul.f32 %v2442, 0.2
        %v2475 = vmul.f32 %v2443, 0.2
        %v2476 = vmul.f32 %v2444, 0.2
        %v2477 = vmul.f32 %v2445, 0.2
        %v2478 = vmul.f32 %v2446, 0.2
        %v2479 = vmul.f32 %v2447, 0.2
        %v2480 = vmul.f32 %v2448, 0.2
        %v2481 = vmul.f32 %v2449, 0.2
        %v2482 = vmul.f32 %v2450, 0.2
        %v2483 = vmul.f32 %v2451, 0.2
        %v2484 = vmul.f32 %v2452, 0.2
        %v2485 = vmul.f32 %v2453, 0.2
        %v2486 = vsel %vm2454, %v2438, %v2470
        %v2487 = vsel %vm2455, %v2439, %v2471
        %v2488 = vsel %vm2456, %v2440, %v2472
        %v2489 = vsel %vm2457, %v2441, %v2473
        %v2490 = vsel %vm2458, %v2442, %v2474
        %v2491 = vsel %vm2459, %v2443, %v2475
        %v2492 = vsel %vm2460, %v2444, %v2476
        %v2493 = vsel %vm2461, %v2445, %v2477
        %v2494 = vsel %vm2462, %v2446, %v2478
        %v2495 = vsel %vm2463, %v2447, %v2479
        %v2496 = vsel %vm2464, %v2448, %v2480
        %v2497 = vsel %vm2465, %v2449, %v2481
        %v2498 = vsel %vm2466, %v2450, %v2482
        %v2499 = vsel %vm2467, %v2451, %v2483
        %v2500 = vsel %vm2468, %v2452, %v2484
        %v2501 = vsel %vm2469, %v2453, %v2485
        %v2502 = vmul.f32 %v2486, 1.442695
        %v2503 = vpow.pop %v2502
        %v2504 = vmul.f32 %v2487, 1.442695
        %v2505 = vpow.pop %v2504
        %v2506 = vmul.f32 %v2488, 1.442695
        %v2507 = vpow.pop %v2506
        %v2508 = vmul.f32 %v2489, 1.442695
        %v2509 = vpow.pop %v2508
        %v2510 = vmul.f32 %v2490, 1.442695
        %v2511 = vpow.pop %v2510
        %v2512 = vmul.f32 %v2491, 1.442695
        %v2513 = vpow.pop %v2512
        %v2514 = vmul.f32 %v2492, 1.442695
        %v2515 = vpow.pop %v2514
        %v2516 = vmul.f32 %v2493, 1.442695
        %v2517 = vpow.pop %v2516
        %v2518 = vmul.f32 %v2494, 1.442695
        %v2519 = vpow.pop %v2518
        %v2520 = vmul.f32 %v2495, 1.442695
        %v2521 = vpow.pop %v2520
        %v2522 = vmul.f32 %v2496, 1.442695
        %v2523 = vpow.pop %v2522
        %v2524 = vmul.f32 %v2497, 1.442695
        %v2525 = vpow.pop %v2524
        %v2526 = vmul.f32 %v2498, 1.442695
        %v2527 = vpow.pop %v2526
        %v2528 = vmul.f32 %v2499, 1.442695
        %v2529 = vpow.pop %v2528
        %v2530 = vmul.f32 %v2500, 1.442695
        %v2531 = vpow.pop %v2530
        %v2532 = vmul.f32 %v2501, 1.442695
        %v2533 = vpow.pop %v2532
        %v2534 = vsel %vm1251, %v2503, 0.0
        %v2535 = vsel %vm1252, %v2505, 0.0
        %v2536 = vsel %vm1253, %v2507, 0.0
        %v2537 = vsel %vm1254, %v2509, 0.0
        %v2538 = vsel %vm1255, %v2511, 0.0
        %v2539 = vsel %vm1256, %v2513, 0.0
        %v2540 = vsel %vm1257, %v2515, 0.0
        %v2541 = vsel %vm1258, %v2517, 0.0
        %v2542 = vsel %vm1259, %v2519, 0.0
        %v2543 = vsel %vm1260, %v2521, 0.0
        %v2544 = vsel %vm1261, %v2523, 0.0
        %v2545 = vsel %vm1262, %v2525, 0.0
        %v2546 = vsel %vm1263, %v2527, 0.0
        %v2547 = vsel %vm1264, %v2529, 0.0
        %v2548 = vsel %vm1265, %v2531, 0.0
        %v2549 = vsel %vm1266, %v2533, 0.0
        %2550 = vmatprep.subr.mxu0 0.0
        %2551 = vmatpush1.msra.mxu0 %v1110
        %2552 = vmatprep.subr.mxu0 0.0
        %2553 = vmatpush1.msra.mxu0 %v1105
        %2554 = vmatprep.subr.mxu0 0.0
        %2555 = vmatpush1.msra.mxu0 %v1100
        %2556 = vmatprep.subr.mxu0 0.0
        %2557 = vmatpush1.msra.mxu0 %v1095
        %2558 = vmatprep.subr.mxu0 0.0
        %2559 = vmatpush1.msra.mxu0 %v1090
        %2560 = vmatprep.subr.mxu0 0.0
        %2561 = vmatpush1.msra.mxu0 %v1085
        %2562 = vmatprep.subr.mxu0 0.0
        %2563 = vmatpush1.msra.mxu0 %v1080
        %2564 = vmatprep.subr.mxu0 0.0
        %2565 = vmatpush1.msra.mxu0 %v1075
        %2566 = vmatprep.subr.mxu0 0.0
        %2567 = vmatpush1.msra.mxu0 %v1070
        %2568 = vmatprep.subr.mxu0 0.0
        %2569 = vmatpush1.msra.mxu0 %v1065
        %2570 = vmatprep.subr.mxu0 0.0
        %2571 = vmatpush1.msra.mxu0 %v1060
        %2572 = vmatprep.subr.mxu0 0.0
        %2573 = vmatpush1.msra.mxu0 %v1055
        %2574 = vmatprep.subr.mxu0 0.0
        %2575 = vmatpush1.msra.mxu0 %v1050
        %2576 = vmatprep.subr.mxu0 0.0
        %2577 = vmatpush1.msra.mxu0 %v1045
        %2578 = vmatprep.subr.mxu0 0.0
        %2579 = vmatpush1.msra.mxu0 %v1040
        %2580 = vmatprep.subr.mxu0 0.0
        %2581 = vmatpush1.msra.mxu0 %v1035
        %2582 = vmatprep.subr.mxu0 0.0
        %2583 = vmatpush2.msra.mxu0 0.0
        %2584 = vmatprep.subr.mxu0 0.0
        %2585 = vmatpush2.msra.mxu0 0.0
        %2586 = vmatprep.subr.mxu0 0.0
        %2587 = vmatpush2.msra.mxu0 0.0
        %2588 = vmatprep.subr.mxu0 0.0
        %2589 = vmatpush2.msra.mxu0 0.0
        %2590 = vmatprep.subr.mxu0 0.0
        %2591 = vmatpush2.msra.mxu0 0.0
        %2592 = vmatprep.subr.mxu0 0.0
        %2593 = vmatpush2.msra.mxu0 0.0
        %2594 = vmatprep.subr.mxu0 0.0
        %2595 = vmatpush2.msra.mxu0 0.0
        %2596 = vmatprep.subr.mxu0 0.0
        %2597 = vmatpush2.msra.mxu0 0.0
        %2598 = vmatprep.subr.mxu0 0.0
        %2599 = vmatpush2.msra.mxu0 0.0
        %2600 = vmatprep.subr.mxu0 0.0
        %2601 = vmatpush2.msra.mxu0 0.0
        %2602 = vmatprep.subr.mxu0 0.0
        %2603 = vmatpush2.msra.mxu0 0.0
        %2604 = vmatprep.subr.mxu0 0.0
        %2605 = vmatpush2.msra.mxu0 0.0
        %2606 = vmatprep.subr.mxu0 0.0
        %2607 = vmatpush2.msra.mxu0 0.0
        %2608 = vmatprep.subr.mxu0 0.0
        %2609 = vmatpush2.msra.mxu0 0.0
        %2610 = vmatprep.subr.mxu0 0.0
        %2611 = vmatpush2.msra.mxu0 0.0
        %2612 = vmatprep.subr.mxu0 0.0
        %2613 = vmatpush2.msra.mxu0 0.0
        %2614 = vmatprep.mubr.f32.mxu0 0.0
        %2615 = vmatmul.mubr.f32.gmra.mxu0 %v2534
        %v2616 = vpop.f32.mrf.mxu0
        %v2617 = vadd.f32 0.0, %v2616
        %v2618 = vpop.f32.mrf.mxu0
        %2619 = vmatprep.mubr.f32.mxu0 0.0
        %2620 = vmatmul.mubr.f32.gmra.mxu0 %v2535
        %v2621 = vpop.f32.mrf.mxu0
        %v2622 = vadd.f32 0.0, %v2621
        %v2623 = vpop.f32.mrf.mxu0
        %2624 = vmatprep.mubr.f32.mxu0 0.0
        %2625 = vmatmul.mubr.f32.gmra.mxu0 %v2536
        %v2626 = vpop.f32.mrf.mxu0
        %v2627 = vadd.f32 0.0, %v2626
        %v2628 = vpop.f32.mrf.mxu0
        %2629 = vmatprep.mubr.f32.mxu0 0.0
        %2630 = vmatmul.mubr.f32.gmra.mxu0 %v2537
        %v2631 = vpop.f32.mrf.mxu0
        %v2632 = vadd.f32 0.0, %v2631
        %v2633 = vpop.f32.mrf.mxu0
        %2634 = vmatprep.mubr.f32.mxu0 0.0
        %2635 = vmatmul.mubr.f32.gmra.mxu0 %v2538
        %v2636 = vpop.f32.mrf.mxu0
        %v2637 = vadd.f32 0.0, %v2636
        %v2638 = vpop.f32.mrf.mxu0
        %2639 = vmatprep.mubr.f32.mxu0 0.0
        %2640 = vmatmul.mubr.f32.gmra.mxu0 %v2539
        %v2641 = vpop.f32.mrf.mxu0
        %v2642 = vadd.f32 0.0, %v2641
        %v2643 = vpop.f32.mrf.mxu0
        %2644 = vmatprep.mubr.f32.mxu0 0.0
        %2645 = vmatmul.mubr.f32.gmra.mxu0 %v2540
        %v2646 = vpop.f32.mrf.mxu0
        %v2647 = vadd.f32 0.0, %v2646
        %v2648 = vpop.f32.mrf.mxu0
        %2649 = vmatprep.mubr.f32.mxu0 0.0
        %2650 = vmatmul.mubr.f32.gmra.mxu0 %v2541
        %v2651 = vpop.f32.mrf.mxu0
        %v2652 = vadd.f32 0.0, %v2651
        %v2653 = vpop.f32.mrf.mxu0
        %2654 = vmatprep.mubr.f32.mxu0 0.0
        %2655 = vmatmul.mubr.f32.gmra.mxu0 %v2542
        %v2656 = vpop.f32.mrf.mxu0
        %v2657 = vadd.f32 0.0, %v2656
        %v2658 = vpop.f32.mrf.mxu0
        %2659 = vmatprep.mubr.f32.mxu0 0.0
        %2660 = vmatmul.mubr.f32.gmra.mxu0 %v2543
        %v2661 = vpop.f32.mrf.mxu0
        %v2662 = vadd.f32 0.0, %v2661
        %v2663 = vpop.f32.mrf.mxu0
        %2664 = vmatprep.mubr.f32.mxu0 0.0
        %2665 = vmatmul.mubr.f32.gmra.mxu0 %v2544
        %v2666 = vpop.f32.mrf.mxu0
        %v2667 = vadd.f32 0.0, %v2666
        %v2668 = vpop.f32.mrf.mxu0
        %2669 = vmatprep.mubr.f32.mxu0 0.0
        %2670 = vmatmul.mubr.f32.gmra.mxu0 %v2545
        %v2671 = vpop.f32.mrf.mxu0
        %v2672 = vadd.f32 0.0, %v2671
        %v2673 = vpop.f32.mrf.mxu0
        %2674 = vmatprep.mubr.f32.mxu0 0.0
        %2675 = vmatmul.mubr.f32.gmra.mxu0 %v2546
        %v2676 = vpop.f32.mrf.mxu0
        %v2677 = vadd.f32 0.0, %v2676
        %v2678 = vpop.f32.mrf.mxu0
        %2679 = vmatprep.mubr.f32.mxu0 0.0
        %2680 = vmatmul.mubr.f32.gmra.mxu0 %v2547
        %v2681 = vpop.f32.mrf.mxu0
        %v2682 = vadd.f32 0.0, %v2681
        %v2683 = vpop.f32.mrf.mxu0
        %2684 = vmatprep.mubr.f32.mxu0 0.0
        %2685 = vmatmul.mubr.f32.gmra.mxu0 %v2548
        %v2686 = vpop.f32.mrf.mxu0
        %v2687 = vadd.f32 0.0, %v2686
        %v2688 = vpop.f32.mrf.mxu0
        %2689 = vmatprep.mubr.f32.mxu0 0.0
        %2690 = vmatmul.mubr.f32.gmra.mxu0 %v2549
        %v2691 = vpop.f32.mrf.mxu0
        %v2692 = vadd.f32 0.0, %v2691
        %v2693 = vpop.f32.mrf.mxu0
        %2694 = vdwg.mxu0
        %2695 = vadd.xlane.f32.xlu0 %v2534
        %v2696 = vpop.xlane.xlu0 %2695
        %2697 = vadd.xlane.f32.xlu0 %v2535
        %v2698 = vpop.xlane.xlu0 %2697
        %2699 = vadd.xlane.f32.xlu0 %v2536
        %v2700 = vpop.xlane.xlu0 %2699
        %2701 = vadd.xlane.f32.xlu0 %v2537
        %v2702 = vpop.xlane.xlu0 %2701
        %2703 = vadd.xlane.f32.xlu0 %v2538
        %v2704 = vpop.xlane.xlu0 %2703
        %2705 = vadd.xlane.f32.xlu0 %v2539
        %v2706 = vpop.xlane.xlu0 %2705
        %2707 = vadd.xlane.f32.xlu0 %v2540
        %v2708 = vpop.xlane.xlu0 %2707
        %2709 = vadd.xlane.f32.xlu0 %v2541
        %v2710 = vpop.xlane.xlu0 %2709
        %2711 = vadd.xlane.f32.xlu0 %v2542
        %v2712 = vpop.xlane.xlu0 %2711
        %2713 = vadd.xlane.f32.xlu0 %v2543
        %v2714 = vpop.xlane.xlu0 %2713
        %2715 = vadd.xlane.f32.xlu0 %v2544
        %v2716 = vpop.xlane.xlu0 %2715
        %2717 = vadd.xlane.f32.xlu0 %v2545
        %v2718 = vpop.xlane.xlu0 %2717
        %2719 = vadd.xlane.f32.xlu0 %v2546
        %v2720 = vpop.xlane.xlu0 %2719
        %2721 = vadd.xlane.f32.xlu0 %v2547
        %v2722 = vpop.xlane.xlu0 %2721
        %2723 = vadd.xlane.f32.xlu0 %v2548
        %v2724 = vpop.xlane.xlu0 %2723
        %2725 = vadd.xlane.f32.xlu0 %v2549
        %v2726 = vpop.xlane.xlu0 %2725
        %v2727 = vld [vmem:[#allocation3] sm:$0xff]
        %v2728 = vld [vmem:[#allocation3 + $0x8] sm:$0xff]
        %v2729 = vld [vmem:[#allocation3 + $0x10] sm:$0xff]
        %v2730 = vld [vmem:[#allocation3 + $0x18] sm:$0xff]
        %v2731 = vld [vmem:[#allocation3 + $0x20] sm:$0xff]
        %v2732 = vld [vmem:[#allocation3 + $0x28] sm:$0xff]
        %v2733 = vld [vmem:[#allocation3 + $0x30] sm:$0xff]
        %v2734 = vld [vmem:[#allocation3 + $0x38] sm:$0xff]
        %v2735 = vld [vmem:[#allocation3 + $0x40] sm:$0xff]
        %v2736 = vld [vmem:[#allocation3 + $0x48] sm:$0xff]
        %v2737 = vld [vmem:[#allocation3 + $0x50] sm:$0xff]
        %v2738 = vld [vmem:[#allocation3 + $0x58] sm:$0xff]
        %v2739 = vld [vmem:[#allocation3 + $0x60] sm:$0xff]
        %v2740 = vld [vmem:[#allocation3 + $0x68] sm:$0xff]
        %v2741 = vld [vmem:[#allocation3 + $0x70] sm:$0xff]
        %v2742 = vld [vmem:[#allocation3 + $0x78] sm:$0xff]
        %2759 = vrot.lane.b32.xlu0 %v1903, 32
        %v2760 = vpop.permute.xlu0 %2759
        %2761 = vrot.lane.b32.xlu0 %v1908, 32
        %v2762 = vpop.permute.xlu0 %2761
        %2763 = vrot.lane.b32.xlu0 %v1913, 32
        %v2764 = vpop.permute.xlu0 %2763
        %2765 = vrot.lane.b32.xlu0 %v1918, 32
        %v2766 = vpop.permute.xlu0 %2765
        %2767 = vrot.lane.b32.xlu0 %v1923, 32
        %v2768 = vpop.permute.xlu0 %2767
        %2769 = vrot.lane.b32.xlu0 %v1928, 32
        %v2770 = vpop.permute.xlu0 %2769
        %2771 = vrot.lane.b32.xlu0 %v1933, 32
        %v2772 = vpop.permute.xlu0 %2771
        %2773 = vrot.lane.b32.xlu0 %v1938, 32
        %v2774 = vpop.permute.xlu0 %2773
        %2775 = vrot.lane.b32.xlu0 %v1943, 32
        %v2776 = vpop.permute.xlu0 %2775
        %2777 = vrot.lane.b32.xlu0 %v1948, 32
        %v2778 = vpop.permute.xlu0 %2777
        %2779 = vrot.lane.b32.xlu0 %v1953, 32
        %v2780 = vpop.permute.xlu0 %2779
        %2781 = vrot.lane.b32.xlu0 %v1958, 32
        %v2782 = vpop.permute.xlu0 %2781
        %2783 = vrot.lane.b32.xlu0 %v1963, 32
        %v2784 = vpop.permute.xlu0 %2783
        %2785 = vrot.lane.b32.xlu0 %v1968, 32
        %v2786 = vpop.permute.xlu0 %2785
        %2787 = vrot.lane.b32.xlu0 %v1973, 32
        %v2788 = vpop.permute.xlu0 %2787
        %2789 = vrot.lane.b32.xlu0 %v1978, 32
        %v2790 = vpop.permute.xlu0 %2789
        %2823 = vrot.lane.b32.xlu0 %v2260, 64
        %v2824 = vpop.permute.xlu0 %2823
        %2825 = vrot.lane.b32.xlu0 %v2265, 64
        %v2826 = vpop.permute.xlu0 %2825
        %2827 = vrot.lane.b32.xlu0 %v2270, 64
        %v2828 = vpop.permute.xlu0 %2827
        %2829 = vrot.lane.b32.xlu0 %v2275, 64
        %v2830 = vpop.permute.xlu0 %2829
        %2831 = vrot.lane.b32.xlu0 %v2280, 64
        %v2832 = vpop.permute.xlu0 %2831
        %2833 = vrot.lane.b32.xlu0 %v2285, 64
        %v2834 = vpop.permute.xlu0 %2833
        %2835 = vrot.lane.b32.xlu0 %v2290, 64
        %v2836 = vpop.permute.xlu0 %2835
        %2837 = vrot.lane.b32.xlu0 %v2295, 64
        %v2838 = vpop.permute.xlu0 %2837
        %2839 = vrot.lane.b32.xlu0 %v2300, 64
        %v2840 = vpop.permute.xlu0 %2839
        %2841 = vrot.lane.b32.xlu0 %v2305, 64
        %v2842 = vpop.permute.xlu0 %2841
        %2843 = vrot.lane.b32.xlu0 %v2310, 64
        %v2844 = vpop.permute.xlu0 %2843
        %2845 = vrot.lane.b32.xlu0 %v2315, 64
        %v2846 = vpop.permute.xlu0 %2845
        %2847 = vrot.lane.b32.xlu0 %v2320, 64
        %v2848 = vpop.permute.xlu0 %2847
        %2849 = vrot.lane.b32.xlu0 %v2325, 64
        %v2850 = vpop.permute.xlu0 %2849
        %2851 = vrot.lane.b32.xlu0 %v2330, 64
        %v2852 = vpop.permute.xlu0 %2851
        %2853 = vrot.lane.b32.xlu0 %v2335, 64
        %v2854 = vpop.permute.xlu0 %2853
        %2887 = vrot.lane.b32.xlu0 %v2617, 96
        %v2888 = vpop.permute.xlu0 %2887
        %2889 = vrot.lane.b32.xlu0 %v2622, 96
        %v2890 = vpop.permute.xlu0 %2889
        %2891 = vrot.lane.b32.xlu0 %v2627, 96
        %v2892 = vpop.permute.xlu0 %2891
        %2893 = vrot.lane.b32.xlu0 %v2632, 96
        %v2894 = vpop.permute.xlu0 %2893
        %2895 = vrot.lane.b32.xlu0 %v2637, 96
        %v2896 = vpop.permute.xlu0 %2895
        %2897 = vrot.lane.b32.xlu0 %v2642, 96
        %v2898 = vpop.permute.xlu0 %2897
        %2899 = vrot.lane.b32.xlu0 %v2647, 96
        %v2900 = vpop.permute.xlu0 %2899
        %2901 = vrot.lane.b32.xlu0 %v2652, 96
        %v2902 = vpop.permute.xlu0 %2901
        %2903 = vrot.lane.b32.xlu0 %v2657, 96
        %v2904 = vpop.permute.xlu0 %2903
        %2905 = vrot.lane.b32.xlu0 %v2662, 96
        %v2906 = vpop.permute.xlu0 %2905
        %2907 = vrot.lane.b32.xlu0 %v2667, 96
        %v2908 = vpop.permute.xlu0 %2907
        %2909 = vrot.lane.b32.xlu0 %v2672, 96
        %v2910 = vpop.permute.xlu0 %2909
        %2911 = vrot.lane.b32.xlu0 %v2677, 96
        %v2912 = vpop.permute.xlu0 %2911
        %2913 = vrot.lane.b32.xlu0 %v2682, 96
        %v2914 = vpop.permute.xlu0 %2913
        %2915 = vrot.lane.b32.xlu0 %v2687, 96
        %v2916 = vpop.permute.xlu0 %2915
        %2917 = vrot.lane.b32.xlu0 %v2692, 96
        %v2918 = vpop.permute.xlu0 %2917
        %v2935 = vsel %vm919, %v1546, %v2760
        %v2936 = vsel %vm919, %v1551, %v2762
        %v2937 = vsel %vm919, %v1556, %v2764
        %v2938 = vsel %vm919, %v1561, %v2766
        %v2939 = vsel %vm919, %v1566, %v2768
        %v2940 = vsel %vm919, %v1571, %v2770
        %v2941 = vsel %vm919, %v1576, %v2772
        %v2942 = vsel %vm919, %v1581, %v2774
        %v2943 = vsel %vm919, %v1586, %v2776
        %v2944 = vsel %vm919, %v1591, %v2778
        %v2945 = vsel %vm919, %v1596, %v2780
        %v2946 = vsel %vm919, %v1601, %v2782
        %v2947 = vsel %vm919, %v1606, %v2784
        %v2948 = vsel %vm919, %v1611, %v2786
        %v2949 = vsel %vm919, %v1616, %v2788
        %v2950 = vsel %vm919, %v1621, %v2790
        %vm2951 = vcmask 523264
        %v2952 = vsel %vm2951, %v2935, %v2824
        %v2953 = vsel %vm2951, %v2936, %v2826
        %v2954 = vsel %vm2951, %v2937, %v2828
        %v2955 = vsel %vm2951, %v2938, %v2830
        %v2956 = vsel %vm2951, %v2939, %v2832
        %v2957 = vsel %vm2951, %v2940, %v2834
        %v2958 = vsel %vm2951, %v2941, %v2836
        %v2959 = vsel %vm2951, %v2942, %v2838
        %v2960 = vsel %vm2951, %v2943, %v2840
        %v2961 = vsel %vm2951, %v2944, %v2842
        %v2962 = vsel %vm2951, %v2945, %v2844
        %v2963 = vsel %vm2951, %v2946, %v2846
        %v2964 = vsel %vm2951, %v2947, %v2848
        %v2965 = vsel %vm2951, %v2948, %v2850
        %v2966 = vsel %vm2951, %v2949, %v2852
        %v2967 = vsel %vm2951, %v2950, %v2854
        %vm2968 = vcmask 785408
        %v2969 = vsel %vm2968, %v2952, %v2888
        %v2970 = vsel %vm2968, %v2953, %v2890
        %v2971 = vsel %vm2968, %v2954, %v2892
        %v2972 = vsel %vm2968, %v2955, %v2894
        %v2973 = vsel %vm2968, %v2956, %v2896
        %v2974 = vsel %vm2968, %v2957, %v2898
        %v2975 = vsel %vm2968, %v2958, %v2900
        %v2976 = vsel %vm2968, %v2959, %v2902
        %v2977 = vsel %vm2968, %v2960, %v2904
        %v2978 = vsel %vm2968, %v2961, %v2906
        %v2979 = vsel %vm2968, %v2962, %v2908
        %v2980 = vsel %vm2968, %v2963, %v2910
        %v2981 = vsel %vm2968, %v2964, %v2912
        %v2982 = vsel %vm2968, %v2965, %v2914
        %v2983 = vsel %vm2968, %v2966, %v2916
        %v2984 = vsel %vm2968, %v2967, %v2918
        %v2985 = vadd.f32 %v2727, %v2969
        %v2986 = vadd.f32 %v2728, %v2970
        %v2987 = vadd.f32 %v2729, %v2971
        %v2988 = vadd.f32 %v2730, %v2972
        %v2989 = vadd.f32 %v2731, %v2973
        %v2990 = vadd.f32 %v2732, %v2974
        %v2991 = vadd.f32 %v2733, %v2975
        %v2992 = vadd.f32 %v2734, %v2976
        %v2993 = vadd.f32 %v2735, %v2977
        %v2994 = vadd.f32 %v2736, %v2978
        %v2995 = vadd.f32 %v2737, %v2979
        %v2996 = vadd.f32 %v2738, %v2980
        %v2997 = vadd.f32 %v2739, %v2981
        %v2998 = vadd.f32 %v2740, %v2982
        %v2999 = vadd.f32 %v2741, %v2983
        %v3000 = vadd.f32 %v2742, %v2984
        %3001 = vst [vmem:[#allocation3] sm:$0xff] %v2985
        %3002 = vst [vmem:[#allocation3 + $0x8] sm:$0xff] %v2986
        %3003 = vst [vmem:[#allocation3 + $0x10] sm:$0xff] %v2987
        %3004 = vst [vmem:[#allocation3 + $0x18] sm:$0xff] %v2988
        %3005 = vst [vmem:[#allocation3 + $0x20] sm:$0xff] %v2989
        %3006 = vst [vmem:[#allocation3 + $0x28] sm:$0xff] %v2990
        %3007 = vst [vmem:[#allocation3 + $0x30] sm:$0xff] %v2991
        %3008 = vst [vmem:[#allocation3 + $0x38] sm:$0xff] %v2992
        %3009 = vst [vmem:[#allocation3 + $0x40] sm:$0xff] %v2993
        %3010 = vst [vmem:[#allocation3 + $0x48] sm:$0xff] %v2994
        %3011 = vst [vmem:[#allocation3 + $0x50] sm:$0xff] %v2995
        %3012 = vst [vmem:[#allocation3 + $0x58] sm:$0xff] %v2996
        %3013 = vst [vmem:[#allocation3 + $0x60] sm:$0xff] %v2997
        %3014 = vst [vmem:[#allocation3 + $0x68] sm:$0xff] %v2998
        %3015 = vst [vmem:[#allocation3 + $0x70] sm:$0xff] %v2999
        %3016 = vst [vmem:[#allocation3 + $0x78] sm:$0xff] %v3000
        %v3017 = vld [vmem:[#allocation4] sm:$0xff]
        %v3018 = vld [vmem:[#allocation4 + $0x8] sm:$0xff]
        %v3019 = vld [vmem:[#allocation4 + $0x10] sm:$0xff]
        %v3020 = vld [vmem:[#allocation4 + $0x18] sm:$0xff]
        %v3021 = vld [vmem:[#allocation4 + $0x20] sm:$0xff]
        %v3022 = vld [vmem:[#allocation4 + $0x28] sm:$0xff]
        %v3023 = vld [vmem:[#allocation4 + $0x30] sm:$0xff]
        %v3024 = vld [vmem:[#allocation4 + $0x38] sm:$0xff]
        %v3025 = vld [vmem:[#allocation4 + $0x40] sm:$0xff]
        %v3026 = vld [vmem:[#allocation4 + $0x48] sm:$0xff]
        %v3027 = vld [vmem:[#allocation4 + $0x50] sm:$0xff]
        %v3028 = vld [vmem:[#allocation4 + $0x58] sm:$0xff]
        %v3029 = vld [vmem:[#allocation4 + $0x60] sm:$0xff]
        %v3030 = vld [vmem:[#allocation4 + $0x68] sm:$0xff]
        %v3031 = vld [vmem:[#allocation4 + $0x70] sm:$0xff]
        %v3032 = vld [vmem:[#allocation4 + $0x78] sm:$0xff]
        %vm3033 = vcmask 7168
        %v3034 = vsel %vm3033, %v1625, %v1982
        %v3035 = vsel %vm3033, %v1627, %v1984
        %v3036 = vsel %vm3033, %v1629, %v1986
        %v3037 = vsel %vm3033, %v1631, %v1988
        %v3038 = vsel %vm3033, %v1633, %v1990
        %v3039 = vsel %vm3033, %v1635, %v1992
        %v3040 = vsel %vm3033, %v1637, %v1994
        %v3041 = vsel %vm3033, %v1639, %v1996
        %v3042 = vsel %vm3033, %v1641, %v1998
        %v3043 = vsel %vm3033, %v1643, %v2000
        %v3044 = vsel %vm3033, %v1645, %v2002
        %v3045 = vsel %vm3033, %v1647, %v2004
        %v3046 = vsel %vm3033, %v1649, %v2006
        %v3047 = vsel %vm3033, %v1651, %v2008
        %v3048 = vsel %vm3033, %v1653, %v2010
        %v3049 = vsel %vm3033, %v1655, %v2012
        %vm3050 = vcmask 15360
        %v3051 = vsel %vm3050, %v3034, %v2339
        %v3052 = vsel %vm3050, %v3035, %v2341
        %v3053 = vsel %vm3050, %v3036, %v2343
        %v3054 = vsel %vm3050, %v3037, %v2345
        %v3055 = vsel %vm3050, %v3038, %v2347
        %v3056 = vsel %vm3050, %v3039, %v2349
        %v3057 = vsel %vm3050, %v3040, %v2351
        %v3058 = vsel %vm3050, %v3041, %v2353
        %v3059 = vsel %vm3050, %v3042, %v2355
        %v3060 = vsel %vm3050, %v3043, %v2357
        %v3061 = vsel %vm3050, %v3044, %v2359
        %v3062 = vsel %vm3050, %v3045, %v2361
        %v3063 = vsel %vm3050, %v3046, %v2363
        %v3064 = vsel %vm3050, %v3047, %v2365
        %v3065 = vsel %vm3050, %v3048, %v2367
        %v3066 = vsel %vm3050, %v3049, %v2369
        %vm3067 = vcmask 23552
        %v3068 = vsel %vm3067, %v3051, %v2696
        %v3069 = vsel %vm3067, %v3052, %v2698
        %v3070 = vsel %vm3067, %v3053, %v2700
        %v3071 = vsel %vm3067, %v3054, %v2702
        %v3072 = vsel %vm3067, %v3055, %v2704
        %v3073 = vsel %vm3067, %v3056, %v2706
        %v3074 = vsel %vm3067, %v3057, %v2708
        %v3075 = vsel %vm3067, %v3058, %v2710
        %v3076 = vsel %vm3067, %v3059, %v2712
        %v3077 = vsel %vm3067, %v3060, %v2714
        %v3078 = vsel %vm3067, %v3061, %v2716
        %v3079 = vsel %vm3067, %v3062, %v2718
        %v3080 = vsel %vm3067, %v3063, %v2720
        %v3081 = vsel %vm3067, %v3064, %v2722
        %v3082 = vsel %vm3067, %v3065, %v2724
        %v3083 = vsel %vm3067, %v3066, %v2726
        %v3084 = vadd.f32 %v3017, %v3068
        %v3085 = vadd.f32 %v3018, %v3069
        %v3086 = vadd.f32 %v3019, %v3070
        %v3087 = vadd.f32 %v3020, %v3071
        %v3088 = vadd.f32 %v3021, %v3072
        %v3089 = vadd.f32 %v3022, %v3073
        %v3090 = vadd.f32 %v3023, %v3074
        %v3091 = vadd.f32 %v3024, %v3075
        %v3092 = vadd.f32 %v3025, %v3076
        %v3093 = vadd.f32 %v3026, %v3077
        %v3094 = vadd.f32 %v3027, %v3078
        %v3095 = vadd.f32 %v3028, %v3079
        %v3096 = vadd.f32 %v3029, %v3080
        %v3097 = vadd.f32 %v3030, %v3081
        %v3098 = vadd.f32 %v3031, %v3082
        %v3099 = vadd.f32 %v3032, %v3083
        %vm3100 = vcmask 31744
        %3101 = vst.msk [vmem:[#allocation4] sm:$0xff] %vm3100, %v3084
        %3102 = vst.msk [vmem:[#allocation4 + $0x8] sm:$0xff] %vm3100, %v3085
        %3103 = vst.msk [vmem:[#allocation4 + $0x10] sm:$0xff] %vm3100, %v3086
        %3104 = vst.msk [vmem:[#allocation4 + $0x18] sm:$0xff] %vm3100, %v3087
        %3105 = vst.msk [vmem:[#allocation4 + $0x20] sm:$0xff] %vm3100, %v3088
        %3106 = vst.msk [vmem:[#allocation4 + $0x28] sm:$0xff] %vm3100, %v3089
        %3107 = vst.msk [vmem:[#allocation4 + $0x30] sm:$0xff] %vm3100, %v3090
        %3108 = vst.msk [vmem:[#allocation4 + $0x38] sm:$0xff] %vm3100, %v3091
        %3109 = vst.msk [vmem:[#allocation4 + $0x40] sm:$0xff] %vm3100, %v3092
        %3110 = vst.msk [vmem:[#allocation4 + $0x48] sm:$0xff] %vm3100, %v3093
        %3111 = vst.msk [vmem:[#allocation4 + $0x50] sm:$0xff] %vm3100, %v3094
        %3112 = vst.msk [vmem:[#allocation4 + $0x58] sm:$0xff] %vm3100, %v3095
        %3113 = vst.msk [vmem:[#allocation4 + $0x60] sm:$0xff] %vm3100, %v3096
        %3114 = vst.msk [vmem:[#allocation4 + $0x68] sm:$0xff] %vm3100, %v3097
        %3115 = vst.msk [vmem:[#allocation4 + $0x70] sm:$0xff] %vm3100, %v3098
        %3116 = vst.msk [vmem:[#allocation4 + $0x78] sm:$0xff] %vm3100, %v3099
        %p3117 = scmp.eq.s32.totalorder %s26, 1
        // Predicated region
        $region91: #{tpu_custom_call.1} parent=81 // pred_check
          %p3118 = pneg %p3117
        $region92: #{tpu_custom_call.1} parent=81 // pred_check_branch
          %3120 = sbr.rel (%p3118) target = $region94
        $region93: #{tpu_custom_call.1} parent=81 // pred_region
          %v3121 = vld [vmem:[#allocation3] sm:$0xff]
          %v3122 = vld [vmem:[#allocation3 + $0x8] sm:$0xff]
          %v3123 = vld [vmem:[#allocation3 + $0x10] sm:$0xff]
          %v3124 = vld [vmem:[#allocation3 + $0x18] sm:$0xff]
          %v3125 = vld [vmem:[#allocation3 + $0x20] sm:$0xff]
          %v3126 = vld [vmem:[#allocation3 + $0x28] sm:$0xff]
          %v3127 = vld [vmem:[#allocation3 + $0x30] sm:$0xff]
          %v3128 = vld [vmem:[#allocation3 + $0x38] sm:$0xff]
          %v3129 = vld [vmem:[#allocation3 + $0x40] sm:$0xff]
          %v3130 = vld [vmem:[#allocation3 + $0x48] sm:$0xff]
          %v3131 = vld [vmem:[#allocation3 + $0x50] sm:$0xff]
          %v3132 = vld [vmem:[#allocation3 + $0x58] sm:$0xff]
          %v3133 = vld [vmem:[#allocation3 + $0x60] sm:$0xff]
          %v3134 = vld [vmem:[#allocation3 + $0x68] sm:$0xff]
          %v3135 = vld [vmem:[#allocation3 + $0x70] sm:$0xff]
          %v3136 = vld [vmem:[#allocation3 + $0x78] sm:$0xff]
          %v3137 = vld [vmem:[#allocation4] sm:$0xff]
          %v3138 = vld [vmem:[#allocation4 + $0x8] sm:$0xff]
          %v3139 = vld [vmem:[#allocation4 + $0x10] sm:$0xff]
          %v3140 = vld [vmem:[#allocation4 + $0x18] sm:$0xff]
          %v3141 = vld [vmem:[#allocation4 + $0x20] sm:$0xff]
          %v3142 = vld [vmem:[#allocation4 + $0x28] sm:$0xff]
          %v3143 = vld [vmem:[#allocation4 + $0x30] sm:$0xff]
          %v3144 = vld [vmem:[#allocation4 + $0x38] sm:$0xff]
          %v3145 = vld [vmem:[#allocation4 + $0x40] sm:$0xff]
          %v3146 = vld [vmem:[#allocation4 + $0x48] sm:$0xff]
          %v3147 = vld [vmem:[#allocation4 + $0x50] sm:$0xff]
          %v3148 = vld [vmem:[#allocation4 + $0x58] sm:$0xff]
          %v3149 = vld [vmem:[#allocation4 + $0x60] sm:$0xff]
          %v3150 = vld [vmem:[#allocation4 + $0x68] sm:$0xff]
          %v3151 = vld [vmem:[#allocation4 + $0x70] sm:$0xff]
          %v3152 = vld [vmem:[#allocation4 + $0x78] sm:$0xff]
          %v3153 = vmax.f32 %v3137, 1e-12
          %v3154 = vmax.f32 %v3138, 1e-12
          %v3155 = vmax.f32 %v3139, 1e-12
          %v3156 = vmax.f32 %v3140, 1e-12
          %v3157 = vmax.f32 %v3141, 1e-12
          %v3158 = vmax.f32 %v3142, 1e-12
          %v3159 = vmax.f32 %v3143, 1e-12
          %v3160 = vmax.f32 %v3144, 1e-12
          %v3161 = vmax.f32 %v3145, 1e-12
          %v3162 = vmax.f32 %v3146, 1e-12
          %v3163 = vmax.f32 %v3147, 1e-12
          %v3164 = vmax.f32 %v3148, 1e-12
          %v3165 = vmax.f32 %v3149, 1e-12
          %v3166 = vmax.f32 %v3150, 1e-12
          %v3167 = vmax.f32 %v3151, 1e-12
          %v3168 = vmax.f32 %v3152, 1e-12
          %3170 = vset.pattern.permute.xlu0 0
          %3171 = vperm.xlu0 %3170, %v3153
          %v3172 = vpop.permute.xlu0 %3171
          %3175 = vset.pattern.permute.xlu0 0
          %3176 = vperm.xlu0 %3175, %v3154
          %v3177 = vpop.permute.xlu0 %3176
          %3180 = vset.pattern.permute.xlu0 0
          %3181 = vperm.xlu0 %3180, %v3155
          %v3182 = vpop.permute.xlu0 %3181
          %3185 = vset.pattern.permute.xlu0 0
          %3186 = vperm.xlu0 %3185, %v3156
          %v3187 = vpop.permute.xlu0 %3186
          %3190 = vset.pattern.permute.xlu0 0
          %3191 = vperm.xlu0 %3190, %v3157
          %v3192 = vpop.permute.xlu0 %3191
          %3195 = vset.pattern.permute.xlu0 0
          %3196 = vperm.xlu0 %3195, %v3158
          %v3197 = vpop.permute.xlu0 %3196
          %3200 = vset.pattern.permute.xlu0 0
          %3201 = vperm.xlu0 %3200, %v3159
          %v3202 = vpop.permute.xlu0 %3201
          %3205 = vset.pattern.permute.xlu0 0
          %3206 = vperm.xlu0 %3205, %v3160
          %v3207 = vpop.permute.xlu0 %3206
          %3210 = vset.pattern.permute.xlu0 0
          %3211 = vperm.xlu0 %3210, %v3161
          %v3212 = vpop.permute.xlu0 %3211
          %3215 = vset.pattern.permute.xlu0 0
          %3216 = vperm.xlu0 %3215, %v3162
          %v3217 = vpop.permute.xlu0 %3216
          %3220 = vset.pattern.permute.xlu0 0
          %3221 = vperm.xlu0 %3220, %v3163
          %v3222 = vpop.permute.xlu0 %3221
          %3225 = vset.pattern.permute.xlu0 0
          %3226 = vperm.xlu0 %3225, %v3164
          %v3227 = vpop.permute.xlu0 %3226
          %3230 = vset.pattern.permute.xlu0 0
          %3231 = vperm.xlu0 %3230, %v3165
          %v3232 = vpop.permute.xlu0 %3231
          %3235 = vset.pattern.permute.xlu0 0
          %3236 = vperm.xlu0 %3235, %v3166
          %v3237 = vpop.permute.xlu0 %3236
          %3240 = vset.pattern.permute.xlu0 0
          %3241 = vperm.xlu0 %3240, %v3167
          %v3242 = vpop.permute.xlu0 %3241
          %3245 = vset.pattern.permute.xlu0 0
          %3246 = vperm.xlu0 %3245, %v3168
          %v3247 = vpop.permute.xlu0 %3246
          %v3249 = vrcp.pop %v3172
          %v3250 = vmul.f32 %v3121, %v3249
          %v3251 = vrcp.pop %v3177
          %v3252 = vmul.f32 %v3122, %v3251
          %v3253 = vrcp.pop %v3182
          %v3254 = vmul.f32 %v3123, %v3253
          %v3255 = vrcp.pop %v3187
          %v3256 = vmul.f32 %v3124, %v3255
          %v3257 = vrcp.pop %v3192
          %v3258 = vmul.f32 %v3125, %v3257
          %v3259 = vrcp.pop %v3197
          %v3260 = vmul.f32 %v3126, %v3259
          %v3261 = vrcp.pop %v3202
          %v3262 = vmul.f32 %v3127, %v3261
          %v3263 = vrcp.pop %v3207
          %v3264 = vmul.f32 %v3128, %v3263
          %v3265 = vrcp.pop %v3212
          %v3266 = vmul.f32 %v3129, %v3265
          %v3267 = vrcp.pop %v3217
          %v3268 = vmul.f32 %v3130, %v3267
          %v3269 = vrcp.pop %v3222
          %v3270 = vmul.f32 %v3131, %v3269
          %v3271 = vrcp.pop %v3227
          %v3272 = vmul.f32 %v3132, %v3271
          %v3273 = vrcp.pop %v3232
          %v3274 = vmul.f32 %v3133, %v3273
          %v3275 = vrcp.pop %v3237
          %v3276 = vmul.f32 %v3134, %v3275
          %v3277 = vrcp.pop %v3242
          %v3278 = vmul.f32 %v3135, %v3277
          %v3279 = vrcp.pop %v3247
          %v3280 = vmul.f32 %v3136, %v3279
          %3281 = vset.pattern.permute.xlu0 1
          %3282 = vperm.xlu0 %3281, %v3153
          %v3283 = vpop.permute.xlu0 %3282
          %3285 = vset.pattern.permute.xlu0 1
          %3286 = vperm.xlu0 %3285, %v3154
          %v3287 = vpop.permute.xlu0 %3286
          %3289 = vset.pattern.permute.xlu0 1
          %3290 = vperm.xlu0 %3289, %v3155
          %v3291 = vpop.permute.xlu0 %3290
          %3293 = vset.pattern.permute.xlu0 1
          %3294 = vperm.xlu0 %3293, %v3156
          %v3295 = vpop.permute.xlu0 %3294
          %3297 = vset.pattern.permute.xlu0 1
          %3298 = vperm.xlu0 %3297, %v3157
          %v3299 = vpop.permute.xlu0 %3298
          %3301 = vset.pattern.permute.xlu0 1
          %3302 = vperm.xlu0 %3301, %v3158
          %v3303 = vpop.permute.xlu0 %3302
          %3305 = vset.pattern.permute.xlu0 1
          %3306 = vperm.xlu0 %3305, %v3159
          %v3307 = vpop.permute.xlu0 %3306
          %3309 = vset.pattern.permute.xlu0 1
          %3310 = vperm.xlu0 %3309, %v3160
          %v3311 = vpop.permute.xlu0 %3310
          %3313 = vset.pattern.permute.xlu0 1
          %3314 = vperm.xlu0 %3313, %v3161
          %v3315 = vpop.permute.xlu0 %3314
          %3317 = vset.pattern.permute.xlu0 1
          %3318 = vperm.xlu0 %3317, %v3162
          %v3319 = vpop.permute.xlu0 %3318
          %3321 = vset.pattern.permute.xlu0 1
          %3322 = vperm.xlu0 %3321, %v3163
          %v3323 = vpop.permute.xlu0 %3322
          %3325 = vset.pattern.permute.xlu0 1
          %3326 = vperm.xlu0 %3325, %v3164
          %v3327 = vpop.permute.xlu0 %3326
          %3329 = vset.pattern.permute.xlu0 1
          %3330 = vperm.xlu0 %3329, %v3165
          %v3331 = vpop.permute.xlu0 %3330
          %3333 = vset.pattern.permute.xlu0 1
          %3334 = vperm.xlu0 %3333, %v3166
          %v3335 = vpop.permute.xlu0 %3334
          %3337 = vset.pattern.permute.xlu0 1
          %3338 = vperm.xlu0 %3337, %v3167
          %v3339 = vpop.permute.xlu0 %3338
          %3341 = vset.pattern.permute.xlu0 1
          %3342 = vperm.xlu0 %3341, %v3168
          %v3343 = vpop.permute.xlu0 %3342
          %v3345 = vrcp.pop %v3283
          %v3346 = vmul.f32 %v3121, %v3345
          %v3347 = vrcp.pop %v3287
          %v3348 = vmul.f32 %v3122, %v3347
          %v3349 = vrcp.pop %v3291
          %v3350 = vmul.f32 %v3123, %v3349
          %v3351 = vrcp.pop %v3295
          %v3352 = vmul.f32 %v3124, %v3351
          %v3353 = vrcp.pop %v3299
          %v3354 = vmul.f32 %v3125, %v3353
          %v3355 = vrcp.pop %v3303
          %v3356 = vmul.f32 %v3126, %v3355
          %v3357 = vrcp.pop %v3307
          %v3358 = vmul.f32 %v3127, %v3357
          %v3359 = vrcp.pop %v3311
          %v3360 = vmul.f32 %v3128, %v3359
          %v3361 = vrcp.pop %v3315
          %v3362 = vmul.f32 %v3129, %v3361
          %v3363 = vrcp.pop %v3319
          %v3364 = vmul.f32 %v3130, %v3363
          %v3365 = vrcp.pop %v3323
          %v3366 = vmul.f32 %v3131, %v3365
          %v3367 = vrcp.pop %v3327
          %v3368 = vmul.f32 %v3132, %v3367
          %v3369 = vrcp.pop %v3331
          %v3370 = vmul.f32 %v3133, %v3369
          %v3371 = vrcp.pop %v3335
          %v3372 = vmul.f32 %v3134, %v3371
          %v3373 = vrcp.pop %v3339
          %v3374 = vmul.f32 %v3135, %v3373
          %v3375 = vrcp.pop %v3343
          %v3376 = vmul.f32 %v3136, %v3375
          %3377 = vset.pattern.permute.xlu0 2
          %3378 = vperm.xlu0 %3377, %v3153
          %v3379 = vpop.permute.xlu0 %3378
          %3381 = vset.pattern.permute.xlu0 2
          %3382 = vperm.xlu0 %3381, %v3154
          %v3383 = vpop.permute.xlu0 %3382
          %3385 = vset.pattern.permute.xlu0 2
          %3386 = vperm.xlu0 %3385, %v3155
          %v3387 = vpop.permute.xlu0 %3386
          %3389 = vset.pattern.permute.xlu0 2
          %3390 = vperm.xlu0 %3389, %v3156
          %v3391 = vpop.permute.xlu0 %3390
          %3393 = vset.pattern.permute.xlu0 2
          %3394 = vperm.xlu0 %3393, %v3157
          %v3395 = vpop.permute.xlu0 %3394
          %3397 = vset.pattern.permute.xlu0 2
          %3398 = vperm.xlu0 %3397, %v3158
          %v3399 = vpop.permute.xlu0 %3398
          %3401 = vset.pattern.permute.xlu0 2
          %3402 = vperm.xlu0 %3401, %v3159
          %v3403 = vpop.permute.xlu0 %3402
          %3405 = vset.pattern.permute.xlu0 2
          %3406 = vperm.xlu0 %3405, %v3160
          %v3407 = vpop.permute.xlu0 %3406
          %3409 = vset.pattern.permute.xlu0 2
          %3410 = vperm.xlu0 %3409, %v3161
          %v3411 = vpop.permute.xlu0 %3410
          %3413 = vset.pattern.permute.xlu0 2
          %3414 = vperm.xlu0 %3413, %v3162
          %v3415 = vpop.permute.xlu0 %3414
          %3417 = vset.pattern.permute.xlu0 2
          %3418 = vperm.xlu0 %3417, %v3163
          %v3419 = vpop.permute.xlu0 %3418
          %3421 = vset.pattern.permute.xlu0 2
          %3422 = vperm.xlu0 %3421, %v3164
          %v3423 = vpop.permute.xlu0 %3422
          %3425 = vset.pattern.permute.xlu0 2
          %3426 = vperm.xlu0 %3425, %v3165
          %v3427 = vpop.permute.xlu0 %3426
          %3429 = vset.pattern.permute.xlu0 2
          %3430 = vperm.xlu0 %3429, %v3166
          %v3431 = vpop.permute.xlu0 %3430
          %3433 = vset.pattern.permute.xlu0 2
          %3434 = vperm.xlu0 %3433, %v3167
          %v3435 = vpop.permute.xlu0 %3434
          %3437 = vset.pattern.permute.xlu0 2
          %3438 = vperm.xlu0 %3437, %v3168
          %v3439 = vpop.permute.xlu0 %3438
          %v3441 = vrcp.pop %v3379
          %v3442 = vmul.f32 %v3121, %v3441
          %v3443 = vrcp.pop %v3383
          %v3444 = vmul.f32 %v3122, %v3443
          %v3445 = vrcp.pop %v3387
          %v3446 = vmul.f32 %v3123, %v3445
          %v3447 = vrcp.pop %v3391
          %v3448 = vmul.f32 %v3124, %v3447
          %v3449 = vrcp.pop %v3395
          %v3450 = vmul.f32 %v3125, %v3449
          %v3451 = vrcp.pop %v3399
          %v3452 = vmul.f32 %v3126, %v3451
          %v3453 = vrcp.pop %v3403
          %v3454 = vmul.f32 %v3127, %v3453
          %v3455 = vrcp.pop %v3407
          %v3456 = vmul.f32 %v3128, %v3455
          %v3457 = vrcp.pop %v3411
          %v3458 = vmul.f32 %v3129, %v3457
          %v3459 = vrcp.pop %v3415
          %v3460 = vmul.f32 %v3130, %v3459
          %v3461 = vrcp.pop %v3419
          %v3462 = vmul.f32 %v3131, %v3461
          %v3463 = vrcp.pop %v3423
          %v3464 = vmul.f32 %v3132, %v3463
          %v3465 = vrcp.pop %v3427
          %v3466 = vmul.f32 %v3133, %v3465
          %v3467 = vrcp.pop %v3431
          %v3468 = vmul.f32 %v3134, %v3467
          %v3469 = vrcp.pop %v3435
          %v3470 = vmul.f32 %v3135, %v3469
          %v3471 = vrcp.pop %v3439
          %v3472 = vmul.f32 %v3136, %v3471
          %3473 = vset.pattern.permute.xlu0 3
          %3474 = vperm.xlu0 %3473, %v3153
          %v3475 = vpop.permute.xlu0 %3474
          %3477 = vset.pattern.permute.xlu0 3
          %3478 = vperm.xlu0 %3477, %v3154
          %v3479 = vpop.permute.xlu0 %3478
          %3481 = vset.pattern.permute.xlu0 3
          %3482 = vperm.xlu0 %3481, %v3155
          %v3483 = vpop.permute.xlu0 %3482
          %3485 = vset.pattern.permute.xlu0 3
          %3486 = vperm.xlu0 %3485, %v3156
          %v3487 = vpop.permute.xlu0 %3486
          %3489 = vset.pattern.permute.xlu0 3
          %3490 = vperm.xlu0 %3489, %v3157
          %v3491 = vpop.permute.xlu0 %3490
          %3493 = vset.pattern.permute.xlu0 3
          %3494 = vperm.xlu0 %3493, %v3158
          %v3495 = vpop.permute.xlu0 %3494
          %3497 = vset.pattern.permute.xlu0 3
          %3498 = vperm.xlu0 %3497, %v3159
          %v3499 = vpop.permute.xlu0 %3498
          %3501 = vset.pattern.permute.xlu0 3
          %3502 = vperm.xlu0 %3501, %v3160
          %v3503 = vpop.permute.xlu0 %3502
          %3505 = vset.pattern.permute.xlu0 3
          %3506 = vperm.xlu0 %3505, %v3161
          %v3507 = vpop.permute.xlu0 %3506
          %3509 = vset.pattern.permute.xlu0 3
          %3510 = vperm.xlu0 %3509, %v3162
          %v3511 = vpop.permute.xlu0 %3510
          %3513 = vset.pattern.permute.xlu0 3
          %3514 = vperm.xlu0 %3513, %v3163
          %v3515 = vpop.permute.xlu0 %3514
          %3517 = vset.pattern.permute.xlu0 3
          %3518 = vperm.xlu0 %3517, %v3164
          %v3519 = vpop.permute.xlu0 %3518
          %3521 = vset.pattern.permute.xlu0 3
          %3522 = vperm.xlu0 %3521, %v3165
          %v3523 = vpop.permute.xlu0 %3522
          %3525 = vset.pattern.permute.xlu0 3
          %3526 = vperm.xlu0 %3525, %v3166
          %v3527 = vpop.permute.xlu0 %3526
          %3529 = vset.pattern.permute.xlu0 3
          %3530 = vperm.xlu0 %3529, %v3167
          %v3531 = vpop.permute.xlu0 %3530
          %3533 = vset.pattern.permute.xlu0 3
          %3534 = vperm.xlu0 %3533, %v3168
          %v3535 = vpop.permute.xlu0 %3534
          %v3537 = vrcp.pop %v3475
          %v3538 = vmul.f32 %v3121, %v3537
          %v3539 = vrcp.pop %v3479
          %v3540 = vmul.f32 %v3122, %v3539
          %v3541 = vrcp.pop %v3483
          %v3542 = vmul.f32 %v3123, %v3541
          %v3543 = vrcp.pop %v3487
          %v3544 = vmul.f32 %v3124, %v3543
          %v3545 = vrcp.pop %v3491
          %v3546 = vmul.f32 %v3125, %v3545
          %v3547 = vrcp.pop %v3495
          %v3548 = vmul.f32 %v3126, %v3547
          %v3549 = vrcp.pop %v3499
          %v3550 = vmul.f32 %v3127, %v3549
          %v3551 = vrcp.pop %v3503
          %v3552 = vmul.f32 %v3128, %v3551
          %v3553 = vrcp.pop %v3507
          %v3554 = vmul.f32 %v3129, %v3553
          %v3555 = vrcp.pop %v3511
          %v3556 = vmul.f32 %v3130, %v3555
          %v3557 = vrcp.pop %v3515
          %v3558 = vmul.f32 %v3131, %v3557
          %v3559 = vrcp.pop %v3519
          %v3560 = vmul.f32 %v3132, %v3559
          %v3561 = vrcp.pop %v3523
          %v3562 = vmul.f32 %v3133, %v3561
          %v3563 = vrcp.pop %v3527
          %v3564 = vmul.f32 %v3134, %v3563
          %v3565 = vrcp.pop %v3531
          %v3566 = vmul.f32 %v3135, %v3565
          %v3567 = vrcp.pop %v3535
          %v3568 = vmul.f32 %v3136, %v3567
          %v3569 = vsel %vm919, %v3250, %v3346
          %v3570 = vsel %vm919, %v3252, %v3348
          %v3571 = vsel %vm919, %v3254, %v3350
          %v3572 = vsel %vm919, %v3256, %v3352
          %v3573 = vsel %vm919, %v3258, %v3354
          %v3574 = vsel %vm919, %v3260, %v3356
          %v3575 = vsel %vm919, %v3262, %v3358
          %v3576 = vsel %vm919, %v3264, %v3360
          %v3577 = vsel %vm919, %v3266, %v3362
          %v3578 = vsel %vm919, %v3268, %v3364
          %v3579 = vsel %vm919, %v3270, %v3366
          %v3580 = vsel %vm919, %v3272, %v3368
          %v3581 = vsel %vm919, %v3274, %v3370
          %v3582 = vsel %vm919, %v3276, %v3372
          %v3583 = vsel %vm919, %v3278, %v3374
          %v3584 = vsel %vm919, %v3280, %v3376
          %v3585 = vsel %vm2951, %v3569, %v3442
          %v3586 = vsel %vm2951, %v3570, %v3444
          %v3587 = vsel %vm2951, %v3571, %v3446
          %v3588 = vsel %vm2951, %v3572, %v3448
          %v3589 = vsel %vm2951, %v3573, %v3450
          %v3590 = vsel %vm2951, %v3574, %v3452
          %v3591 = vsel %vm2951, %v3575, %v3454
          %v3592 = vsel %vm2951, %v3576, %v3456
          %v3593 = vsel %vm2951, %v3577, %v3458
          %v3594 = vsel %vm2951, %v3578, %v3460
          %v3595 = vsel %vm2951, %v3579, %v3462
          %v3596 = vsel %vm2951, %v3580, %v3464
          %v3597 = vsel %vm2951, %v3581, %v3466
          %v3598 = vsel %vm2951, %v3582, %v3468
          %v3599 = vsel %vm2951, %v3583, %v3470
          %v3600 = vsel %vm2951, %v3584, %v3472
          %v3601 = vsel %vm2968, %v3585, %v3538
          %v3602 = vsel %vm2968, %v3586, %v3540
          %v3603 = vsel %vm2968, %v3587, %v3542
          %v3604 = vsel %vm2968, %v3588, %v3544
          %v3605 = vsel %vm2968, %v3589, %v3546
          %v3606 = vsel %vm2968, %v3590, %v3548
          %v3607 = vsel %vm2968, %v3591, %v3550
          %v3608 = vsel %vm2968, %v3592, %v3552
          %v3609 = vsel %vm2968, %v3593, %v3554
          %v3610 = vsel %vm2968, %v3594, %v3556
          %v3611 = vsel %vm2968, %v3595, %v3558
          %v3612 = vsel %vm2968, %v3596, %v3560
          %v3613 = vsel %vm2968, %v3597, %v3562
          %v3614 = vsel %vm2968, %v3598, %v3564
          %v3615 = vsel %vm2968, %v3599, %v3566
          %v3616 = vsel %vm2968, %v3600, %v3568
          %v3617 = vld [vmem:[%s6] sm:$0x1]
          %v3619 = vlaneseq
          %v3620 = vshrl.u32 %v3619, 7
          %v3621 = vsub.s32 0, %v3620
          %v3622 = vrot.slane %v3617, %v3621
          %v3624 = vadd.f32 %v3601, %v3622
          %v3625 = vadd.f32 %v3602, %v3622
          %v3626 = vadd.f32 %v3603, %v3622
          %v3627 = vadd.f32 %v3604, %v3622
          %v3628 = vadd.f32 %v3605, %v3622
          %v3629 = vadd.f32 %v3606, %v3622
          %v3630 = vadd.f32 %v3607, %v3622
          %v3631 = vadd.f32 %v3608, %v3622
          %v3632 = vadd.f32 %v3609, %v3622
          %v3633 = vadd.f32 %v3610, %v3622
          %v3634 = vadd.f32 %v3611, %v3622
          %v3635 = vadd.f32 %v3612, %v3622
          %v3636 = vadd.f32 %v3613, %v3622
          %v3637 = vadd.f32 %v3614, %v3622
          %v3638 = vadd.f32 %v3615, %v3622
          %v3639 = vadd.f32 %v3616, %v3622
          %vm3640 = vcmp.gt.f32.partialorder %v3624, 0.0
          %vm3641 = vcmp.gt.f32.partialorder %v3625, 0.0
          %vm3642 = vcmp.gt.f32.partialorder %v3626, 0.0
          %vm3643 = vcmp.gt.f32.partialorder %v3627, 0.0
          %vm3644 = vcmp.gt.f32.partialorder %v3628, 0.0
          %vm3645 = vcmp.gt.f32.partialorder %v3629, 0.0
          %vm3646 = vcmp.gt.f32.partialorder %v3630, 0.0
          %vm3647 = vcmp.gt.f32.partialorder %v3631, 0.0
          %vm3648 = vcmp.gt.f32.partialorder %v3632, 0.0
          %vm3649 = vcmp.gt.f32.partialorder %v3633, 0.0
          %vm3650 = vcmp.gt.f32.partialorder %v3634, 0.0
          %vm3651 = vcmp.gt.f32.partialorder %v3635, 0.0
          %vm3652 = vcmp.gt.f32.partialorder %v3636, 0.0
          %vm3653 = vcmp.gt.f32.partialorder %v3637, 0.0
          %vm3654 = vcmp.gt.f32.partialorder %v3638, 0.0
          %vm3655 = vcmp.gt.f32.partialorder %v3639, 0.0
          %v3656 = vmul.f32 %v3624, 1.442695
          %v3657 = vpow.pop %v3656
          %v3658 = vmul.f32 %v3625, 1.442695
          %v3659 = vpow.pop %v3658
          %v3660 = vmul.f32 %v3626, 1.442695
          %v3661 = vpow.pop %v3660
          %v3662 = vmul.f32 %v3627, 1.442695
          %v3663 = vpow.pop %v3662
          %v3664 = vmul.f32 %v3628, 1.442695
          %v3665 = vpow.pop %v3664
          %v3666 = vmul.f32 %v3629, 1.442695
          %v3667 = vpow.pop %v3666
          %v3668 = vmul.f32 %v3630, 1.442695
          %v3669 = vpow.pop %v3668
          %v3670 = vmul.f32 %v3631, 1.442695
          %v3671 = vpow.pop %v3670
          %v3672 = vmul.f32 %v3632, 1.442695
          %v3673 = vpow.pop %v3672
          %v3674 = vmul.f32 %v3633, 1.442695
          %v3675 = vpow.pop %v3674
          %v3676 = vmul.f32 %v3634, 1.442695
          %v3677 = vpow.pop %v3676
          %v3678 = vmul.f32 %v3635, 1.442695
          %v3679 = vpow.pop %v3678
          %v3680 = vmul.f32 %v3636, 1.442695
          %v3681 = vpow.pop %v3680
          %v3682 = vmul.f32 %v3637, 1.442695
          %v3683 = vpow.pop %v3682
          %v3684 = vmul.f32 %v3638, 1.442695
          %v3685 = vpow.pop %v3684
          %v3686 = vmul.f32 %v3639, 1.442695
          %v3687 = vpow.pop %v3686
          %v3688 = vsub.f32 %v3657, 1.0
          %v3689 = vsub.f32 %v3659, 1.0
          %v3690 = vsub.f32 %v3661, 1.0
          %v3691 = vsub.f32 %v3663, 1.0
          %v3692 = vsub.f32 %v3665, 1.0
          %v3693 = vsub.f32 %v3667, 1.0
          %v3694 = vsub.f32 %v3669, 1.0
          %v3695 = vsub.f32 %v3671, 1.0
          %v3696 = vsub.f32 %v3673, 1.0
          %v3697 = vsub.f32 %v3675, 1.0
          %v3698 = vsub.f32 %v3677, 1.0
          %v3699 = vsub.f32 %v3679, 1.0
          %v3700 = vsub.f32 %v3681, 1.0
          %v3701 = vsub.f32 %v3683, 1.0
          %v3702 = vsub.f32 %v3685, 1.0
          %v3703 = vsub.f32 %v3687, 1.0
          %v3704 = vsel %vm3640, %v3624, %v3688
          %v3705 = vsel %vm3641, %v3625, %v3689
          %v3706 = vsel %vm3642, %v3626, %v3690
          %v3707 = vsel %vm3643, %v3627, %v3691
          %v3708 = vsel %vm3644, %v3628, %v3692
          %v3709 = vsel %vm3645, %v3629, %v3693
          %v3710 = vsel %vm3646, %v3630, %v3694
          %v3711 = vsel %vm3647, %v3631, %v3695
          %v3712 = vsel %vm3648, %v3632, %v3696
          %v3713 = vsel %vm3649, %v3633, %v3697
          %v3714 = vsel %vm3650, %v3634, %v3698
          %v3715 = vsel %vm3651, %v3635, %v3699
          %v3716 = vsel %vm3652, %v3636, %v3700
          %v3717 = vsel %vm3653, %v3637, %v3701
          %v3718 = vsel %vm3654, %v3638, %v3702
          %v3719 = vsel %vm3655, %v3639, %v3703
          %3720 = vst [vmem:[%s420] sm:$0xff] %v3704
          %3721 = vst [vmem:[%s420 + $0x8] sm:$0xff] %v3705
          %3722 = vst [vmem:[%s420 + $0x10] sm:$0xff] %v3706
          %3723 = vst [vmem:[%s420 + $0x18] sm:$0xff] %v3707
          %3724 = vst [vmem:[%s420 + $0x20] sm:$0xff] %v3708
          %3725 = vst [vmem:[%s420 + $0x28] sm:$0xff] %v3709
          %3726 = vst [vmem:[%s420 + $0x30] sm:$0xff] %v3710
          %3727 = vst [vmem:[%s420 + $0x38] sm:$0xff] %v3711
          %3728 = vst [vmem:[%s420 + $0x40] sm:$0xff] %v3712
          %3729 = vst [vmem:[%s420 + $0x48] sm:$0xff] %v3713
          %3730 = vst [vmem:[%s420 + $0x50] sm:$0xff] %v3714
          %3731 = vst [vmem:[%s420 + $0x58] sm:$0xff] %v3715
          %3732 = vst [vmem:[%s420 + $0x60] sm:$0xff] %v3716
          %3733 = vst [vmem:[%s420 + $0x68] sm:$0xff] %v3717
          %3734 = vst [vmem:[%s420 + $0x70] sm:$0xff] %v3718
          %3735 = vst [vmem:[%s420 + $0x78] sm:$0xff] %v3719
        $region94: #{tpu_custom_call.1} parent=81 // pred_fallthru
          _
        %s3736 = sand.u32 %s205, 1
        %s3737 = scalar_lea.sflag [#allocation7], %s3736
        %s3738 = sand.u32 %s205, 1
        %s3739 = smul.addr %s3738, 128
        %s3740 = scalar_lea.vmem [#allocation6], %s3739
        // Predicated region
        $region95: #{tpu_custom_call.1} parent=81 // pred_check
          %p3741 = pneg %p215
        $region96: #{tpu_custom_call.1} parent=81 // pred_check_branch
          %3743 = sbr.rel (%p3741) target = $region98
        $region97: #{tpu_custom_call.1} parent=81 // pred_region
          %s3744 = smul.u32 16, %s25
          %s3746 = ssub.s32 2048, 2048
          %3747 = vsyncadd %s3737, %s3746
          %s3748 = smul.addr %s3744, 128
          %s3749 = scalar_lea.hbm %s7, %s3748
          %s3750 = sshll.u32 %s3740, 4
          %s3751 = int_to_ptr.vmem [resolvable:$true] %s3750
          %3756 = dma.vmem_to_hbm [thread:$0]  %s3751, 2048, %s3749, %s3737, 128, 128, 8
        $region98: #{tpu_custom_call.1} parent=81 // pred_fallthru
          _
      $region82: #{tpu_custom_call.1} parent=5 // pred_fallthru
        _
      %p3757 = scmp.le.s32.totalorder 2, %s16
      // Predicated region
      $region99: #{tpu_custom_call.1} parent=5 // pred_check
        %p3758 = pneg %p3757
      $region100: #{tpu_custom_call.1} parent=5 // pred_check_branch
        %3760 = sbr.rel (%p3758) target = $region102
      $region101: #{tpu_custom_call.1} parent=5 // pred_region
        %s3761 = ssub.s32 %s16, 2
        // Predicated region
        $region103: #{tpu_custom_call.1} parent=101 // pred_check
          %p3762 = pneg %p221
        $region104: #{tpu_custom_call.1} parent=101 // pred_check_branch
          %3764 = sbr.rel (%p3762) target = $region106
        $region105: #{tpu_custom_call.1} parent=101 // pred_region
          %s3765 = sand.u32 %s206, 1
          %s3766 = scalar_lea.sflag [#allocation7], %s3765
          %s3767 = sand.u32 %s206, 1
          %s3768 = smul.addr %s3767, 128
          %s3769 = scalar_lea.vmem [#allocation6], %s3768
          %3770 = dma.done %s3766, 2048
        $region106: #{tpu_custom_call.1} parent=101 // pred_fallthru
          _
      $region102: #{tpu_custom_call.1} parent=5 // pred_fallthru
        _
    $region6: #{tpu_custom_call.1} parent=1 // loop_footer
      %s20 = sadd.s32 1, %s16
    $region7: #{tpu_custom_call.1} parent=1 // loop_footer_branch
      %15 = sbr.rel target = $region3
    $region8: #{tpu_custom_call.1} parent=1 // loop_exit
      _
    %3771 = vsyncpa [#allocation7], 1
    %s3772 = scalar_lea.sflag [#allocation7], 1
    %3773 = vsyncpa %s3772, 1

</llo_original>
